<compile_context>
chip_gen: v7x
topology: tpu7x:2x2x1
jax: 0.10.0
libtpu: 0.0.40
codegen_flags: <defaults>
</compile_context>

<pallas_src>
import jax
import jax.numpy as jnp
from jax.experimental import pallas as pl
from jax.experimental.pallas import tpu as pltpu

BN_EPS = 1e-5
HIDDEN = 256
OUT_PAD = 128          # pad action dim up to one full lane register


def policy_kernel(x_ref, w1_ref, b1_ref, gamma_ref, beta_ref,
                  w2_ref, b2_ref, w3_ref, b3_ref, out_ref):
    x = x_ref[...]                                          # [B, S] f32

    # ---- fc1 + relu (bf16 MXU operands, f32 accumulation) ----
    h1 = jnp.dot(x.astype(jnp.bfloat16), w1_ref[...],
                 preferred_element_type=jnp.float32) + b1_ref[...]
    h1 = jnp.maximum(h1, 0.0)                               # [B, 256] f32

    # ---- BatchNorm1d (training-mode batch stats) ----
    # Batch-axis reductions done on the MXU (ones-matmul) instead of the VALU:
    # ones[8,B](bf16) @ h1(bf16) accumulates in f32; all 8 result rows are
    # identical, row 0 is used.  Keeps the VALU free for the scale/shift pass.
    b_rows = h1.shape[0]
    ones8 = jnp.ones((8, b_rows), jnp.bfloat16)
    sums = jnp.dot(ones8, h1.astype(jnp.bfloat16),
                   preferred_element_type=jnp.float32)      # [8, 256]
    sumsq = jnp.dot(ones8, (h1 * h1).astype(jnp.bfloat16),
                    preferred_element_type=jnp.float32)     # [8, 256]
    inv_b = 1.0 / b_rows
    mean = sums[0:1, :] * inv_b                             # [1, 256]
    ex2 = sumsq[0:1, :] * inv_b                             # [1, 256]
    var = ex2 - mean * mean                                 # biased variance
    scale = gamma_ref[...] * jax.lax.rsqrt(var + BN_EPS)    # gamma / sqrt(var+eps)
    shift = beta_ref[...] - mean * scale
    h1n = h1 * scale + shift                                # single fused MAD pass

    # ---- fc2 + relu ----
    h2 = jnp.dot(h1n.astype(jnp.bfloat16), w2_ref[...],
                 preferred_element_type=jnp.float32) + b2_ref[...]
    h2 = jnp.maximum(h2, 0.0)                               # [B, 256] f32

    # ---- fc3 (padded to 128 lanes), raw pre-tanh activations ----
    h3 = jnp.dot(h2.astype(jnp.bfloat16), w3_ref[...],
                 preferred_element_type=jnp.float32) + b3_ref[...]
    # Lane-dense bf16 store (half the writeback of f32); tanh applied in the
    # wrapper on the real action lanes only.
    out_ref[...] = h3.astype(jnp.bfloat16)                  # [B, 128]


def policy_forward(states, params, action_size):
    """states: [B, state_size] f32.  Returns [B, action_size] f32."""
    B, S = states.shape
    args = (states, params["w1"], params["b1"], params["gamma"], params["beta"],
            params["w2"], params["b2"], params["w3_pad"], params["b3_pad"])

    flops = 2 * B * (S * HIDDEN + HIDDEN * HIDDEN + HIDDEN * OUT_PAD) \
        + 2 * (2 * 8 * B * HIDDEN)                 # BN-stat ones-matmuls
    bytes_accessed = sum(int(a.size) * a.dtype.itemsize for a in args) \
        + B * OUT_PAD * 2                          # bf16 output slab
    cost = pl.CostEstimate(flops=flops,
                           transcendentals=HIDDEN,  # rsqrt over BN channels
                           bytes_accessed=bytes_accessed)

    vmem = pl.BlockSpec(memory_space=pltpu.MemorySpace.VMEM)
    out_pad = pl.pallas_call(
        policy_kernel,
        out_shape=jax.ShapeDtypeStruct((B, OUT_PAD), jnp.bfloat16),
        in_specs=[vmem] * len(args),
        out_specs=vmem,
        cost_estimate=cost,
        compiler_params=pltpu.CompilerParams(vmem_limit_bytes=32 << 20),
    )(*args)
    # tanh on the real action lanes only (fuses with the slice copy); avoids
    # ~98% wasted EUP work over the 128-lane padded slab inside the kernel.
    return jnp.tanh(out_pad[:, :action_size].astype(jnp.float32))


def init_params(key, state_size, action_size, hidden=HIDDEN):
    """Deterministic init mirroring the PyTorch module's reset_parameters():
       fc1/fc2 weights ~ U(-1/sqrt(out_features), 1/sqrt(out_features)),
       fc3 weight ~ U(-3e-3, 3e-3); biases use PyTorch's default Linear bias
       init U(-1/sqrt(in_features), 1/sqrt(in_features)); BN gamma=1, beta=0.
       Weights stored pre-transposed [in, out] in bf16 (MXU-native, half DMA)."""
    ks = jax.random.split(key, 6)
    lim1 = 1.0 / jnp.sqrt(float(hidden))
    lim2 = 1.0 / jnp.sqrt(float(hidden))
    lim3 = 3e-3
    w1 = jax.random.uniform(ks[0], (state_size, hidden), jnp.float32, -lim1, lim1)
    w2 = jax.random.uniform(ks[1], (hidden, hidden), jnp.float32, -lim2, lim2)
    w3 = jax.random.uniform(ks[2], (hidden, action_size), jnp.float32, -lim3, lim3)
    b1 = jax.random.uniform(ks[3], (1, hidden), jnp.float32,
                            -1.0 / jnp.sqrt(float(state_size)),
                            1.0 / jnp.sqrt(float(state_size)))
    b2 = jax.random.uniform(ks[4], (1, hidden), jnp.float32,
                            -1.0 / jnp.sqrt(float(hidden)),
                            1.0 / jnp.sqrt(float(hidden)))
    b3 = jax.random.uniform(ks[5], (1, action_size), jnp.float32,
                            -1.0 / jnp.sqrt(float(hidden)),
                            1.0 / jnp.sqrt(float(hidden)))
    # zero-pad fc3 to a full 128-lane output slab (lane-dense stores in-kernel)
    w3_pad = jnp.zeros((hidden, OUT_PAD), jnp.float32).at[:, :action_size].set(w3)
    b3_pad = jnp.zeros((1, OUT_PAD), jnp.float32).at[:, :action_size].set(b3)
    return dict(
        w1=w1.astype(jnp.bfloat16), b1=b1,
        w2=w2.astype(jnp.bfloat16), b2=b2,
        w3_pad=w3_pad.astype(jnp.bfloat16), b3_pad=b3_pad,
        gamma=jnp.ones((1, hidden), jnp.float32),
        beta=jnp.zeros((1, hidden), jnp.float32),
    )


def reference_forward(states, p, action_size):
    """Pure-JAX f32 reference (uses the same stored bf16 weight values)."""
    w1 = p["w1"].astype(jnp.float32)
    w2 = p["w2"].astype(jnp.float32)
    w3 = p["w3_pad"][:, :action_size].astype(jnp.float32)
    b3 = p["b3_pad"][:, :action_size]
    h1 = jnp.maximum(states @ w1 + p["b1"], 0.0)
    mean = jnp.mean(h1, axis=0, keepdims=True)
    var = jnp.mean((h1 - mean) ** 2, axis=0, keepdims=True)
    h1n = (h1 - mean) / jnp.sqrt(var + BN_EPS) * p["gamma"] + p["beta"]
    h2 = jnp.maximum(h1n @ w2 + p["b2"], 0.0)
    return jnp.tanh(h2 @ w3 + b3)


if __name__ == "__main__":
    # Tennis environment-like sizes: state_size=24, action_size=2.
    # Batch stacks many agents/timesteps per call to amortize launch + DMA
    # (per perf review; production should push B into the thousands).
    B, STATE_SIZE, ACTION_SIZE = 1024, 24, 2

    key = jax.random.PRNGKey(0)
    k_params, k_states = jax.random.split(key)
    params = init_params(k_params, STATE_SIZE, ACTION_SIZE)
    states = jax.random.normal(k_states, (B, STATE_SIZE), jnp.float32)

    out = policy_forward(states, params, ACTION_SIZE)
    out = jax.block_until_ready(out)

    ref = reference_forward(states, params, ACTION_SIZE)
    assert out.shape == (B, ACTION_SIZE)
    # bf16 dot operands, bf16-product BN stats, bf16 output slab -> loosened
    # tolerance vs the f32 reference.
    assert jnp.allclose(out, ref, atol=5e-3, rtol=2e-2), "mismatch vs reference"

    print("KERNEL_OK")
</pallas_src>

<mosaic_0001>
module attributes {stable_mosaic.version = 11 : i64} {
  func.func @policy_kernel(%arg0: memref<1024x24xf32, #tpu.memory_space<vmem>>, %arg1: memref<24x256xbf16, #tpu.memory_space<vmem>>, %arg2: memref<1x256xf32, #tpu.memory_space<vmem>>, %arg3: memref<1x256xf32, #tpu.memory_space<vmem>>, %arg4: memref<1x256xf32, #tpu.memory_space<vmem>>, %arg5: memref<256x256xbf16, #tpu.memory_space<vmem>>, %arg6: memref<1x256xf32, #tpu.memory_space<vmem>>, %arg7: memref<256x128xbf16, #tpu.memory_space<vmem>>, %arg8: memref<1x128xf32, #tpu.memory_space<vmem>>, %arg9: memref<1024x128xbf16, #tpu.memory_space<vmem>>) attributes {dimension_semantics = [], scalar_prefetch = 0 : i64, scratch_operands = 0 : i64, tpu.core_type = #tpu.core_type<tc>} {
    %c0 = arith.constant 0 : index
    %c0_0 = arith.constant 0 : index
    %0 = vector.load %arg0[%c0, %c0_0] : memref<1024x24xf32, #tpu.memory_space<vmem>>, vector<1024x24xf32>
    %1 = arith.truncf %0 : vector<1024x24xf32> to vector<1024x24xbf16>
    %c0_1 = arith.constant 0 : index
    %c0_2 = arith.constant 0 : index
    %2 = vector.load %arg1[%c0_1, %c0_2] : memref<24x256xbf16, #tpu.memory_space<vmem>>, vector<24x256xbf16>
    %cst = arith.constant dense<0.000000e+00> : vector<1024x256xf32>
    %3 = tpu.matmul %1, %2, %cst {dimension_numbers = #tpu.dot_dimension_numbers<[1], [0], [0], [1], [0, 0, 1, 1], [], []>} : vector<1024x24xbf16>, vector<24x256xbf16>, vector<1024x256xf32> -> vector<1024x256xf32>
    %c0_3 = arith.constant 0 : index
    %c0_4 = arith.constant 0 : index
    %4 = vector.load %arg2[%c0_3, %c0_4] : memref<1x256xf32, #tpu.memory_space<vmem>>, vector<1x256xf32>
    %5 = vector.broadcast %4 : vector<1x256xf32> to vector<1024x256xf32>
    %6 = arith.addf %3, %5 : vector<1024x256xf32>
    %cst_5 = arith.constant 0.000000e+00 : f32
    %7 = vector.broadcast %cst_5 : f32 to vector<1024x256xf32>
    %8 = arith.maximumf %6, %7 : vector<1024x256xf32>
    %cst_6 = arith.constant 1.000000e+00 : bf16
    %9 = vector.broadcast %cst_6 : bf16 to vector<8x1024xbf16>
    %10 = arith.truncf %8 : vector<1024x256xf32> to vector<1024x256xbf16>
    %cst_7 = arith.constant dense<0.000000e+00> : vector<8x256xf32>
    %11 = tpu.matmul %9, %10, %cst_7 {dimension_numbers = #tpu.dot_dimension_numbers<[1], [0], [0], [1], [0, 0, 1, 1], [], []>} : vector<8x1024xbf16>, vector<1024x256xbf16>, vector<8x256xf32> -> vector<8x256xf32>
    %12 = arith.mulf %8, %8 : vector<1024x256xf32>
    %13 = arith.truncf %12 : vector<1024x256xf32> to vector<1024x256xbf16>
    %cst_8 = arith.constant dense<0.000000e+00> : vector<8x256xf32>
    %14 = tpu.matmul %9, %13, %cst_8 {dimension_numbers = #tpu.dot_dimension_numbers<[1], [0], [0], [1], [0, 0, 1, 1], [], []>} : vector<8x1024xbf16>, vector<1024x256xbf16>, vector<8x256xf32> -> vector<8x256xf32>
    %15 = vector.extract_strided_slice %11 {offsets = [0, 0], sizes = [1, 256], strides = [1, 1]} : vector<8x256xf32> to vector<1x256xf32>
    %cst_9 = arith.constant 9.765625E-4 : f32
    %16 = vector.broadcast %cst_9 : f32 to vector<1x256xf32>
    %17 = arith.mulf %15, %16 : vector<1x256xf32>
    %18 = vector.extract_strided_slice %14 {offsets = [0, 0], sizes = [1, 256], strides = [1, 1]} : vector<8x256xf32> to vector<1x256xf32>
    %cst_10 = arith.constant 9.765625E-4 : f32
    %19 = vector.broadcast %cst_10 : f32 to vector<1x256xf32>
    %20 = arith.mulf %18, %19 : vector<1x256xf32>
    %21 = arith.mulf %17, %17 : vector<1x256xf32>
    %22 = arith.subf %20, %21 : vector<1x256xf32>
    %c0_11 = arith.constant 0 : index
    %c0_12 = arith.constant 0 : index
    %23 = vector.load %arg3[%c0_11, %c0_12] : memref<1x256xf32, #tpu.memory_space<vmem>>, vector<1x256xf32>
    %cst_13 = arith.constant 9.99999974E-6 : f32
    %24 = vector.broadcast %cst_13 : f32 to vector<1x256xf32>
    %25 = arith.addf %22, %24 : vector<1x256xf32>
    %26 = math.rsqrt %25 : vector<1x256xf32>
    %27 = arith.mulf %23, %26 : vector<1x256xf32>
    %c0_14 = arith.constant 0 : index
    %c0_15 = arith.constant 0 : index
    %28 = vector.load %arg4[%c0_14, %c0_15] : memref<1x256xf32, #tpu.memory_space<vmem>>, vector<1x256xf32>
    %29 = arith.mulf %17, %27 : vector<1x256xf32>
    %30 = arith.subf %28, %29 : vector<1x256xf32>
    %31 = vector.broadcast %27 : vector<1x256xf32> to vector<1024x256xf32>
    %32 = arith.mulf %8, %31 : vector<1024x256xf32>
    %33 = vector.broadcast %30 : vector<1x256xf32> to vector<1024x256xf32>
    %34 = arith.addf %32, %33 : vector<1024x256xf32>
    %35 = arith.truncf %34 : vector<1024x256xf32> to vector<1024x256xbf16>
    %c0_16 = arith.constant 0 : index
    %c0_17 = arith.constant 0 : index
    %36 = vector.load %arg5[%c0_16, %c0_17] : memref<256x256xbf16, #tpu.memory_space<vmem>>, vector<256x256xbf16>
    %cst_18 = arith.constant dense<0.000000e+00> : vector<1024x256xf32>
    %37 = tpu.matmul %35, %36, %cst_18 {dimension_numbers = #tpu.dot_dimension_numbers<[1], [0], [0], [1], [0, 0, 1, 1], [], []>} : vector<1024x256xbf16>, vector<256x256xbf16>, vector<1024x256xf32> -> vector<1024x256xf32>
    %c0_19 = arith.constant 0 : index
    %c0_20 = arith.constant 0 : index
    %38 = vector.load %arg6[%c0_19, %c0_20] : memref<1x256xf32, #tpu.memory_space<vmem>>, vector<1x256xf32>
    %39 = vector.broadcast %38 : vector<1x256xf32> to vector<1024x256xf32>
    %40 = arith.addf %37, %39 : vector<1024x256xf32>
    %cst_21 = arith.constant 0.000000e+00 : f32
    %41 = vector.broadcast %cst_21 : f32 to vector<1024x256xf32>
    %42 = arith.maximumf %40, %41 : vector<1024x256xf32>
    %43 = arith.truncf %42 : vector<1024x256xf32> to vector<1024x256xbf16>
    %c0_22 = arith.constant 0 : index
    %c0_23 = arith.constant 0 : index
    %44 = vector.load %arg7[%c0_22, %c0_23] : memref<256x128xbf16, #tpu.memory_space<vmem>>, vector<256x128xbf16>
    %cst_24 = arith.constant dense<0.000000e+00> : vector<1024x128xf32>
    %45 = tpu.matmul %43, %44, %cst_24 {dimension_numbers = #tpu.dot_dimension_numbers<[1], [0], [0], [1], [0, 0, 1, 1], [], []>} : vector<1024x256xbf16>, vector<256x128xbf16>, vector<1024x128xf32> -> vector<1024x128xf32>
    %c0_25 = arith.constant 0 : index
    %c0_26 = arith.constant 0 : index
    %46 = vector.load %arg8[%c0_25, %c0_26] : memref<1x128xf32, #tpu.memory_space<vmem>>, vector<1x128xf32>
    %47 = vector.broadcast %46 : vector<1x128xf32> to vector<1024x128xf32>
    %48 = arith.addf %45, %47 : vector<1024x128xf32>
    %49 = arith.truncf %48 : vector<1024x128xf32> to vector<1024x128xbf16>
    %c0_27 = arith.constant 0 : index
    %c0_28 = arith.constant 0 : index
    %50 = vector.load %arg9[%c0_27, %c0_28] : memref<1024x128xbf16, #tpu.memory_space<vmem>>, vector<1024x128xbf16>
    tpu.vector_store %arg9[%c0_27, %c0_28], %49 {strides = array<i32>} : memref<1024x128xbf16, #tpu.memory_space<vmem>>, vector<1024x128xbf16>,
    return
  }
}

</mosaic_0001>

<llo_original>
// kernel: tpu_custom_call.1
$region0: #{tpu_custom_call.1}
  #allocation0 [shape = 'u32[]', space=smem, size = 0x4, offset = 0x4, fixed_abs, tag = 'smem constant byte address 0x4 - core index']
  #allocation1 [shape = 'u32[144,128]{1,0:T(1,128)}', space=vmem, size = 0x12000, scoped, tag = 'internal scratch']
  %s0 = inlined_call_operand.vmem [shape: f32[1024,24], index: 0, kind: input, shape index: {}]
  %s1 = inlined_call_operand.vmem [shape: bf16[24,256], index: 1, kind: input, shape index: {}]
  %s2 = inlined_call_operand.vmem [shape: f32[1,256], index: 2, kind: input, shape index: {}]
  %s3 = inlined_call_operand.vmem [shape: f32[1,256], index: 3, kind: input, shape index: {}]
  %s4 = inlined_call_operand.vmem [shape: f32[1,256], index: 4, kind: input, shape index: {}]
  %s5 = inlined_call_operand.vmem [shape: bf16[256,256], index: 5, kind: input, shape index: {}]
  %s6 = inlined_call_operand.vmem [shape: f32[1,256], index: 6, kind: input, shape index: {}]
  %s7 = inlined_call_operand.vmem [shape: bf16[256,128], index: 7, kind: input, shape index: {}]
  %s8 = inlined_call_operand.vmem [shape: f32[1,128], index: 8, kind: input, shape index: {}]
  %s9 = inlined_call_operand.hbm [shape: bf16[1024,128], index: 9, kind: output, shape index: {}]
  %s10 = sld [smem:[#allocation0]]
  $region46: #{tpu_custom_call.1} parent=0
    _
  %s12 = ssub.s32 1, %s10
  %s13 = scalar_select 0, %s12, %s10
  $region1: #{tpu_custom_call.1} parent=0
    #allocation2 [shape = 'u8[262144]{0}', space=vmem, size = 0x40000, scoped, tag = 'output window, operand 0, single buffered']
    #allocation3 [shape = 's32[1]{0}', space=sflag, size = 0x4, scoped, tag = 'scoped memory for tpu_custom_call.1']
    %14 = vsyncpa [#allocation3], 0
    // Predicated region
    $region2: #{tpu_custom_call.1} parent=1 // pred_check
      _
    $region3: #{tpu_custom_call.1} parent=1 // pred_check_branch
      %16 = sbr.rel (0) target = $region5
    $region4: #{tpu_custom_call.1} parent=1 // pred_region
      _
    $region5: #{tpu_custom_call.1} parent=1 // pred_fallthru
      _
    // Predicated region
    $region6: #{tpu_custom_call.1} parent=1 // pred_check
      _
    $region7: #{tpu_custom_call.1} parent=1 // pred_check_branch
      %18 = sbr.rel (0) target = $region9
    $region8: #{tpu_custom_call.1} parent=1 // pred_region
      _
    $region9: #{tpu_custom_call.1} parent=1 // pred_fallthru
      _
    // Predicated region
    $region10: #{tpu_custom_call.1} parent=1 // pred_check
      _
    $region11: #{tpu_custom_call.1} parent=1 // pred_check_branch
      %20 = sbr.rel (0) target = $region13
    $region12: #{tpu_custom_call.1} parent=1 // pred_region
      _
    $region13: #{tpu_custom_call.1} parent=1 // pred_fallthru
      _
    // Predicated region
    $region14: #{tpu_custom_call.1} parent=1 // pred_check
      _
    $region15: #{tpu_custom_call.1} parent=1 // pred_check_branch
      %22 = sbr.rel (0) target = $region17
    $region16: #{tpu_custom_call.1} parent=1 // pred_region
      _
    $region17: #{tpu_custom_call.1} parent=1 // pred_fallthru
      _
    // Predicated region
    $region18: #{tpu_custom_call.1} parent=1 // pred_check
      _
    $region19: #{tpu_custom_call.1} parent=1 // pred_check_branch
      %24 = sbr.rel (0) target = $region21
    $region20: #{tpu_custom_call.1} parent=1 // pred_region
      _
    $region21: #{tpu_custom_call.1} parent=1 // pred_fallthru
      _
    // Predicated region
    $region22: #{tpu_custom_call.1} parent=1 // pred_check
      _
    $region23: #{tpu_custom_call.1} parent=1 // pred_check_branch
      %26 = sbr.rel (0) target = $region25
    $region24: #{tpu_custom_call.1} parent=1 // pred_region
      _
    $region25: #{tpu_custom_call.1} parent=1 // pred_fallthru
      _
    // Predicated region
    $region26: #{tpu_custom_call.1} parent=1 // pred_check
      _
    $region27: #{tpu_custom_call.1} parent=1 // pred_check_branch
      %28 = sbr.rel (0) target = $region29
    $region28: #{tpu_custom_call.1} parent=1 // pred_region
      _
    $region29: #{tpu_custom_call.1} parent=1 // pred_fallthru
      _
    // Predicated region
    $region30: #{tpu_custom_call.1} parent=1 // pred_check
      _
    $region31: #{tpu_custom_call.1} parent=1 // pred_check_branch
      %30 = sbr.rel (0) target = $region33
    $region32: #{tpu_custom_call.1} parent=1 // pred_region
      _
    $region33: #{tpu_custom_call.1} parent=1 // pred_fallthru
      _
    // Predicated region
    $region34: #{tpu_custom_call.1} parent=1 // pred_check
      _
    $region35: #{tpu_custom_call.1} parent=1 // pred_check_branch
      %32 = sbr.rel (0) target = $region37
    $region36: #{tpu_custom_call.1} parent=1 // pred_region
      _
    $region37: #{tpu_custom_call.1} parent=1 // pred_fallthru
      _
    %v35 = vld [vmem:[%s0] sm:$0xff]
    %v36 = vld [vmem:[%s0 + $0x8] sm:$0xff]
    %v37 = vld [vmem:[%s0 + $0x10] sm:$0xff]
    %v38 = vld [vmem:[%s0 + $0x18] sm:$0xff]
    %v39 = vld [vmem:[%s0 + $0x20] sm:$0xff]
    %v40 = vld [vmem:[%s0 + $0x28] sm:$0xff]
    %v41 = vld [vmem:[%s0 + $0x30] sm:$0xff]
    %v42 = vld [vmem:[%s0 + $0x38] sm:$0xff]
    %v43 = vld [vmem:[%s0 + $0x40] sm:$0xff]
    %v44 = vld [vmem:[%s0 + $0x48] sm:$0xff]
    %v45 = vld [vmem:[%s0 + $0x50] sm:$0xff]
    %v46 = vld [vmem:[%s0 + $0x58] sm:$0xff]
    %v47 = vld [vmem:[%s0 + $0x60] sm:$0xff]
    %v48 = vld [vmem:[%s0 + $0x68] sm:$0xff]
    %v49 = vld [vmem:[%s0 + $0x70] sm:$0xff]
    %v50 = vld [vmem:[%s0 + $0x78] sm:$0xff]
    %v51 = vld [vmem:[%s0 + $0x80] sm:$0xff]
    %v52 = vld [vmem:[%s0 + $0x88] sm:$0xff]
    %v53 = vld [vmem:[%s0 + $0x90] sm:$0xff]
    %v54 = vld [vmem:[%s0 + $0x98] sm:$0xff]
    %v55 = vld [vmem:[%s0 + $0xa0] sm:$0xff]
    %v56 = vld [vmem:[%s0 + $0xa8] sm:$0xff]
    %v57 = vld [vmem:[%s0 + $0xb0] sm:$0xff]
    %v58 = vld [vmem:[%s0 + $0xb8] sm:$0xff]
    %v59 = vld [vmem:[%s0 + $0xc0] sm:$0xff]
    %v60 = vld [vmem:[%s0 + $0xc8] sm:$0xff]
    %v61 = vld [vmem:[%s0 + $0xd0] sm:$0xff]
    %v62 = vld [vmem:[%s0 + $0xd8] sm:$0xff]
    %v63 = vld [vmem:[%s0 + $0xe0] sm:$0xff]
    %v64 = vld [vmem:[%s0 + $0xe8] sm:$0xff]
    %v65 = vld [vmem:[%s0 + $0xf0] sm:$0xff]
    %v66 = vld [vmem:[%s0 + $0xf8] sm:$0xff]
    %v67 = vld [vmem:[%s0 + $0x100] sm:$0xff]
    %v68 = vld [vmem:[%s0 + $0x108] sm:$0xff]
    %v69 = vld [vmem:[%s0 + $0x110] sm:$0xff]
    %v70 = vld [vmem:[%s0 + $0x118] sm:$0xff]
    %v71 = vld [vmem:[%s0 + $0x120] sm:$0xff]
    %v72 = vld [vmem:[%s0 + $0x128] sm:$0xff]
    %v73 = vld [vmem:[%s0 + $0x130] sm:$0xff]
    %v74 = vld [vmem:[%s0 + $0x138] sm:$0xff]
    %v75 = vld [vmem:[%s0 + $0x140] sm:$0xff]
    %v76 = vld [vmem:[%s0 + $0x148] sm:$0xff]
    %v77 = vld [vmem:[%s0 + $0x150] sm:$0xff]
    %v78 = vld [vmem:[%s0 + $0x158] sm:$0xff]
    %v79 = vld [vmem:[%s0 + $0x160] sm:$0xff]
    %v80 = vld [vmem:[%s0 + $0x168] sm:$0xff]
    %v81 = vld [vmem:[%s0 + $0x170] sm:$0xff]
    %v82 = vld [vmem:[%s0 + $0x178] sm:$0xff]
    %v83 = vld [vmem:[%s0 + $0x180] sm:$0xff]
    %v84 = vld [vmem:[%s0 + $0x188] sm:$0xff]
    %v85 = vld [vmem:[%s0 + $0x190] sm:$0xff]
    %v86 = vld [vmem:[%s0 + $0x198] sm:$0xff]
    %v87 = vld [vmem:[%s0 + $0x1a0] sm:$0xff]
    %v88 = vld [vmem:[%s0 + $0x1a8] sm:$0xff]
    %v89 = vld [vmem:[%s0 + $0x1b0] sm:$0xff]
    %v90 = vld [vmem:[%s0 + $0x1b8] sm:$0xff]
    %v91 = vld [vmem:[%s0 + $0x1c0] sm:$0xff]
    %v92 = vld [vmem:[%s0 + $0x1c8] sm:$0xff]
    %v93 = vld [vmem:[%s0 + $0x1d0] sm:$0xff]
    %v94 = vld [vmem:[%s0 + $0x1d8] sm:$0xff]
    %v95 = vld [vmem:[%s0 + $0x1e0] sm:$0xff]
    %v96 = vld [vmem:[%s0 + $0x1e8] sm:$0xff]
    %v97 = vld [vmem:[%s0 + $0x1f0] sm:$0xff]
    %v98 = vld [vmem:[%s0 + $0x1f8] sm:$0xff]
    %v99 = vld [vmem:[%s0 + $0x200] sm:$0xff]
    %v100 = vld [vmem:[%s0 + $0x208] sm:$0xff]
    %v101 = vld [vmem:[%s0 + $0x210] sm:$0xff]
    %v102 = vld [vmem:[%s0 + $0x218] sm:$0xff]
    %v103 = vld [vmem:[%s0 + $0x220] sm:$0xff]
    %v104 = vld [vmem:[%s0 + $0x228] sm:$0xff]
    %v105 = vld [vmem:[%s0 + $0x230] sm:$0xff]
    %v106 = vld [vmem:[%s0 + $0x238] sm:$0xff]
    %v107 = vld [vmem:[%s0 + $0x240] sm:$0xff]
    %v108 = vld [vmem:[%s0 + $0x248] sm:$0xff]
    %v109 = vld [vmem:[%s0 + $0x250] sm:$0xff]
    %v110 = vld [vmem:[%s0 + $0x258] sm:$0xff]
    %v111 = vld [vmem:[%s0 + $0x260] sm:$0xff]
    %v112 = vld [vmem:[%s0 + $0x268] sm:$0xff]
    %v113 = vld [vmem:[%s0 + $0x270] sm:$0xff]
    %v114 = vld [vmem:[%s0 + $0x278] sm:$0xff]
    %v115 = vld [vmem:[%s0 + $0x280] sm:$0xff]
    %v116 = vld [vmem:[%s0 + $0x288] sm:$0xff]
    %v117 = vld [vmem:[%s0 + $0x290] sm:$0xff]
    %v118 = vld [vmem:[%s0 + $0x298] sm:$0xff]
    %v119 = vld [vmem:[%s0 + $0x2a0] sm:$0xff]
    %v120 = vld [vmem:[%s0 + $0x2a8] sm:$0xff]
    %v121 = vld [vmem:[%s0 + $0x2b0] sm:$0xff]
    %v122 = vld [vmem:[%s0 + $0x2b8] sm:$0xff]
    %v123 = vld [vmem:[%s0 + $0x2c0] sm:$0xff]
    %v124 = vld [vmem:[%s0 + $0x2c8] sm:$0xff]
    %v125 = vld [vmem:[%s0 + $0x2d0] sm:$0xff]
    %v126 = vld [vmem:[%s0 + $0x2d8] sm:$0xff]
    %v127 = vld [vmem:[%s0 + $0x2e0] sm:$0xff]
    %v128 = vld [vmem:[%s0 + $0x2e8] sm:$0xff]
    %v129 = vld [vmem:[%s0 + $0x2f0] sm:$0xff]
    %v130 = vld [vmem:[%s0 + $0x2f8] sm:$0xff]
    %v131 = vld [vmem:[%s0 + $0x300] sm:$0xff]
    %v132 = vld [vmem:[%s0 + $0x308] sm:$0xff]
    %v133 = vld [vmem:[%s0 + $0x310] sm:$0xff]
    %v134 = vld [vmem:[%s0 + $0x318] sm:$0xff]
    %v135 = vld [vmem:[%s0 + $0x320] sm:$0xff]
    %v136 = vld [vmem:[%s0 + $0x328] sm:$0xff]
    %v137 = vld [vmem:[%s0 + $0x330] sm:$0xff]
    %v138 = vld [vmem:[%s0 + $0x338] sm:$0xff]
    %v139 = vld [vmem:[%s0 + $0x340] sm:$0xff]
    %v140 = vld [vmem:[%s0 + $0x348] sm:$0xff]
    %v141 = vld [vmem:[%s0 + $0x350] sm:$0xff]
    %v142 = vld [vmem:[%s0 + $0x358] sm:$0xff]
    %v143 = vld [vmem:[%s0 + $0x360] sm:$0xff]
    %v144 = vld [vmem:[%s0 + $0x368] sm:$0xff]
    %v145 = vld [vmem:[%s0 + $0x370] sm:$0xff]
    %v146 = vld [vmem:[%s0 + $0x378] sm:$0xff]
    %v147 = vld [vmem:[%s0 + $0x380] sm:$0xff]
    %v148 = vld [vmem:[%s0 + $0x388] sm:$0xff]
    %v149 = vld [vmem:[%s0 + $0x390] sm:$0xff]
    %v150 = vld [vmem:[%s0 + $0x398] sm:$0xff]
    %v151 = vld [vmem:[%s0 + $0x3a0] sm:$0xff]
    %v152 = vld [vmem:[%s0 + $0x3a8] sm:$0xff]
    %v153 = vld [vmem:[%s0 + $0x3b0] sm:$0xff]
    %v154 = vld [vmem:[%s0 + $0x3b8] sm:$0xff]
    %v155 = vld [vmem:[%s0 + $0x3c0] sm:$0xff]
    %v156 = vld [vmem:[%s0 + $0x3c8] sm:$0xff]
    %v157 = vld [vmem:[%s0 + $0x3d0] sm:$0xff]
    %v158 = vld [vmem:[%s0 + $0x3d8] sm:$0xff]
    %v159 = vld [vmem:[%s0 + $0x3e0] sm:$0xff]
    %v160 = vld [vmem:[%s0 + $0x3e8] sm:$0xff]
    %v161 = vld [vmem:[%s0 + $0x3f0] sm:$0xff]
    %v162 = vld [vmem:[%s0 + $0x3f8] sm:$0xff]
    %v163 = vpack.c.bf16 %v36, %v35
    %v164 = vpack.c.bf16 %v38, %v37
    %v165 = vpack.c.bf16 %v40, %v39
    %v166 = vpack.c.bf16 %v42, %v41
    %v167 = vpack.c.bf16 %v44, %v43
    %v168 = vpack.c.bf16 %v46, %v45
    %v169 = vpack.c.bf16 %v48, %v47
    %v170 = vpack.c.bf16 %v50, %v49
    %v171 = vpack.c.bf16 %v52, %v51
    %v172 = vpack.c.bf16 %v54, %v53
    %v173 = vpack.c.bf16 %v56, %v55
    %v174 = vpack.c.bf16 %v58, %v57
    %v175 = vpack.c.bf16 %v60, %v59
    %v176 = vpack.c.bf16 %v62, %v61
    %v177 = vpack.c.bf16 %v64, %v63
    %v178 = vpack.c.bf16 %v66, %v65
    %v179 = vpack.c.bf16 %v68, %v67
    %v180 = vpack.c.bf16 %v70, %v69
    %v181 = vpack.c.bf16 %v72, %v71
    %v182 = vpack.c.bf16 %v74, %v73
    %v183 = vpack.c.bf16 %v76, %v75
    %v184 = vpack.c.bf16 %v78, %v77
    %v185 = vpack.c.bf16 %v80, %v79
    %v186 = vpack.c.bf16 %v82, %v81
    %v187 = vpack.c.bf16 %v84, %v83
    %v188 = vpack.c.bf16 %v86, %v85
    %v189 = vpack.c.bf16 %v88, %v87
    %v190 = vpack.c.bf16 %v90, %v89
    %v191 = vpack.c.bf16 %v92, %v91
    %v192 = vpack.c.bf16 %v94, %v93
    %v193 = vpack.c.bf16 %v96, %v95
    %v194 = vpack.c.bf16 %v98, %v97
    %v195 = vpack.c.bf16 %v100, %v99
    %v196 = vpack.c.bf16 %v102, %v101
    %v197 = vpack.c.bf16 %v104, %v103
    %v198 = vpack.c.bf16 %v106, %v105
    %v199 = vpack.c.bf16 %v108, %v107
    %v200 = vpack.c.bf16 %v110, %v109
    %v201 = vpack.c.bf16 %v112, %v111
    %v202 = vpack.c.bf16 %v114, %v113
    %v203 = vpack.c.bf16 %v116, %v115
    %v204 = vpack.c.bf16 %v118, %v117
    %v205 = vpack.c.bf16 %v120, %v119
    %v206 = vpack.c.bf16 %v122, %v121
    %v207 = vpack.c.bf16 %v124, %v123
    %v208 = vpack.c.bf16 %v126, %v125
    %v209 = vpack.c.bf16 %v128, %v127
    %v210 = vpack.c.bf16 %v130, %v129
    %v211 = vpack.c.bf16 %v132, %v131
    %v212 = vpack.c.bf16 %v134, %v133
    %v213 = vpack.c.bf16 %v136, %v135
    %v214 = vpack.c.bf16 %v138, %v137
    %v215 = vpack.c.bf16 %v140, %v139
    %v216 = vpack.c.bf16 %v142, %v141
    %v217 = vpack.c.bf16 %v144, %v143
    %v218 = vpack.c.bf16 %v146, %v145
    %v219 = vpack.c.bf16 %v148, %v147
    %v220 = vpack.c.bf16 %v150, %v149
    %v221 = vpack.c.bf16 %v152, %v151
    %v222 = vpack.c.bf16 %v154, %v153
    %v223 = vpack.c.bf16 %v156, %v155
    %v224 = vpack.c.bf16 %v158, %v157
    %v225 = vpack.c.bf16 %v160, %v159
    %v226 = vpack.c.bf16 %v162, %v161
    %v227 = vld [vmem:[%s1] sm:$0xff]
    %v228 = vld [vmem:[%s1 + $0x8] sm:$0xff]
    %v229 = vld [vmem:[%s1 + $0x10] sm:$0xff]
    %v230 = vld [vmem:[%s2] sm:$0x3]
    %v232 = vlaneseq
    %v233 = vshrl.u32 %v232, 7
    %v234 = vsub.s32 0, %v233
    %v235 = vrot.slane %v230, %v234
    %v236 = vlaneseq
    %v237 = vshrl.u32 %v236, 7
    %v238 = vsub.s32 1, %v237
    %v239 = vrot.slane %v230, %v238
    %v245 = vunpack.c.l.b16 %v227
    %v246 = vunpack.c.h.b16 %v227
    %v247 = vunpack.c.l.b16 %v228
    %v248 = vunpack.c.h.b16 %v228
    %v249 = vunpack.c.l.b16 %v229
    %v250 = vunpack.c.h.b16 %v229
    %v251 = vpack.c.b16 %v247, %v245
    %v252 = vpack.c.b16 %v248, %v246
    %v253 = vpack.c.b16 %v249, %v249
    %v254 = vpack.c.b16 %v250, %v250
    %vm257 = vcmask 195584
    %v259 = vsel %vm257, %v163, 0
    %v262 = vsel %vm257, %v164, 0
    %v265 = vsel %vm257, %v165, 0
    %v268 = vsel %vm257, %v166, 0
    %v271 = vsel %vm257, %v167, 0
    %v274 = vsel %vm257, %v168, 0
    %v277 = vsel %vm257, %v169, 0
    %v280 = vsel %vm257, %v170, 0
    %v283 = vsel %vm257, %v171, 0
    %v286 = vsel %vm257, %v172, 0
    %v289 = vsel %vm257, %v173, 0
    %v292 = vsel %vm257, %v174, 0
    %v295 = vsel %vm257, %v175, 0
    %v298 = vsel %vm257, %v176, 0
    %v301 = vsel %vm257, %v177, 0
    %v304 = vsel %vm257, %v178, 0
    %v307 = vsel %vm257, %v179, 0
    %v310 = vsel %vm257, %v180, 0
    %v313 = vsel %vm257, %v181, 0
    %v316 = vsel %vm257, %v182, 0
    %v319 = vsel %vm257, %v183, 0
    %v322 = vsel %vm257, %v184, 0
    %v325 = vsel %vm257, %v185, 0
    %v328 = vsel %vm257, %v186, 0
    %v331 = vsel %vm257, %v187, 0
    %v334 = vsel %vm257, %v188, 0
    %v337 = vsel %vm257, %v189, 0
    %v340 = vsel %vm257, %v190, 0
    %v343 = vsel %vm257, %v191, 0
    %v346 = vsel %vm257, %v192, 0
    %v349 = vsel %vm257, %v193, 0
    %v352 = vsel %vm257, %v194, 0
    %v355 = vsel %vm257, %v195, 0
    %v358 = vsel %vm257, %v196, 0
    %v361 = vsel %vm257, %v197, 0
    %v364 = vsel %vm257, %v198, 0
    %v367 = vsel %vm257, %v199, 0
    %v370 = vsel %vm257, %v200, 0
    %v373 = vsel %vm257, %v201, 0
    %v376 = vsel %vm257, %v202, 0
    %v379 = vsel %vm257, %v203, 0
    %v382 = vsel %vm257, %v204, 0
    %v385 = vsel %vm257, %v205, 0
    %v388 = vsel %vm257, %v206, 0
    %v391 = vsel %vm257, %v207, 0
    %v394 = vsel %vm257, %v208, 0
    %v397 = vsel %vm257, %v209, 0
    %v400 = vsel %vm257, %v210, 0
    %v403 = vsel %vm257, %v211, 0
    %v406 = vsel %vm257, %v212, 0
    %v409 = vsel %vm257, %v213, 0
    %v412 = vsel %vm257, %v214, 0
    %v415 = vsel %vm257, %v215, 0
    %v418 = vsel %vm257, %v216, 0
    %v421 = vsel %vm257, %v217, 0
    %v424 = vsel %vm257, %v218, 0
    %v427 = vsel %vm257, %v219, 0
    %v430 = vsel %vm257, %v220, 0
    %v433 = vsel %vm257, %v221, 0
    %v436 = vsel %vm257, %v222, 0
    %v439 = vsel %vm257, %v223, 0
    %v442 = vsel %vm257, %v224, 0
    %v445 = vsel %vm257, %v225, 0
    %v448 = vsel %vm257, %v226, 0
    %vm450 = vcmask 1043456
    %v452 = vsel %vm450, %v253, 0
    %v455 = vsel %vm450, %v254, 0
    %457 = vmatprep.subr.bf16.mxu0 %v252
    %458 = vmatpush1.bf16.msra.mxu0 %v251
    %459 = vmatprep.subr.bf16.mxu0 %v455
    %460 = vmatpush1.bf16.msra.mxu0 %v452
    %461 = vmatprep.subr.bf16.mxu0 0
    %462 = vmatpush1.bf16.msra.mxu0 0
    %463 = vmatprep.subr.bf16.mxu0 0
    %464 = vmatpush1.bf16.msra.mxu0 0
    %465 = vmatprep.subr.bf16.mxu0 0
    %466 = vmatpush1.bf16.msra.mxu0 0
    %467 = vmatprep.subr.bf16.mxu0 0
    %468 = vmatpush1.bf16.msra.mxu0 0
    %469 = vmatprep.subr.bf16.mxu0 0
    %470 = vmatpush1.bf16.msra.mxu0 0
    %471 = vmatprep.subr.bf16.mxu0 0
    %472 = vmatpush1.bf16.msra.mxu0 0
    %473 = vmatprep.subr.bf16.mxu0 0
    %474 = vmatpush1.bf16.msra.mxu0 0
    %475 = vmatprep.subr.bf16.mxu0 0
    %476 = vmatpush1.bf16.msra.mxu0 0
    %477 = vmatprep.subr.bf16.mxu0 0
    %478 = vmatpush1.bf16.msra.mxu0 0
    %479 = vmatprep.subr.bf16.mxu0 0
    %480 = vmatpush1.bf16.msra.mxu0 0
    %481 = vmatprep.subr.bf16.mxu0 0
    %482 = vmatpush1.bf16.msra.mxu0 0
    %483 = vmatprep.subr.bf16.mxu0 0
    %484 = vmatpush1.bf16.msra.mxu0 0
    %485 = vmatprep.subr.bf16.mxu0 0
    %486 = vmatpush1.bf16.msra.mxu0 0
    %487 = vmatprep.subr.bf16.mxu0 0
    %488 = vmatpush1.bf16.msra.mxu0 0
    %489 = vmatprep.mubr.bf16.mxu0 0
    %490 = vmatmul.mubr.bf16.gmra.mrb[0].mxu0 %v259
    %v491 = vpop.f32.mrb[0].mxu0
    %v492 = vadd.f32 %v235, %v491
    %v493 = vpop.f32.mrb[0].mxu0
    %v494 = vadd.f32 %v239, %v493
    %v495 = vpop.f32.mrb[0].mxu0
    %v496 = vadd.f32 %v235, %v495
    %v497 = vpop.f32.mrb[0].mxu0
    %v498 = vadd.f32 %v239, %v497
    %499 = vmatprep.mubr.bf16.mxu0 0
    %500 = vmatmul.mubr.bf16.gmra.mrb[0].mxu0 %v262
    %v501 = vpop.f32.mrb[0].mxu0
    %v502 = vadd.f32 %v235, %v501
    %v503 = vpop.f32.mrb[0].mxu0
    %v504 = vadd.f32 %v239, %v503
    %v505 = vpop.f32.mrb[0].mxu0
    %v506 = vadd.f32 %v235, %v505
    %v507 = vpop.f32.mrb[0].mxu0
    %v508 = vadd.f32 %v239, %v507
    %509 = vmatprep.mubr.bf16.mxu0 0
    %510 = vmatmul.mubr.bf16.gmra.mrb[0].mxu0 %v265
    %v511 = vpop.f32.mrb[0].mxu0
    %v512 = vadd.f32 %v235, %v511
    %v513 = vpop.f32.mrb[0].mxu0
    %v514 = vadd.f32 %v239, %v513
    %v515 = vpop.f32.mrb[0].mxu0
    %v516 = vadd.f32 %v235, %v515
    %v517 = vpop.f32.mrb[0].mxu0
    %v518 = vadd.f32 %v239, %v517
    %519 = vmatprep.mubr.bf16.mxu0 0
    %520 = vmatmul.mubr.bf16.gmra.mrb[0].mxu0 %v268
    %v521 = vpop.f32.mrb[0].mxu0
    %v522 = vadd.f32 %v235, %v521
    %v523 = vpop.f32.mrb[0].mxu0
    %v524 = vadd.f32 %v239, %v523
    %v525 = vpop.f32.mrb[0].mxu0
    %v526 = vadd.f32 %v235, %v525
    %v527 = vpop.f32.mrb[0].mxu0
    %v528 = vadd.f32 %v239, %v527
    %529 = vmatprep.mubr.bf16.mxu0 0
    %530 = vmatmul.mubr.bf16.gmra.mrb[0].mxu0 %v271
    %v531 = vpop.f32.mrb[0].mxu0
    %v532 = vadd.f32 %v235, %v531
    %v533 = vpop.f32.mrb[0].mxu0
    %v534 = vadd.f32 %v239, %v533
    %v535 = vpop.f32.mrb[0].mxu0
    %v536 = vadd.f32 %v235, %v535
    %v537 = vpop.f32.mrb[0].mxu0
    %v538 = vadd.f32 %v239, %v537
    %539 = vmatprep.mubr.bf16.mxu0 0
    %540 = vmatmul.mubr.bf16.gmra.mrb[0].mxu0 %v274
    %v541 = vpop.f32.mrb[0].mxu0
    %v542 = vadd.f32 %v235, %v541
    %v543 = vpop.f32.mrb[0].mxu0
    %v544 = vadd.f32 %v239, %v543
    %v545 = vpop.f32.mrb[0].mxu0
    %v546 = vadd.f32 %v235, %v545
    %v547 = vpop.f32.mrb[0].mxu0
    %v548 = vadd.f32 %v239, %v547
    %549 = vmatprep.mubr.bf16.mxu0 0
    %550 = vmatmul.mubr.bf16.gmra.mrb[0].mxu0 %v277
    %v551 = vpop.f32.mrb[0].mxu0
    %v552 = vadd.f32 %v235, %v551
    %v553 = vpop.f32.mrb[0].mxu0
    %v554 = vadd.f32 %v239, %v553
    %v555 = vpop.f32.mrb[0].mxu0
    %v556 = vadd.f32 %v235, %v555
    %v557 = vpop.f32.mrb[0].mxu0
    %v558 = vadd.f32 %v239, %v557
    %559 = vmatprep.mubr.bf16.mxu0 0
    %560 = vmatmul.mubr.bf16.gmra.mrb[0].mxu0 %v280
    %v561 = vpop.f32.mrb[0].mxu0
    %v562 = vadd.f32 %v235, %v561
    %v563 = vpop.f32.mrb[0].mxu0
    %v564 = vadd.f32 %v239, %v563
    %v565 = vpop.f32.mrb[0].mxu0
    %v566 = vadd.f32 %v235, %v565
    %v567 = vpop.f32.mrb[0].mxu0
    %v568 = vadd.f32 %v239, %v567
    %569 = vmatprep.mubr.bf16.mxu0 0
    %570 = vmatmul.mubr.bf16.gmra.mrb[0].mxu0 %v283
    %v571 = vpop.f32.mrb[0].mxu0
    %v572 = vadd.f32 %v235, %v571
    %v573 = vpop.f32.mrb[0].mxu0
    %v574 = vadd.f32 %v239, %v573
    %v575 = vpop.f32.mrb[0].mxu0
    %v576 = vadd.f32 %v235, %v575
    %v577 = vpop.f32.mrb[0].mxu0
    %v578 = vadd.f32 %v239, %v577
    %579 = vmatprep.mubr.bf16.mxu0 0
    %580 = vmatmul.mubr.bf16.gmra.mrb[0].mxu0 %v286
    %v581 = vpop.f32.mrb[0].mxu0
    %v582 = vadd.f32 %v235, %v581
    %v583 = vpop.f32.mrb[0].mxu0
    %v584 = vadd.f32 %v239, %v583
    %v585 = vpop.f32.mrb[0].mxu0
    %v586 = vadd.f32 %v235, %v585
    %v587 = vpop.f32.mrb[0].mxu0
    %v588 = vadd.f32 %v239, %v587
    %589 = vmatprep.mubr.bf16.mxu0 0
    %590 = vmatmul.mubr.bf16.gmra.mrb[0].mxu0 %v289
    %v591 = vpop.f32.mrb[0].mxu0
    %v592 = vadd.f32 %v235, %v591
    %v593 = vpop.f32.mrb[0].mxu0
    %v594 = vadd.f32 %v239, %v593
    %v595 = vpop.f32.mrb[0].mxu0
    %v596 = vadd.f32 %v235, %v595
    %v597 = vpop.f32.mrb[0].mxu0
    %v598 = vadd.f32 %v239, %v597
    %599 = vmatprep.mubr.bf16.mxu0 0
    %600 = vmatmul.mubr.bf16.gmra.mrb[0].mxu0 %v292
    %v601 = vpop.f32.mrb[0].mxu0
    %v602 = vadd.f32 %v235, %v601
    %v603 = vpop.f32.mrb[0].mxu0
    %v604 = vadd.f32 %v239, %v603
    %v605 = vpop.f32.mrb[0].mxu0
    %v606 = vadd.f32 %v235, %v605
    %v607 = vpop.f32.mrb[0].mxu0
    %v608 = vadd.f32 %v239, %v607
    %609 = vmatprep.mubr.bf16.mxu0 0
    %610 = vmatmul.mubr.bf16.gmra.mrb[0].mxu0 %v295
    %v611 = vpop.f32.mrb[0].mxu0
    %v612 = vadd.f32 %v235, %v611
    %v613 = vpop.f32.mrb[0].mxu0
    %v614 = vadd.f32 %v239, %v613
    %v615 = vpop.f32.mrb[0].mxu0
    %v616 = vadd.f32 %v235, %v615
    %v617 = vpop.f32.mrb[0].mxu0
    %v618 = vadd.f32 %v239, %v617
    %619 = vmatprep.mubr.bf16.mxu0 0
    %620 = vmatmul.mubr.bf16.gmra.mrb[0].mxu0 %v298
    %v621 = vpop.f32.mrb[0].mxu0
    %v622 = vadd.f32 %v235, %v621
    %v623 = vpop.f32.mrb[0].mxu0
    %v624 = vadd.f32 %v239, %v623
    %v625 = vpop.f32.mrb[0].mxu0
    %v626 = vadd.f32 %v235, %v625
    %v627 = vpop.f32.mrb[0].mxu0
    %v628 = vadd.f32 %v239, %v627
    %629 = vmatprep.mubr.bf16.mxu0 0
    %630 = vmatmul.mubr.bf16.gmra.mrb[0].mxu0 %v301
    %v631 = vpop.f32.mrb[0].mxu0
    %v632 = vadd.f32 %v235, %v631
    %v633 = vpop.f32.mrb[0].mxu0
    %v634 = vadd.f32 %v239, %v633
    %v635 = vpop.f32.mrb[0].mxu0
    %v636 = vadd.f32 %v235, %v635
    %v637 = vpop.f32.mrb[0].mxu0
    %v638 = vadd.f32 %v239, %v637
    %639 = vmatprep.mubr.bf16.mxu0 0
    %640 = vmatmul.mubr.bf16.gmra.mrb[0].mxu0 %v304
    %v641 = vpop.f32.mrb[0].mxu0
    %v642 = vadd.f32 %v235, %v641
    %v643 = vpop.f32.mrb[0].mxu0
    %v644 = vadd.f32 %v239, %v643
    %v645 = vpop.f32.mrb[0].mxu0
    %v646 = vadd.f32 %v235, %v645
    %v647 = vpop.f32.mrb[0].mxu0
    %v648 = vadd.f32 %v239, %v647
    %649 = vmatprep.mubr.bf16.mxu0 0
    %650 = vmatmul.mubr.bf16.gmra.mrb[0].mxu0 %v307
    %v651 = vpop.f32.mrb[0].mxu0
    %v652 = vadd.f32 %v235, %v651
    %v653 = vpop.f32.mrb[0].mxu0
    %v654 = vadd.f32 %v239, %v653
    %v655 = vpop.f32.mrb[0].mxu0
    %v656 = vadd.f32 %v235, %v655
    %v657 = vpop.f32.mrb[0].mxu0
    %v658 = vadd.f32 %v239, %v657
    %659 = vmatprep.mubr.bf16.mxu0 0
    %660 = vmatmul.mubr.bf16.gmra.mrb[0].mxu0 %v310
    %v661 = vpop.f32.mrb[0].mxu0
    %v662 = vadd.f32 %v235, %v661
    %v663 = vpop.f32.mrb[0].mxu0
    %v664 = vadd.f32 %v239, %v663
    %v665 = vpop.f32.mrb[0].mxu0
    %v666 = vadd.f32 %v235, %v665
    %v667 = vpop.f32.mrb[0].mxu0
    %v668 = vadd.f32 %v239, %v667
    %669 = vmatprep.mubr.bf16.mxu0 0
    %670 = vmatmul.mubr.bf16.gmra.mrb[0].mxu0 %v313
    %v671 = vpop.f32.mrb[0].mxu0
    %v672 = vadd.f32 %v235, %v671
    %v673 = vpop.f32.mrb[0].mxu0
    %v674 = vadd.f32 %v239, %v673
    %v675 = vpop.f32.mrb[0].mxu0
    %v676 = vadd.f32 %v235, %v675
    %v677 = vpop.f32.mrb[0].mxu0
    %v678 = vadd.f32 %v239, %v677
    %679 = vmatprep.mubr.bf16.mxu0 0
    %680 = vmatmul.mubr.bf16.gmra.mrb[0].mxu0 %v316
    %v681 = vpop.f32.mrb[0].mxu0
    %v682 = vadd.f32 %v235, %v681
    %v683 = vpop.f32.mrb[0].mxu0
    %v684 = vadd.f32 %v239, %v683
    %v685 = vpop.f32.mrb[0].mxu0
    %v686 = vadd.f32 %v235, %v685
    %v687 = vpop.f32.mrb[0].mxu0
    %v688 = vadd.f32 %v239, %v687
    %689 = vmatprep.mubr.bf16.mxu0 0
    %690 = vmatmul.mubr.bf16.gmra.mrb[0].mxu0 %v319
    %v691 = vpop.f32.mrb[0].mxu0
    %v692 = vadd.f32 %v235, %v691
    %v693 = vpop.f32.mrb[0].mxu0
    %v694 = vadd.f32 %v239, %v693
    %v695 = vpop.f32.mrb[0].mxu0
    %v696 = vadd.f32 %v235, %v695
    %v697 = vpop.f32.mrb[0].mxu0
    %v698 = vadd.f32 %v239, %v697
    %699 = vmatprep.mubr.bf16.mxu0 0
    %700 = vmatmul.mubr.bf16.gmra.mrb[0].mxu0 %v322
    %v701 = vpop.f32.mrb[0].mxu0
    %v702 = vadd.f32 %v235, %v701
    %v703 = vpop.f32.mrb[0].mxu0
    %v704 = vadd.f32 %v239, %v703
    %v705 = vpop.f32.mrb[0].mxu0
    %v706 = vadd.f32 %v235, %v705
    %v707 = vpop.f32.mrb[0].mxu0
    %v708 = vadd.f32 %v239, %v707
    %709 = vmatprep.mubr.bf16.mxu0 0
    %710 = vmatmul.mubr.bf16.gmra.mrb[0].mxu0 %v325
    %v711 = vpop.f32.mrb[0].mxu0
    %v712 = vadd.f32 %v235, %v711
    %v713 = vpop.f32.mrb[0].mxu0
    %v714 = vadd.f32 %v239, %v713
    %v715 = vpop.f32.mrb[0].mxu0
    %v716 = vadd.f32 %v235, %v715
    %v717 = vpop.f32.mrb[0].mxu0
    %v718 = vadd.f32 %v239, %v717
    %719 = vmatprep.mubr.bf16.mxu0 0
    %720 = vmatmul.mubr.bf16.gmra.mrb[0].mxu0 %v328
    %v721 = vpop.f32.mrb[0].mxu0
    %v722 = vadd.f32 %v235, %v721
    %v723 = vpop.f32.mrb[0].mxu0
    %v724 = vadd.f32 %v239, %v723
    %v725 = vpop.f32.mrb[0].mxu0
    %v726 = vadd.f32 %v235, %v725
    %v727 = vpop.f32.mrb[0].mxu0
    %v728 = vadd.f32 %v239, %v727
    %729 = vmatprep.mubr.bf16.mxu0 0
    %730 = vmatmul.mubr.bf16.gmra.mrb[0].mxu0 %v331
    %v731 = vpop.f32.mrb[0].mxu0
    %v732 = vadd.f32 %v235, %v731
    %v733 = vpop.f32.mrb[0].mxu0
    %v734 = vadd.f32 %v239, %v733
    %v735 = vpop.f32.mrb[0].mxu0
    %v736 = vadd.f32 %v235, %v735
    %v737 = vpop.f32.mrb[0].mxu0
    %v738 = vadd.f32 %v239, %v737
    %739 = vmatprep.mubr.bf16.mxu0 0
    %740 = vmatmul.mubr.bf16.gmra.mrb[0].mxu0 %v334
    %v741 = vpop.f32.mrb[0].mxu0
    %v742 = vadd.f32 %v235, %v741
    %v743 = vpop.f32.mrb[0].mxu0
    %v744 = vadd.f32 %v239, %v743
    %v745 = vpop.f32.mrb[0].mxu0
    %v746 = vadd.f32 %v235, %v745
    %v747 = vpop.f32.mrb[0].mxu0
    %v748 = vadd.f32 %v239, %v747
    %749 = vmatprep.mubr.bf16.mxu0 0
    %750 = vmatmul.mubr.bf16.gmra.mrb[0].mxu0 %v337
    %v751 = vpop.f32.mrb[0].mxu0
    %v752 = vadd.f32 %v235, %v751
    %v753 = vpop.f32.mrb[0].mxu0
    %v754 = vadd.f32 %v239, %v753
    %v755 = vpop.f32.mrb[0].mxu0
    %v756 = vadd.f32 %v235, %v755
    %v757 = vpop.f32.mrb[0].mxu0
    %v758 = vadd.f32 %v239, %v757
    %759 = vmatprep.mubr.bf16.mxu0 0
    %760 = vmatmul.mubr.bf16.gmra.mrb[0].mxu0 %v340
    %v761 = vpop.f32.mrb[0].mxu0
    %v762 = vadd.f32 %v235, %v761
    %v763 = vpop.f32.mrb[0].mxu0
    %v764 = vadd.f32 %v239, %v763
    %v765 = vpop.f32.mrb[0].mxu0
    %v766 = vadd.f32 %v235, %v765
    %v767 = vpop.f32.mrb[0].mxu0
    %v768 = vadd.f32 %v239, %v767
    %769 = vmatprep.mubr.bf16.mxu0 0
    %770 = vmatmul.mubr.bf16.gmra.mrb[0].mxu0 %v343
    %v771 = vpop.f32.mrb[0].mxu0
    %v772 = vadd.f32 %v235, %v771
    %v773 = vpop.f32.mrb[0].mxu0
    %v774 = vadd.f32 %v239, %v773
    %v775 = vpop.f32.mrb[0].mxu0
    %v776 = vadd.f32 %v235, %v775
    %v777 = vpop.f32.mrb[0].mxu0
    %v778 = vadd.f32 %v239, %v777
    %779 = vmatprep.mubr.bf16.mxu0 0
    %780 = vmatmul.mubr.bf16.gmra.mrb[0].mxu0 %v346
    %v781 = vpop.f32.mrb[0].mxu0
    %v782 = vadd.f32 %v235, %v781
    %v783 = vpop.f32.mrb[0].mxu0
    %v784 = vadd.f32 %v239, %v783
    %v785 = vpop.f32.mrb[0].mxu0
    %v786 = vadd.f32 %v235, %v785
    %v787 = vpop.f32.mrb[0].mxu0
    %v788 = vadd.f32 %v239, %v787
    %789 = vmatprep.mubr.bf16.mxu0 0
    %790 = vmatmul.mubr.bf16.gmra.mrb[0].mxu0 %v349
    %v791 = vpop.f32.mrb[0].mxu0
    %v792 = vadd.f32 %v235, %v791
    %v793 = vpop.f32.mrb[0].mxu0
    %v794 = vadd.f32 %v239, %v793
    %v795 = vpop.f32.mrb[0].mxu0
    %v796 = vadd.f32 %v235, %v795
    %v797 = vpop.f32.mrb[0].mxu0
    %v798 = vadd.f32 %v239, %v797
    %799 = vmatprep.mubr.bf16.mxu0 0
    %800 = vmatmul.mubr.bf16.gmra.mrb[0].mxu0 %v352
    %v801 = vpop.f32.mrb[0].mxu0
    %v802 = vadd.f32 %v235, %v801
    %v803 = vpop.f32.mrb[0].mxu0
    %v804 = vadd.f32 %v239, %v803
    %v805 = vpop.f32.mrb[0].mxu0
    %v806 = vadd.f32 %v235, %v805
    %v807 = vpop.f32.mrb[0].mxu0
    %v808 = vadd.f32 %v239, %v807
    %809 = vmatprep.mubr.bf16.mxu0 0
    %810 = vmatmul.mubr.bf16.gmra.mrb[0].mxu0 %v355
    %v811 = vpop.f32.mrb[0].mxu0
    %v812 = vadd.f32 %v235, %v811
    %v813 = vpop.f32.mrb[0].mxu0
    %v814 = vadd.f32 %v239, %v813
    %v815 = vpop.f32.mrb[0].mxu0
    %v816 = vadd.f32 %v235, %v815
    %v817 = vpop.f32.mrb[0].mxu0
    %v818 = vadd.f32 %v239, %v817
    %819 = vmatprep.mubr.bf16.mxu0 0
    %820 = vmatmul.mubr.bf16.gmra.mrb[0].mxu0 %v358
    %v821 = vpop.f32.mrb[0].mxu0
    %v822 = vadd.f32 %v235, %v821
    %v823 = vpop.f32.mrb[0].mxu0
    %v824 = vadd.f32 %v239, %v823
    %v825 = vpop.f32.mrb[0].mxu0
    %v826 = vadd.f32 %v235, %v825
    %v827 = vpop.f32.mrb[0].mxu0
    %v828 = vadd.f32 %v239, %v827
    %829 = vmatprep.mubr.bf16.mxu0 0
    %830 = vmatmul.mubr.bf16.gmra.mrb[0].mxu0 %v361
    %v831 = vpop.f32.mrb[0].mxu0
    %v832 = vadd.f32 %v235, %v831
    %v833 = vpop.f32.mrb[0].mxu0
    %v834 = vadd.f32 %v239, %v833
    %v835 = vpop.f32.mrb[0].mxu0
    %v836 = vadd.f32 %v235, %v835
    %v837 = vpop.f32.mrb[0].mxu0
    %v838 = vadd.f32 %v239, %v837
    %839 = vmatprep.mubr.bf16.mxu0 0
    %840 = vmatmul.mubr.bf16.gmra.mrb[0].mxu0 %v364
    %v841 = vpop.f32.mrb[0].mxu0
    %v842 = vadd.f32 %v235, %v841
    %v843 = vpop.f32.mrb[0].mxu0
    %v844 = vadd.f32 %v239, %v843
    %v845 = vpop.f32.mrb[0].mxu0
    %v846 = vadd.f32 %v235, %v845
    %v847 = vpop.f32.mrb[0].mxu0
    %v848 = vadd.f32 %v239, %v847
    %849 = vmatprep.mubr.bf16.mxu0 0
    %850 = vmatmul.mubr.bf16.gmra.mrb[0].mxu0 %v367
    %v851 = vpop.f32.mrb[0].mxu0
    %v852 = vadd.f32 %v235, %v851
    %v853 = vpop.f32.mrb[0].mxu0
    %v854 = vadd.f32 %v239, %v853
    %v855 = vpop.f32.mrb[0].mxu0
    %v856 = vadd.f32 %v235, %v855
    %v857 = vpop.f32.mrb[0].mxu0
    %v858 = vadd.f32 %v239, %v857
    %859 = vmatprep.mubr.bf16.mxu0 0
    %860 = vmatmul.mubr.bf16.gmra.mrb[0].mxu0 %v370
    %v861 = vpop.f32.mrb[0].mxu0
    %v862 = vadd.f32 %v235, %v861
    %v863 = vpop.f32.mrb[0].mxu0
    %v864 = vadd.f32 %v239, %v863
    %v865 = vpop.f32.mrb[0].mxu0
    %v866 = vadd.f32 %v235, %v865
    %v867 = vpop.f32.mrb[0].mxu0
    %v868 = vadd.f32 %v239, %v867
    %869 = vmatprep.mubr.bf16.mxu0 0
    %870 = vmatmul.mubr.bf16.gmra.mrb[0].mxu0 %v373
    %v871 = vpop.f32.mrb[0].mxu0
    %v872 = vadd.f32 %v235, %v871
    %v873 = vpop.f32.mrb[0].mxu0
    %v874 = vadd.f32 %v239, %v873
    %v875 = vpop.f32.mrb[0].mxu0
    %v876 = vadd.f32 %v235, %v875
    %v877 = vpop.f32.mrb[0].mxu0
    %v878 = vadd.f32 %v239, %v877
    %879 = vmatprep.mubr.bf16.mxu0 0
    %880 = vmatmul.mubr.bf16.gmra.mrb[0].mxu0 %v376
    %v881 = vpop.f32.mrb[0].mxu0
    %v882 = vadd.f32 %v235, %v881
    %v883 = vpop.f32.mrb[0].mxu0
    %v884 = vadd.f32 %v239, %v883
    %v885 = vpop.f32.mrb[0].mxu0
    %v886 = vadd.f32 %v235, %v885
    %v887 = vpop.f32.mrb[0].mxu0
    %v888 = vadd.f32 %v239, %v887
    %889 = vmatprep.mubr.bf16.mxu0 0
    %890 = vmatmul.mubr.bf16.gmra.mrb[0].mxu0 %v379
    %v891 = vpop.f32.mrb[0].mxu0
    %v892 = vadd.f32 %v235, %v891
    %v893 = vpop.f32.mrb[0].mxu0
    %v894 = vadd.f32 %v239, %v893
    %v895 = vpop.f32.mrb[0].mxu0
    %v896 = vadd.f32 %v235, %v895
    %v897 = vpop.f32.mrb[0].mxu0
    %v898 = vadd.f32 %v239, %v897
    %899 = vmatprep.mubr.bf16.mxu0 0
    %900 = vmatmul.mubr.bf16.gmra.mrb[0].mxu0 %v382
    %v901 = vpop.f32.mrb[0].mxu0
    %v902 = vadd.f32 %v235, %v901
    %v903 = vpop.f32.mrb[0].mxu0
    %v904 = vadd.f32 %v239, %v903
    %v905 = vpop.f32.mrb[0].mxu0
    %v906 = vadd.f32 %v235, %v905
    %v907 = vpop.f32.mrb[0].mxu0
    %v908 = vadd.f32 %v239, %v907
    %909 = vmatprep.mubr.bf16.mxu0 0
    %910 = vmatmul.mubr.bf16.gmra.mrb[0].mxu0 %v385
    %v911 = vpop.f32.mrb[0].mxu0
    %v912 = vadd.f32 %v235, %v911
    %v913 = vpop.f32.mrb[0].mxu0
    %v914 = vadd.f32 %v239, %v913
    %v915 = vpop.f32.mrb[0].mxu0
    %v916 = vadd.f32 %v235, %v915
    %v917 = vpop.f32.mrb[0].mxu0
    %v918 = vadd.f32 %v239, %v917
    %919 = vmatprep.mubr.bf16.mxu0 0
    %920 = vmatmul.mubr.bf16.gmra.mrb[0].mxu0 %v388
    %v921 = vpop.f32.mrb[0].mxu0
    %v922 = vadd.f32 %v235, %v921
    %v923 = vpop.f32.mrb[0].mxu0
    %v924 = vadd.f32 %v239, %v923
    %v925 = vpop.f32.mrb[0].mxu0
    %v926 = vadd.f32 %v235, %v925
    %v927 = vpop.f32.mrb[0].mxu0
    %v928 = vadd.f32 %v239, %v927
    %929 = vmatprep.mubr.bf16.mxu0 0
    %930 = vmatmul.mubr.bf16.gmra.mrb[0].mxu0 %v391
    %v931 = vpop.f32.mrb[0].mxu0
    %v932 = vadd.f32 %v235, %v931
    %v933 = vpop.f32.mrb[0].mxu0
    %v934 = vadd.f32 %v239, %v933
    %v935 = vpop.f32.mrb[0].mxu0
    %v936 = vadd.f32 %v235, %v935
    %v937 = vpop.f32.mrb[0].mxu0
    %v938 = vadd.f32 %v239, %v937
    %939 = vmatprep.mubr.bf16.mxu0 0
    %940 = vmatmul.mubr.bf16.gmra.mrb[0].mxu0 %v394
    %v941 = vpop.f32.mrb[0].mxu0
    %v942 = vadd.f32 %v235, %v941
    %v943 = vpop.f32.mrb[0].mxu0
    %v944 = vadd.f32 %v239, %v943
    %v945 = vpop.f32.mrb[0].mxu0
    %v946 = vadd.f32 %v235, %v945
    %v947 = vpop.f32.mrb[0].mxu0
    %v948 = vadd.f32 %v239, %v947
    %949 = vmatprep.mubr.bf16.mxu0 0
    %950 = vmatmul.mubr.bf16.gmra.mrb[0].mxu0 %v397
    %v951 = vpop.f32.mrb[0].mxu0
    %v952 = vadd.f32 %v235, %v951
    %v953 = vpop.f32.mrb[0].mxu0
    %v954 = vadd.f32 %v239, %v953
    %v955 = vpop.f32.mrb[0].mxu0
    %v956 = vadd.f32 %v235, %v955
    %v957 = vpop.f32.mrb[0].mxu0
    %v958 = vadd.f32 %v239, %v957
    %959 = vmatprep.mubr.bf16.mxu0 0
    %960 = vmatmul.mubr.bf16.gmra.mrb[0].mxu0 %v400
    %v961 = vpop.f32.mrb[0].mxu0
    %v962 = vadd.f32 %v235, %v961
    %v963 = vpop.f32.mrb[0].mxu0
    %v964 = vadd.f32 %v239, %v963
    %v965 = vpop.f32.mrb[0].mxu0
    %v966 = vadd.f32 %v235, %v965
    %v967 = vpop.f32.mrb[0].mxu0
    %v968 = vadd.f32 %v239, %v967
    %969 = vmatprep.mubr.bf16.mxu0 0
    %970 = vmatmul.mubr.bf16.gmra.mrb[0].mxu0 %v403
    %v971 = vpop.f32.mrb[0].mxu0
    %v972 = vadd.f32 %v235, %v971
    %v973 = vpop.f32.mrb[0].mxu0
    %v974 = vadd.f32 %v239, %v973
    %v975 = vpop.f32.mrb[0].mxu0
    %v976 = vadd.f32 %v235, %v975
    %v977 = vpop.f32.mrb[0].mxu0
    %v978 = vadd.f32 %v239, %v977
    %979 = vmatprep.mubr.bf16.mxu0 0
    %980 = vmatmul.mubr.bf16.gmra.mrb[0].mxu0 %v406
    %v981 = vpop.f32.mrb[0].mxu0
    %v982 = vadd.f32 %v235, %v981
    %v983 = vpop.f32.mrb[0].mxu0
    %v984 = vadd.f32 %v239, %v983
    %v985 = vpop.f32.mrb[0].mxu0
    %v986 = vadd.f32 %v235, %v985
    %v987 = vpop.f32.mrb[0].mxu0
    %v988 = vadd.f32 %v239, %v987
    %989 = vmatprep.mubr.bf16.mxu0 0
    %990 = vmatmul.mubr.bf16.gmra.mrb[0].mxu0 %v409
    %v991 = vpop.f32.mrb[0].mxu0
    %v992 = vadd.f32 %v235, %v991
    %v993 = vpop.f32.mrb[0].mxu0
    %v994 = vadd.f32 %v239, %v993
    %v995 = vpop.f32.mrb[0].mxu0
    %v996 = vadd.f32 %v235, %v995
    %v997 = vpop.f32.mrb[0].mxu0
    %v998 = vadd.f32 %v239, %v997
    %999 = vmatprep.mubr.bf16.mxu0 0
    %1000 = vmatmul.mubr.bf16.gmra.mrb[0].mxu0 %v412
    %v1001 = vpop.f32.mrb[0].mxu0
    %v1002 = vadd.f32 %v235, %v1001
    %v1003 = vpop.f32.mrb[0].mxu0
    %v1004 = vadd.f32 %v239, %v1003
    %v1005 = vpop.f32.mrb[0].mxu0
    %v1006 = vadd.f32 %v235, %v1005
    %v1007 = vpop.f32.mrb[0].mxu0
    %v1008 = vadd.f32 %v239, %v1007
    %1009 = vmatprep.mubr.bf16.mxu0 0
    %1010 = vmatmul.mubr.bf16.gmra.mrb[0].mxu0 %v415
    %v1011 = vpop.f32.mrb[0].mxu0
    %v1012 = vadd.f32 %v235, %v1011
    %v1013 = vpop.f32.mrb[0].mxu0
    %v1014 = vadd.f32 %v239, %v1013
    %v1015 = vpop.f32.mrb[0].mxu0
    %v1016 = vadd.f32 %v235, %v1015
    %v1017 = vpop.f32.mrb[0].mxu0
    %v1018 = vadd.f32 %v239, %v1017
    %1019 = vmatprep.mubr.bf16.mxu0 0
    %1020 = vmatmul.mubr.bf16.gmra.mrb[0].mxu0 %v418
    %v1021 = vpop.f32.mrb[0].mxu0
    %v1022 = vadd.f32 %v235, %v1021
    %v1023 = vpop.f32.mrb[0].mxu0
    %v1024 = vadd.f32 %v239, %v1023
    %v1025 = vpop.f32.mrb[0].mxu0
    %v1026 = vadd.f32 %v235, %v1025
    %v1027 = vpop.f32.mrb[0].mxu0
    %v1028 = vadd.f32 %v239, %v1027
    %1029 = vmatprep.mubr.bf16.mxu0 0
    %1030 = vmatmul.mubr.bf16.gmra.mrb[0].mxu0 %v421
    %v1031 = vpop.f32.mrb[0].mxu0
    %v1032 = vadd.f32 %v235, %v1031
    %v1033 = vpop.f32.mrb[0].mxu0
    %v1034 = vadd.f32 %v239, %v1033
    %v1035 = vpop.f32.mrb[0].mxu0
    %v1036 = vadd.f32 %v235, %v1035
    %v1037 = vpop.f32.mrb[0].mxu0
    %v1038 = vadd.f32 %v239, %v1037
    %1039 = vmatprep.mubr.bf16.mxu0 0
    %1040 = vmatmul.mubr.bf16.gmra.mrb[0].mxu0 %v424
    %v1041 = vpop.f32.mrb[0].mxu0
    %v1042 = vadd.f32 %v235, %v1041
    %v1043 = vpop.f32.mrb[0].mxu0
    %v1044 = vadd.f32 %v239, %v1043
    %v1045 = vpop.f32.mrb[0].mxu0
    %v1046 = vadd.f32 %v235, %v1045
    %v1047 = vpop.f32.mrb[0].mxu0
    %v1048 = vadd.f32 %v239, %v1047
    %1049 = vmatprep.mubr.bf16.mxu0 0
    %1050 = vmatmul.mubr.bf16.gmra.mrb[0].mxu0 %v427
    %v1051 = vpop.f32.mrb[0].mxu0
    %v1052 = vadd.f32 %v235, %v1051
    %v1053 = vpop.f32.mrb[0].mxu0
    %v1054 = vadd.f32 %v239, %v1053
    %v1055 = vpop.f32.mrb[0].mxu0
    %v1056 = vadd.f32 %v235, %v1055
    %v1057 = vpop.f32.mrb[0].mxu0
    %v1058 = vadd.f32 %v239, %v1057
    %1059 = vmatprep.mubr.bf16.mxu0 0
    %1060 = vmatmul.mubr.bf16.gmra.mrb[0].mxu0 %v430
    %v1061 = vpop.f32.mrb[0].mxu0
    %v1062 = vadd.f32 %v235, %v1061
    %v1063 = vpop.f32.mrb[0].mxu0
    %v1064 = vadd.f32 %v239, %v1063
    %v1065 = vpop.f32.mrb[0].mxu0
    %v1066 = vadd.f32 %v235, %v1065
    %v1067 = vpop.f32.mrb[0].mxu0
    %v1068 = vadd.f32 %v239, %v1067
    %1069 = vmatprep.mubr.bf16.mxu0 0
    %1070 = vmatmul.mubr.bf16.gmra.mrb[0].mxu0 %v433
    %v1071 = vpop.f32.mrb[0].mxu0
    %v1072 = vadd.f32 %v235, %v1071
    %v1073 = vpop.f32.mrb[0].mxu0
    %v1074 = vadd.f32 %v239, %v1073
    %v1075 = vpop.f32.mrb[0].mxu0
    %v1076 = vadd.f32 %v235, %v1075
    %v1077 = vpop.f32.mrb[0].mxu0
    %v1078 = vadd.f32 %v239, %v1077
    %1079 = vmatprep.mubr.bf16.mxu0 0
    %1080 = vmatmul.mubr.bf16.gmra.mrb[0].mxu0 %v436
    %v1081 = vpop.f32.mrb[0].mxu0
    %v1082 = vadd.f32 %v235, %v1081
    %v1083 = vpop.f32.mrb[0].mxu0
    %v1084 = vadd.f32 %v239, %v1083
    %v1085 = vpop.f32.mrb[0].mxu0
    %v1086 = vadd.f32 %v235, %v1085
    %v1087 = vpop.f32.mrb[0].mxu0
    %v1088 = vadd.f32 %v239, %v1087
    %1089 = vmatprep.mubr.bf16.mxu0 0
    %1090 = vmatmul.mubr.bf16.gmra.mrb[0].mxu0 %v439
    %v1091 = vpop.f32.mrb[0].mxu0
    %v1092 = vadd.f32 %v235, %v1091
    %v1093 = vpop.f32.mrb[0].mxu0
    %v1094 = vadd.f32 %v239, %v1093
    %v1095 = vpop.f32.mrb[0].mxu0
    %v1096 = vadd.f32 %v235, %v1095
    %v1097 = vpop.f32.mrb[0].mxu0
    %v1098 = vadd.f32 %v239, %v1097
    %1099 = vmatprep.mubr.bf16.mxu0 0
    %1100 = vmatmul.mubr.bf16.gmra.mrb[0].mxu0 %v442
    %v1101 = vpop.f32.mrb[0].mxu0
    %v1102 = vadd.f32 %v235, %v1101
    %v1103 = vpop.f32.mrb[0].mxu0
    %v1104 = vadd.f32 %v239, %v1103
    %v1105 = vpop.f32.mrb[0].mxu0
    %v1106 = vadd.f32 %v235, %v1105
    %v1107 = vpop.f32.mrb[0].mxu0
    %v1108 = vadd.f32 %v239, %v1107
    %1109 = vmatprep.mubr.bf16.mxu0 0
    %1110 = vmatmul.mubr.bf16.gmra.mrb[0].mxu0 %v445
    %v1111 = vpop.f32.mrb[0].mxu0
    %v1112 = vadd.f32 %v235, %v1111
    %v1113 = vpop.f32.mrb[0].mxu0
    %v1114 = vadd.f32 %v239, %v1113
    %v1115 = vpop.f32.mrb[0].mxu0
    %v1116 = vadd.f32 %v235, %v1115
    %v1117 = vpop.f32.mrb[0].mxu0
    %v1118 = vadd.f32 %v239, %v1117
    %1119 = vmatprep.mubr.bf16.mxu0 0
    %1120 = vmatmul.mubr.bf16.gmra.mrb[0].mxu0 %v448
    %v1121 = vpop.f32.mrb[0].mxu0
    %v1122 = vadd.f32 %v235, %v1121
    %v1123 = vpop.f32.mrb[0].mxu0
    %v1124 = vadd.f32 %v239, %v1123
    %v1125 = vpop.f32.mrb[0].mxu0
    %v1126 = vadd.f32 %v235, %v1125
    %v1127 = vpop.f32.mrb[0].mxu0
    %v1128 = vadd.f32 %v239, %v1127
    %1129 = vdwg.mxu0
    %v1130 = vmax.f32 %v492, 0.0
    %v1131 = vmax.f32 %v494, 0.0
    %v1132 = vmax.f32 %v496, 0.0
    %v1133 = vmax.f32 %v498, 0.0
    %v1134 = vmax.f32 %v502, 0.0
    %v1135 = vmax.f32 %v504, 0.0
    %v1136 = vmax.f32 %v506, 0.0
    %v1137 = vmax.f32 %v508, 0.0
    %v1138 = vmax.f32 %v512, 0.0
    %v1139 = vmax.f32 %v514, 0.0
    %v1140 = vmax.f32 %v516, 0.0
    %v1141 = vmax.f32 %v518, 0.0
    %v1142 = vmax.f32 %v522, 0.0
    %v1143 = vmax.f32 %v524, 0.0
    %v1144 = vmax.f32 %v526, 0.0
    %v1145 = vmax.f32 %v528, 0.0
    %v1146 = vmax.f32 %v532, 0.0
    %v1147 = vmax.f32 %v534, 0.0
    %v1148 = vmax.f32 %v536, 0.0
    %v1149 = vmax.f32 %v538, 0.0
    %v1150 = vmax.f32 %v542, 0.0
    %v1151 = vmax.f32 %v544, 0.0
    %v1152 = vmax.f32 %v546, 0.0
    %v1153 = vmax.f32 %v548, 0.0
    %v1154 = vmax.f32 %v552, 0.0
    %v1155 = vmax.f32 %v554, 0.0
    %v1156 = vmax.f32 %v556, 0.0
    %v1157 = vmax.f32 %v558, 0.0
    %v1158 = vmax.f32 %v562, 0.0
    %v1159 = vmax.f32 %v564, 0.0
    %v1160 = vmax.f32 %v566, 0.0
    %v1161 = vmax.f32 %v568, 0.0
    %v1162 = vmax.f32 %v572, 0.0
    %v1163 = vmax.f32 %v574, 0.0
    %v1164 = vmax.f32 %v576, 0.0
    %v1165 = vmax.f32 %v578, 0.0
    %v1166 = vmax.f32 %v582, 0.0
    %v1167 = vmax.f32 %v584, 0.0
    %v1168 = vmax.f32 %v586, 0.0
    %v1169 = vmax.f32 %v588, 0.0
    %v1170 = vmax.f32 %v592, 0.0
    %v1171 = vmax.f32 %v594, 0.0
    %v1172 = vmax.f32 %v596, 0.0
    %v1173 = vmax.f32 %v598, 0.0
    %v1174 = vmax.f32 %v602, 0.0
    %v1175 = vmax.f32 %v604, 0.0
    %v1176 = vmax.f32 %v606, 0.0
    %v1177 = vmax.f32 %v608, 0.0
    %v1178 = vmax.f32 %v612, 0.0
    %v1179 = vmax.f32 %v614, 0.0
    %v1180 = vmax.f32 %v616, 0.0
    %v1181 = vmax.f32 %v618, 0.0
    %v1182 = vmax.f32 %v622, 0.0
    %v1183 = vmax.f32 %v624, 0.0
    %v1184 = vmax.f32 %v626, 0.0
    %v1185 = vmax.f32 %v628, 0.0
    %v1186 = vmax.f32 %v632, 0.0
    %v1187 = vmax.f32 %v634, 0.0
    %v1188 = vmax.f32 %v636, 0.0
    %v1189 = vmax.f32 %v638, 0.0
    %v1190 = vmax.f32 %v642, 0.0
    %v1191 = vmax.f32 %v644, 0.0
    %v1192 = vmax.f32 %v646, 0.0
    %v1193 = vmax.f32 %v648, 0.0
    %v1194 = vmax.f32 %v652, 0.0
    %v1195 = vmax.f32 %v654, 0.0
    %v1196 = vmax.f32 %v656, 0.0
    %v1197 = vmax.f32 %v658, 0.0
    %v1198 = vmax.f32 %v662, 0.0
    %v1199 = vmax.f32 %v664, 0.0
    %v1200 = vmax.f32 %v666, 0.0
    %v1201 = vmax.f32 %v668, 0.0
    %v1202 = vmax.f32 %v672, 0.0
    %v1203 = vmax.f32 %v674, 0.0
    %v1204 = vmax.f32 %v676, 0.0
    %v1205 = vmax.f32 %v678, 0.0
    %v1206 = vmax.f32 %v682, 0.0
    %v1207 = vmax.f32 %v684, 0.0
    %v1208 = vmax.f32 %v686, 0.0
    %v1209 = vmax.f32 %v688, 0.0
    %v1210 = vmax.f32 %v692, 0.0
    %v1211 = vmax.f32 %v694, 0.0
    %v1212 = vmax.f32 %v696, 0.0
    %v1213 = vmax.f32 %v698, 0.0
    %v1214 = vmax.f32 %v702, 0.0
    %v1215 = vmax.f32 %v704, 0.0
    %v1216 = vmax.f32 %v706, 0.0
    %v1217 = vmax.f32 %v708, 0.0
    %v1218 = vmax.f32 %v712, 0.0
    %v1219 = vmax.f32 %v714, 0.0
    %v1220 = vmax.f32 %v716, 0.0
    %v1221 = vmax.f32 %v718, 0.0
    %v1222 = vmax.f32 %v722, 0.0
    %v1223 = vmax.f32 %v724, 0.0
    %v1224 = vmax.f32 %v726, 0.0
    %v1225 = vmax.f32 %v728, 0.0
    %v1226 = vmax.f32 %v732, 0.0
    %v1227 = vmax.f32 %v734, 0.0
    %v1228 = vmax.f32 %v736, 0.0
    %v1229 = vmax.f32 %v738, 0.0
    %v1230 = vmax.f32 %v742, 0.0
    %v1231 = vmax.f32 %v744, 0.0
    %v1232 = vmax.f32 %v746, 0.0
    %v1233 = vmax.f32 %v748, 0.0
    %v1234 = vmax.f32 %v752, 0.0
    %v1235 = vmax.f32 %v754, 0.0
    %v1236 = vmax.f32 %v756, 0.0
    %v1237 = vmax.f32 %v758, 0.0
    %v1238 = vmax.f32 %v762, 0.0
    %v1239 = vmax.f32 %v764, 0.0
    %v1240 = vmax.f32 %v766, 0.0
    %v1241 = vmax.f32 %v768, 0.0
    %v1242 = vmax.f32 %v772, 0.0
    %v1243 = vmax.f32 %v774, 0.0
    %v1244 = vmax.f32 %v776, 0.0
    %v1245 = vmax.f32 %v778, 0.0
    %v1246 = vmax.f32 %v782, 0.0
    %v1247 = vmax.f32 %v784, 0.0
    %v1248 = vmax.f32 %v786, 0.0
    %v1249 = vmax.f32 %v788, 0.0
    %v1250 = vmax.f32 %v792, 0.0
    %v1251 = vmax.f32 %v794, 0.0
    %v1252 = vmax.f32 %v796, 0.0
    %v1253 = vmax.f32 %v798, 0.0
    %v1254 = vmax.f32 %v802, 0.0
    %v1255 = vmax.f32 %v804, 0.0
    %v1256 = vmax.f32 %v806, 0.0
    %v1257 = vmax.f32 %v808, 0.0
    %v1258 = vmax.f32 %v812, 0.0
    %v1259 = vmax.f32 %v814, 0.0
    %v1260 = vmax.f32 %v816, 0.0
    %v1261 = vmax.f32 %v818, 0.0
    %v1262 = vmax.f32 %v822, 0.0
    %v1263 = vmax.f32 %v824, 0.0
    %v1264 = vmax.f32 %v826, 0.0
    %v1265 = vmax.f32 %v828, 0.0
    %v1266 = vmax.f32 %v832, 0.0
    %v1267 = vmax.f32 %v834, 0.0
    %v1268 = vmax.f32 %v836, 0.0
    %v1269 = vmax.f32 %v838, 0.0
    %v1270 = vmax.f32 %v842, 0.0
    %v1271 = vmax.f32 %v844, 0.0
    %v1272 = vmax.f32 %v846, 0.0
    %v1273 = vmax.f32 %v848, 0.0
    %v1274 = vmax.f32 %v852, 0.0
    %v1275 = vmax.f32 %v854, 0.0
    %v1276 = vmax.f32 %v856, 0.0
    %v1277 = vmax.f32 %v858, 0.0
    %v1278 = vmax.f32 %v862, 0.0
    %v1279 = vmax.f32 %v864, 0.0
    %v1280 = vmax.f32 %v866, 0.0
    %v1281 = vmax.f32 %v868, 0.0
    %v1282 = vmax.f32 %v872, 0.0
    %v1283 = vmax.f32 %v874, 0.0
    %v1284 = vmax.f32 %v876, 0.0
    %v1285 = vmax.f32 %v878, 0.0
    %v1286 = vmax.f32 %v882, 0.0
    %v1287 = vmax.f32 %v884, 0.0
    %v1288 = vmax.f32 %v886, 0.0
    %v1289 = vmax.f32 %v888, 0.0
    %v1290 = vmax.f32 %v892, 0.0
    %v1291 = vmax.f32 %v894, 0.0
    %v1292 = vmax.f32 %v896, 0.0
    %v1293 = vmax.f32 %v898, 0.0
    %v1294 = vmax.f32 %v902, 0.0
    %v1295 = vmax.f32 %v904, 0.0
    %v1296 = vmax.f32 %v906, 0.0
    %v1297 = vmax.f32 %v908, 0.0
    %v1298 = vmax.f32 %v912, 0.0
    %v1299 = vmax.f32 %v914, 0.0
    %v1300 = vmax.f32 %v916, 0.0
    %v1301 = vmax.f32 %v918, 0.0
    %v1302 = vmax.f32 %v922, 0.0
    %v1303 = vmax.f32 %v924, 0.0
    %v1304 = vmax.f32 %v926, 0.0
    %v1305 = vmax.f32 %v928, 0.0
    %v1306 = vmax.f32 %v932, 0.0
    %v1307 = vmax.f32 %v934, 0.0
    %v1308 = vmax.f32 %v936, 0.0
    %v1309 = vmax.f32 %v938, 0.0
    %v1310 = vmax.f32 %v942, 0.0
    %v1311 = vmax.f32 %v944, 0.0
    %v1312 = vmax.f32 %v946, 0.0
    %v1313 = vmax.f32 %v948, 0.0
    %v1314 = vmax.f32 %v952, 0.0
    %v1315 = vmax.f32 %v954, 0.0
    %v1316 = vmax.f32 %v956, 0.0
    %v1317 = vmax.f32 %v958, 0.0
    %v1318 = vmax.f32 %v962, 0.0
    %v1319 = vmax.f32 %v964, 0.0
    %v1320 = vmax.f32 %v966, 0.0
    %v1321 = vmax.f32 %v968, 0.0
    %v1322 = vmax.f32 %v972, 0.0
    %v1323 = vmax.f32 %v974, 0.0
    %v1324 = vmax.f32 %v976, 0.0
    %v1325 = vmax.f32 %v978, 0.0
    %v1326 = vmax.f32 %v982, 0.0
    %v1327 = vmax.f32 %v984, 0.0
    %v1328 = vmax.f32 %v986, 0.0
    %v1329 = vmax.f32 %v988, 0.0
    %v1330 = vmax.f32 %v992, 0.0
    %v1331 = vmax.f32 %v994, 0.0
    %v1332 = vmax.f32 %v996, 0.0
    %v1333 = vmax.f32 %v998, 0.0
    %v1334 = vmax.f32 %v1002, 0.0
    %v1335 = vmax.f32 %v1004, 0.0
    %v1336 = vmax.f32 %v1006, 0.0
    %v1337 = vmax.f32 %v1008, 0.0
    %v1338 = vmax.f32 %v1012, 0.0
    %v1339 = vmax.f32 %v1014, 0.0
    %v1340 = vmax.f32 %v1016, 0.0
    %v1341 = vmax.f32 %v1018, 0.0
    %v1342 = vmax.f32 %v1022, 0.0
    %v1343 = vmax.f32 %v1024, 0.0
    %v1344 = vmax.f32 %v1026, 0.0
    %v1345 = vmax.f32 %v1028, 0.0
    %v1346 = vmax.f32 %v1032, 0.0
    %v1347 = vmax.f32 %v1034, 0.0
    %v1348 = vmax.f32 %v1036, 0.0
    %v1349 = vmax.f32 %v1038, 0.0
    %v1350 = vmax.f32 %v1042, 0.0
    %v1351 = vmax.f32 %v1044, 0.0
    %v1352 = vmax.f32 %v1046, 0.0
    %v1353 = vmax.f32 %v1048, 0.0
    %v1354 = vmax.f32 %v1052, 0.0
    %v1355 = vmax.f32 %v1054, 0.0
    %v1356 = vmax.f32 %v1056, 0.0
    %v1357 = vmax.f32 %v1058, 0.0
    %v1358 = vmax.f32 %v1062, 0.0
    %v1359 = vmax.f32 %v1064, 0.0
    %v1360 = vmax.f32 %v1066, 0.0
    %v1361 = vmax.f32 %v1068, 0.0
    %v1362 = vmax.f32 %v1072, 0.0
    %v1363 = vmax.f32 %v1074, 0.0
    %v1364 = vmax.f32 %v1076, 0.0
    %v1365 = vmax.f32 %v1078, 0.0
    %v1366 = vmax.f32 %v1082, 0.0
    %v1367 = vmax.f32 %v1084, 0.0
    %v1368 = vmax.f32 %v1086, 0.0
    %v1369 = vmax.f32 %v1088, 0.0
    %v1370 = vmax.f32 %v1092, 0.0
    %v1371 = vmax.f32 %v1094, 0.0
    %v1372 = vmax.f32 %v1096, 0.0
    %v1373 = vmax.f32 %v1098, 0.0
    %v1374 = vmax.f32 %v1102, 0.0
    %v1375 = vmax.f32 %v1104, 0.0
    %v1376 = vmax.f32 %v1106, 0.0
    %v1377 = vmax.f32 %v1108, 0.0
    %v1378 = vmax.f32 %v1112, 0.0
    %v1379 = vmax.f32 %v1114, 0.0
    %v1380 = vmax.f32 %v1116, 0.0
    %v1381 = vmax.f32 %v1118, 0.0
    %v1382 = vmax.f32 %v1122, 0.0
    %v1383 = vmax.f32 %v1124, 0.0
    %v1384 = vmax.f32 %v1126, 0.0
    %v1385 = vmax.f32 %v1128, 0.0
    %v1386 = vpack.c.bf16 %v1132, %v1130
    %v1387 = vpack.c.bf16 %v1133, %v1131
    %v1388 = vpack.c.bf16 %v1136, %v1134
    %v1389 = vpack.c.bf16 %v1137, %v1135
    %v1390 = vpack.c.bf16 %v1140, %v1138
    %v1391 = vpack.c.bf16 %v1141, %v1139
    %v1392 = vpack.c.bf16 %v1144, %v1142
    %v1393 = vpack.c.bf16 %v1145, %v1143
    %v1394 = vpack.c.bf16 %v1148, %v1146
    %v1395 = vpack.c.bf16 %v1149, %v1147
    %v1396 = vpack.c.bf16 %v1152, %v1150
    %v1397 = vpack.c.bf16 %v1153, %v1151
    %v1398 = vpack.c.bf16 %v1156, %v1154
    %v1399 = vpack.c.bf16 %v1157, %v1155
    %v1400 = vpack.c.bf16 %v1160, %v1158
    %v1401 = vpack.c.bf16 %v1161, %v1159
    %v1402 = vpack.c.bf16 %v1164, %v1162
    %v1403 = vpack.c.bf16 %v1165, %v1163
    %v1404 = vpack.c.bf16 %v1168, %v1166
    %v1405 = vpack.c.bf16 %v1169, %v1167
    %v1406 = vpack.c.bf16 %v1172, %v1170
    %v1407 = vpack.c.bf16 %v1173, %v1171
    %v1408 = vpack.c.bf16 %v1176, %v1174
    %v1409 = vpack.c.bf16 %v1177, %v1175
    %v1410 = vpack.c.bf16 %v1180, %v1178
    %v1411 = vpack.c.bf16 %v1181, %v1179
    %v1412 = vpack.c.bf16 %v1184, %v1182
    %v1413 = vpack.c.bf16 %v1185, %v1183
    %v1414 = vpack.c.bf16 %v1188, %v1186
    %v1415 = vpack.c.bf16 %v1189, %v1187
    %v1416 = vpack.c.bf16 %v1192, %v1190
    %v1417 = vpack.c.bf16 %v1193, %v1191
    %v1418 = vpack.c.bf16 %v1196, %v1194
    %v1419 = vpack.c.bf16 %v1197, %v1195
    %v1420 = vpack.c.bf16 %v1200, %v1198
    %v1421 = vpack.c.bf16 %v1201, %v1199
    %v1422 = vpack.c.bf16 %v1204, %v1202
    %v1423 = vpack.c.bf16 %v1205, %v1203
    %v1424 = vpack.c.bf16 %v1208, %v1206
    %v1425 = vpack.c.bf16 %v1209, %v1207
    %v1426 = vpack.c.bf16 %v1212, %v1210
    %v1427 = vpack.c.bf16 %v1213, %v1211
    %v1428 = vpack.c.bf16 %v1216, %v1214
    %v1429 = vpack.c.bf16 %v1217, %v1215
    %v1430 = vpack.c.bf16 %v1220, %v1218
    %v1431 = vpack.c.bf16 %v1221, %v1219
    %v1432 = vpack.c.bf16 %v1224, %v1222
    %v1433 = vpack.c.bf16 %v1225, %v1223
    %v1434 = vpack.c.bf16 %v1228, %v1226
    %v1435 = vpack.c.bf16 %v1229, %v1227
    %v1436 = vpack.c.bf16 %v1232, %v1230
    %v1437 = vpack.c.bf16 %v1233, %v1231
    %v1438 = vpack.c.bf16 %v1236, %v1234
    %v1439 = vpack.c.bf16 %v1237, %v1235
    %v1440 = vpack.c.bf16 %v1240, %v1238
    %v1441 = vpack.c.bf16 %v1241, %v1239
    %v1442 = vpack.c.bf16 %v1244, %v1242
    %v1443 = vpack.c.bf16 %v1245, %v1243
    %v1444 = vpack.c.bf16 %v1248, %v1246
    %v1445 = vpack.c.bf16 %v1249, %v1247
    %v1446 = vpack.c.bf16 %v1252, %v1250
    %v1447 = vpack.c.bf16 %v1253, %v1251
    %v1448 = vpack.c.bf16 %v1256, %v1254
    %v1449 = vpack.c.bf16 %v1257, %v1255
    %v1450 = vpack.c.bf16 %v1260, %v1258
    %v1451 = vpack.c.bf16 %v1261, %v1259
    %v1452 = vpack.c.bf16 %v1264, %v1262
    %v1453 = vpack.c.bf16 %v1265, %v1263
    %v1454 = vpack.c.bf16 %v1268, %v1266
    %v1455 = vpack.c.bf16 %v1269, %v1267
    %v1456 = vpack.c.bf16 %v1272, %v1270
    %v1457 = vpack.c.bf16 %v1273, %v1271
    %v1458 = vpack.c.bf16 %v1276, %v1274
    %v1459 = vpack.c.bf16 %v1277, %v1275
    %v1460 = vpack.c.bf16 %v1280, %v1278
    %v1461 = vpack.c.bf16 %v1281, %v1279
    %v1462 = vpack.c.bf16 %v1284, %v1282
    %v1463 = vpack.c.bf16 %v1285, %v1283
    %v1464 = vpack.c.bf16 %v1288, %v1286
    %v1465 = vpack.c.bf16 %v1289, %v1287
    %v1466 = vpack.c.bf16 %v1292, %v1290
    %v1467 = vpack.c.bf16 %v1293, %v1291
    %v1468 = vpack.c.bf16 %v1296, %v1294
    %v1469 = vpack.c.bf16 %v1297, %v1295
    %v1470 = vpack.c.bf16 %v1300, %v1298
    %v1471 = vpack.c.bf16 %v1301, %v1299
    %v1472 = vpack.c.bf16 %v1304, %v1302
    %v1473 = vpack.c.bf16 %v1305, %v1303
    %v1474 = vpack.c.bf16 %v1308, %v1306
    %v1475 = vpack.c.bf16 %v1309, %v1307
    %v1476 = vpack.c.bf16 %v1312, %v1310
    %v1477 = vpack.c.bf16 %v1313, %v1311
    %v1478 = vpack.c.bf16 %v1316, %v1314
    %v1479 = vpack.c.bf16 %v1317, %v1315
    %v1480 = vpack.c.bf16 %v1320, %v1318
    %v1481 = vpack.c.bf16 %v1321, %v1319
    %v1482 = vpack.c.bf16 %v1324, %v1322
    %v1483 = vpack.c.bf16 %v1325, %v1323
    %v1484 = vpack.c.bf16 %v1328, %v1326
    %v1485 = vpack.c.bf16 %v1329, %v1327
    %v1486 = vpack.c.bf16 %v1332, %v1330
    %v1487 = vpack.c.bf16 %v1333, %v1331
    %v1488 = vpack.c.bf16 %v1336, %v1334
    %v1489 = vpack.c.bf16 %v1337, %v1335
    %v1490 = vpack.c.bf16 %v1340, %v1338
    %v1491 = vpack.c.bf16 %v1341, %v1339
    %v1492 = vpack.c.bf16 %v1344, %v1342
    %v1493 = vpack.c.bf16 %v1345, %v1343
    %v1494 = vpack.c.bf16 %v1348, %v1346
    %v1495 = vpack.c.bf16 %v1349, %v1347
    %v1496 = vpack.c.bf16 %v1352, %v1350
    %v1497 = vpack.c.bf16 %v1353, %v1351
    %v1498 = vpack.c.bf16 %v1356, %v1354
    %v1499 = vpack.c.bf16 %v1357, %v1355
    %v1500 = vpack.c.bf16 %v1360, %v1358
    %v1501 = vpack.c.bf16 %v1361, %v1359
    %v1502 = vpack.c.bf16 %v1364, %v1362
    %v1503 = vpack.c.bf16 %v1365, %v1363
    %v1504 = vpack.c.bf16 %v1368, %v1366
    %v1505 = vpack.c.bf16 %v1369, %v1367
    %v1506 = vpack.c.bf16 %v1372, %v1370
    %v1507 = vpack.c.bf16 %v1373, %v1371
    %v1508 = vpack.c.bf16 %v1376, %v1374
    %v1509 = vpack.c.bf16 %v1377, %v1375
    %v1510 = vpack.c.bf16 %v1380, %v1378
    %v1511 = vpack.c.bf16 %v1381, %v1379
    %v1512 = vpack.c.bf16 %v1384, %v1382
    %v1513 = vpack.c.bf16 %v1385, %v1383
    %1514 = vmatprep.subr.bf16.mxu0 %v1387
    %1515 = vmatpush1.bf16.msra.mxu0 %v1386
    %1516 = vmatprep.subr.bf16.mxu0 %v1389
    %1517 = vmatpush1.bf16.msra.mxu0 %v1388
    %1518 = vmatprep.subr.bf16.mxu0 %v1391
    %1519 = vmatpush1.bf16.msra.mxu0 %v1390
    %1520 = vmatprep.subr.bf16.mxu0 %v1393
    %1521 = vmatpush1.bf16.msra.mxu0 %v1392
    %1522 = vmatprep.subr.bf16.mxu0 %v1395
    %1523 = vmatpush1.bf16.msra.mxu0 %v1394
    %1524 = vmatprep.subr.bf16.mxu0 %v1397
    %1525 = vmatpush1.bf16.msra.mxu0 %v1396
    %1526 = vmatprep.subr.bf16.mxu0 %v1399
    %1527 = vmatpush1.bf16.msra.mxu0 %v1398
    %1528 = vmatprep.subr.bf16.mxu0 %v1401
    %1529 = vmatpush1.bf16.msra.mxu0 %v1400
    %1530 = vmatprep.subr.bf16.mxu0 %v1403
    %1531 = vmatpush1.bf16.msra.mxu0 %v1402
    %1532 = vmatprep.subr.bf16.mxu0 %v1405
    %1533 = vmatpush1.bf16.msra.mxu0 %v1404
    %1534 = vmatprep.subr.bf16.mxu0 %v1407
    %1535 = vmatpush1.bf16.msra.mxu0 %v1406
    %1536 = vmatprep.subr.bf16.mxu0 %v1409
    %1537 = vmatpush1.bf16.msra.mxu0 %v1408
    %1538 = vmatprep.subr.bf16.mxu0 %v1411
    %1539 = vmatpush1.bf16.msra.mxu0 %v1410
    %1540 = vmatprep.subr.bf16.mxu0 %v1413
    %1541 = vmatpush1.bf16.msra.mxu0 %v1412
    %1542 = vmatprep.subr.bf16.mxu0 %v1415
    %1543 = vmatpush1.bf16.msra.mxu0 %v1414
    %1544 = vmatprep.subr.bf16.mxu0 %v1417
    %1545 = vmatpush1.bf16.msra.mxu0 %v1416
    %1546 = vmatprep.mubr.bf16.mxu0 1065369472
    %1547 = vmatmul.mubr.bf16.gmra.mrb[0].mxu0 1065369472
    %v1548 = vpop.f32.mrb[0].mxu0
    %v1549 = vadd.f32 0.0, %v1548
    %v1550 = vpop.f32.mrb[0].mxu0
    %v1551 = vadd.f32 0.0, %v1550
    %v1552 = vpop.f32.mrb[0].mxu0
    %v1553 = vpop.f32.mrb[0].mxu0
    %1554 = vdwg.mxu0
    %1555 = vmatprep.subr.bf16.mxu0 %v1419
    %1556 = vmatpush1.bf16.msra.mxu0 %v1418
    %1557 = vmatprep.subr.bf16.mxu0 %v1421
    %1558 = vmatpush1.bf16.msra.mxu0 %v1420
    %1559 = vmatprep.subr.bf16.mxu0 %v1423
    %1560 = vmatpush1.bf16.msra.mxu0 %v1422
    %1561 = vmatprep.subr.bf16.mxu0 %v1425
    %1562 = vmatpush1.bf16.msra.mxu0 %v1424
    %1563 = vmatprep.subr.bf16.mxu0 %v1427
    %1564 = vmatpush1.bf16.msra.mxu0 %v1426
    %1565 = vmatprep.subr.bf16.mxu0 %v1429
    %1566 = vmatpush1.bf16.msra.mxu0 %v1428
    %1567 = vmatprep.subr.bf16.mxu0 %v1431
    %1568 = vmatpush1.bf16.msra.mxu0 %v1430
    %1569 = vmatprep.subr.bf16.mxu0 %v1433
    %1570 = vmatpush1.bf16.msra.mxu0 %v1432
    %1571 = vmatprep.subr.bf16.mxu0 %v1435
    %1572 = vmatpush1.bf16.msra.mxu0 %v1434
    %1573 = vmatprep.subr.bf16.mxu0 %v1437
    %1574 = vmatpush1.bf16.msra.mxu0 %v1436
    %1575 = vmatprep.subr.bf16.mxu0 %v1439
    %1576 = vmatpush1.bf16.msra.mxu0 %v1438
    %1577 = vmatprep.subr.bf16.mxu0 %v1441
    %1578 = vmatpush1.bf16.msra.mxu0 %v1440
    %1579 = vmatprep.subr.bf16.mxu0 %v1443
    %1580 = vmatpush1.bf16.msra.mxu0 %v1442
    %1581 = vmatprep.subr.bf16.mxu0 %v1445
    %1582 = vmatpush1.bf16.msra.mxu0 %v1444
    %1583 = vmatprep.subr.bf16.mxu0 %v1447
    %1584 = vmatpush1.bf16.msra.mxu0 %v1446
    %1585 = vmatprep.subr.bf16.mxu0 %v1449
    %1586 = vmatpush1.bf16.msra.mxu0 %v1448
    %1587 = vmatprep.mubr.bf16.mxu0 1065369472
    %1588 = vmatmul.mubr.bf16.gmra.mrb[0].mxu0 1065369472
    %v1589 = vpop.f32.mrb[0].mxu0
    %v1590 = vadd.f32 %v1549, %v1589
    %v1591 = vpop.f32.mrb[0].mxu0
    %v1592 = vadd.f32 %v1551, %v1591
    %v1593 = vpop.f32.mrb[0].mxu0
    %v1594 = vpop.f32.mrb[0].mxu0
    %1595 = vdwg.mxu0
    %1596 = vmatprep.subr.bf16.mxu0 %v1451
    %1597 = vmatpush1.bf16.msra.mxu0 %v1450
    %1598 = vmatprep.subr.bf16.mxu0 %v1453
    %1599 = vmatpush1.bf16.msra.mxu0 %v1452
    %1600 = vmatprep.subr.bf16.mxu0 %v1455
    %1601 = vmatpush1.bf16.msra.mxu0 %v1454
    %1602 = vmatprep.subr.bf16.mxu0 %v1457
    %1603 = vmatpush1.bf16.msra.mxu0 %v1456
    %1604 = vmatprep.subr.bf16.mxu0 %v1459
    %1605 = vmatpush1.bf16.msra.mxu0 %v1458
    %1606 = vmatprep.subr.bf16.mxu0 %v1461
    %1607 = vmatpush1.bf16.msra.mxu0 %v1460
    %1608 = vmatprep.subr.bf16.mxu0 %v1463
    %1609 = vmatpush1.bf16.msra.mxu0 %v1462
    %1610 = vmatprep.subr.bf16.mxu0 %v1465
    %1611 = vmatpush1.bf16.msra.mxu0 %v1464
    %1612 = vmatprep.subr.bf16.mxu0 %v1467
    %1613 = vmatpush1.bf16.msra.mxu0 %v1466
    %1614 = vmatprep.subr.bf16.mxu0 %v1469
    %1615 = vmatpush1.bf16.msra.mxu0 %v1468
    %1616 = vmatprep.subr.bf16.mxu0 %v1471
    %1617 = vmatpush1.bf16.msra.mxu0 %v1470
    %1618 = vmatprep.subr.bf16.mxu0 %v1473
    %1619 = vmatpush1.bf16.msra.mxu0 %v1472
    %1620 = vmatprep.subr.bf16.mxu0 %v1475
    %1621 = vmatpush1.bf16.msra.mxu0 %v1474
    %1622 = vmatprep.subr.bf16.mxu0 %v1477
    %1623 = vmatpush1.bf16.msra.mxu0 %v1476
    %1624 = vmatprep.subr.bf16.mxu0 %v1479
    %1625 = vmatpush1.bf16.msra.mxu0 %v1478
    %1626 = vmatprep.subr.bf16.mxu0 %v1481
    %1627 = vmatpush1.bf16.msra.mxu0 %v1480
    %1628 = vmatprep.mubr.bf16.mxu0 1065369472
    %1629 = vmatmul.mubr.bf16.gmra.mrb[0].mxu0 1065369472
    %v1630 = vpop.f32.mrb[0].mxu0
    %v1631 = vadd.f32 %v1590, %v1630
    %v1632 = vpop.f32.mrb[0].mxu0
    %v1633 = vadd.f32 %v1592, %v1632
    %v1634 = vpop.f32.mrb[0].mxu0
    %v1635 = vpop.f32.mrb[0].mxu0
    %1636 = vdwg.mxu0
    %1637 = vmatprep.subr.bf16.mxu0 %v1483
    %1638 = vmatpush1.bf16.msra.mxu0 %v1482
    %1639 = vmatprep.subr.bf16.mxu0 %v1485
    %1640 = vmatpush1.bf16.msra.mxu0 %v1484
    %1641 = vmatprep.subr.bf16.mxu0 %v1487
    %1642 = vmatpush1.bf16.msra.mxu0 %v1486
    %1643 = vmatprep.subr.bf16.mxu0 %v1489
    %1644 = vmatpush1.bf16.msra.mxu0 %v1488
    %1645 = vmatprep.subr.bf16.mxu0 %v1491
    %1646 = vmatpush1.bf16.msra.mxu0 %v1490
    %1647 = vmatprep.subr.bf16.mxu0 %v1493
    %1648 = vmatpush1.bf16.msra.mxu0 %v1492
    %1649 = vmatprep.subr.bf16.mxu0 %v1495
    %1650 = vmatpush1.bf16.msra.mxu0 %v1494
    %1651 = vmatprep.subr.bf16.mxu0 %v1497
    %1652 = vmatpush1.bf16.msra.mxu0 %v1496
    %1653 = vmatprep.subr.bf16.mxu0 %v1499
    %1654 = vmatpush1.bf16.msra.mxu0 %v1498
    %1655 = vmatprep.subr.bf16.mxu0 %v1501
    %1656 = vmatpush1.bf16.msra.mxu0 %v1500
    %1657 = vmatprep.subr.bf16.mxu0 %v1503
    %1658 = vmatpush1.bf16.msra.mxu0 %v1502
    %1659 = vmatprep.subr.bf16.mxu0 %v1505
    %1660 = vmatpush1.bf16.msra.mxu0 %v1504
    %1661 = vmatprep.subr.bf16.mxu0 %v1507
    %1662 = vmatpush1.bf16.msra.mxu0 %v1506
    %1663 = vmatprep.subr.bf16.mxu0 %v1509
    %1664 = vmatpush1.bf16.msra.mxu0 %v1508
    %1665 = vmatprep.subr.bf16.mxu0 %v1511
    %1666 = vmatpush1.bf16.msra.mxu0 %v1510
    %1667 = vmatprep.subr.bf16.mxu0 %v1513
    %1668 = vmatpush1.bf16.msra.mxu0 %v1512
    %1669 = vmatprep.mubr.bf16.mxu0 1065369472
    %1670 = vmatmul.mubr.bf16.gmra.mrb[0].mxu0 1065369472
    %v1671 = vpop.f32.mrb[0].mxu0
    %v1672 = vadd.f32 %v1631, %v1671
    %v1673 = vpop.f32.mrb[0].mxu0
    %v1674 = vadd.f32 %v1633, %v1673
    %v1675 = vpop.f32.mrb[0].mxu0
    %v1676 = vpop.f32.mrb[0].mxu0
    %1677 = vdwg.mxu0
    %v1678 = vmul.f32 %v1130, %v1130
    %v1679 = vmul.f32 %v1131, %v1131
    %v1680 = vmul.f32 %v1132, %v1132
    %v1681 = vmul.f32 %v1133, %v1133
    %v1682 = vmul.f32 %v1134, %v1134
    %v1683 = vmul.f32 %v1135, %v1135
    %v1684 = vmul.f32 %v1136, %v1136
    %v1685 = vmul.f32 %v1137, %v1137
    %v1686 = vmul.f32 %v1138, %v1138
    %v1687 = vmul.f32 %v1139, %v1139
    %v1688 = vmul.f32 %v1140, %v1140
    %v1689 = vmul.f32 %v1141, %v1141
    %v1690 = vmul.f32 %v1142, %v1142
    %v1691 = vmul.f32 %v1143, %v1143
    %v1692 = vmul.f32 %v1144, %v1144
    %v1693 = vmul.f32 %v1145, %v1145
    %v1694 = vmul.f32 %v1146, %v1146
    %v1695 = vmul.f32 %v1147, %v1147
    %v1696 = vmul.f32 %v1148, %v1148
    %v1697 = vmul.f32 %v1149, %v1149
    %v1698 = vmul.f32 %v1150, %v1150
    %v1699 = vmul.f32 %v1151, %v1151
    %v1700 = vmul.f32 %v1152, %v1152
    %v1701 = vmul.f32 %v1153, %v1153
    %v1702 = vmul.f32 %v1154, %v1154
    %v1703 = vmul.f32 %v1155, %v1155
    %v1704 = vmul.f32 %v1156, %v1156
    %v1705 = vmul.f32 %v1157, %v1157
    %v1706 = vmul.f32 %v1158, %v1158
    %v1707 = vmul.f32 %v1159, %v1159
    %v1708 = vmul.f32 %v1160, %v1160
    %v1709 = vmul.f32 %v1161, %v1161
    %v1710 = vmul.f32 %v1162, %v1162
    %v1711 = vmul.f32 %v1163, %v1163
    %v1712 = vmul.f32 %v1164, %v1164
    %v1713 = vmul.f32 %v1165, %v1165
    %v1714 = vmul.f32 %v1166, %v1166
    %v1715 = vmul.f32 %v1167, %v1167
    %v1716 = vmul.f32 %v1168, %v1168
    %v1717 = vmul.f32 %v1169, %v1169
    %v1718 = vmul.f32 %v1170, %v1170
    %v1719 = vmul.f32 %v1171, %v1171
    %v1720 = vmul.f32 %v1172, %v1172
    %v1721 = vmul.f32 %v1173, %v1173
    %v1722 = vmul.f32 %v1174, %v1174
    %v1723 = vmul.f32 %v1175, %v1175
    %v1724 = vmul.f32 %v1176, %v1176
    %v1725 = vmul.f32 %v1177, %v1177
    %v1726 = vmul.f32 %v1178, %v1178
    %v1727 = vmul.f32 %v1179, %v1179
    %v1728 = vmul.f32 %v1180, %v1180
    %v1729 = vmul.f32 %v1181, %v1181
    %v1730 = vmul.f32 %v1182, %v1182
    %v1731 = vmul.f32 %v1183, %v1183
    %v1732 = vmul.f32 %v1184, %v1184
    %v1733 = vmul.f32 %v1185, %v1185
    %v1734 = vmul.f32 %v1186, %v1186
    %v1735 = vmul.f32 %v1187, %v1187
    %v1736 = vmul.f32 %v1188, %v1188
    %v1737 = vmul.f32 %v1189, %v1189
    %v1738 = vmul.f32 %v1190, %v1190
    %v1739 = vmul.f32 %v1191, %v1191
    %v1740 = vmul.f32 %v1192, %v1192
    %v1741 = vmul.f32 %v1193, %v1193
    %v1742 = vmul.f32 %v1194, %v1194
    %v1743 = vmul.f32 %v1195, %v1195
    %v1744 = vmul.f32 %v1196, %v1196
    %v1745 = vmul.f32 %v1197, %v1197
    %v1746 = vmul.f32 %v1198, %v1198
    %v1747 = vmul.f32 %v1199, %v1199
    %v1748 = vmul.f32 %v1200, %v1200
    %v1749 = vmul.f32 %v1201, %v1201
    %v1750 = vmul.f32 %v1202, %v1202
    %v1751 = vmul.f32 %v1203, %v1203
    %v1752 = vmul.f32 %v1204, %v1204
    %v1753 = vmul.f32 %v1205, %v1205
    %v1754 = vmul.f32 %v1206, %v1206
    %v1755 = vmul.f32 %v1207, %v1207
    %v1756 = vmul.f32 %v1208, %v1208
    %v1757 = vmul.f32 %v1209, %v1209
    %v1758 = vmul.f32 %v1210, %v1210
    %v1759 = vmul.f32 %v1211, %v1211
    %v1760 = vmul.f32 %v1212, %v1212
    %v1761 = vmul.f32 %v1213, %v1213
    %v1762 = vmul.f32 %v1214, %v1214
    %v1763 = vmul.f32 %v1215, %v1215
    %v1764 = vmul.f32 %v1216, %v1216
    %v1765 = vmul.f32 %v1217, %v1217
    %v1766 = vmul.f32 %v1218, %v1218
    %v1767 = vmul.f32 %v1219, %v1219
    %v1768 = vmul.f32 %v1220, %v1220
    %v1769 = vmul.f32 %v1221, %v1221
    %v1770 = vmul.f32 %v1222, %v1222
    %v1771 = vmul.f32 %v1223, %v1223
    %v1772 = vmul.f32 %v1224, %v1224
    %v1773 = vmul.f32 %v1225, %v1225
    %v1774 = vmul.f32 %v1226, %v1226
    %v1775 = vmul.f32 %v1227, %v1227
    %v1776 = vmul.f32 %v1228, %v1228
    %v1777 = vmul.f32 %v1229, %v1229
    %v1778 = vmul.f32 %v1230, %v1230
    %v1779 = vmul.f32 %v1231, %v1231
    %v1780 = vmul.f32 %v1232, %v1232
    %v1781 = vmul.f32 %v1233, %v1233
    %v1782 = vmul.f32 %v1234, %v1234
    %v1783 = vmul.f32 %v1235, %v1235
    %v1784 = vmul.f32 %v1236, %v1236
    %v1785 = vmul.f32 %v1237, %v1237
    %v1786 = vmul.f32 %v1238, %v1238
    %v1787 = vmul.f32 %v1239, %v1239
    %v1788 = vmul.f32 %v1240, %v1240
    %v1789 = vmul.f32 %v1241, %v1241
    %v1790 = vmul.f32 %v1242, %v1242
    %v1791 = vmul.f32 %v1243, %v1243
    %v1792 = vmul.f32 %v1244, %v1244
    %v1793 = vmul.f32 %v1245, %v1245
    %v1794 = vmul.f32 %v1246, %v1246
    %v1795 = vmul.f32 %v1247, %v1247
    %v1796 = vmul.f32 %v1248, %v1248
    %v1797 = vmul.f32 %v1249, %v1249
    %v1798 = vmul.f32 %v1250, %v1250
    %v1799 = vmul.f32 %v1251, %v1251
    %v1800 = vmul.f32 %v1252, %v1252
    %v1801 = vmul.f32 %v1253, %v1253
    %v1802 = vmul.f32 %v1254, %v1254
    %v1803 = vmul.f32 %v1255, %v1255
    %v1804 = vmul.f32 %v1256, %v1256
    %v1805 = vmul.f32 %v1257, %v1257
    %v1806 = vmul.f32 %v1258, %v1258
    %v1807 = vmul.f32 %v1259, %v1259
    %v1808 = vmul.f32 %v1260, %v1260
    %v1809 = vmul.f32 %v1261, %v1261
    %v1810 = vmul.f32 %v1262, %v1262
    %v1811 = vmul.f32 %v1263, %v1263
    %v1812 = vmul.f32 %v1264, %v1264
    %v1813 = vmul.f32 %v1265, %v1265
    %v1814 = vmul.f32 %v1266, %v1266
    %v1815 = vmul.f32 %v1267, %v1267
    %v1816 = vmul.f32 %v1268, %v1268
    %v1817 = vmul.f32 %v1269, %v1269
    %v1818 = vmul.f32 %v1270, %v1270
    %v1819 = vmul.f32 %v1271, %v1271
    %v1820 = vmul.f32 %v1272, %v1272
    %v1821 = vmul.f32 %v1273, %v1273
    %v1822 = vmul.f32 %v1274, %v1274
    %v1823 = vmul.f32 %v1275, %v1275
    %v1824 = vmul.f32 %v1276, %v1276
    %v1825 = vmul.f32 %v1277, %v1277
    %v1826 = vmul.f32 %v1278, %v1278
    %v1827 = vmul.f32 %v1279, %v1279
    %v1828 = vmul.f32 %v1280, %v1280
    %v1829 = vmul.f32 %v1281, %v1281
    %v1830 = vmul.f32 %v1282, %v1282
    %v1831 = vmul.f32 %v1283, %v1283
    %v1832 = vmul.f32 %v1284, %v1284
    %v1833 = vmul.f32 %v1285, %v1285
    %v1834 = vmul.f32 %v1286, %v1286
    %v1835 = vmul.f32 %v1287, %v1287
    %v1836 = vmul.f32 %v1288, %v1288
    %v1837 = vmul.f32 %v1289, %v1289
    %v1838 = vmul.f32 %v1290, %v1290
    %v1839 = vmul.f32 %v1291, %v1291
    %v1840 = vmul.f32 %v1292, %v1292
    %v1841 = vmul.f32 %v1293, %v1293
    %v1842 = vmul.f32 %v1294, %v1294
    %v1843 = vmul.f32 %v1295, %v1295
    %v1844 = vmul.f32 %v1296, %v1296
    %v1845 = vmul.f32 %v1297, %v1297
    %v1846 = vmul.f32 %v1298, %v1298
    %v1847 = vmul.f32 %v1299, %v1299
    %v1848 = vmul.f32 %v1300, %v1300
    %v1849 = vmul.f32 %v1301, %v1301
    %v1850 = vmul.f32 %v1302, %v1302
    %v1851 = vmul.f32 %v1303, %v1303
    %v1852 = vmul.f32 %v1304, %v1304
    %v1853 = vmul.f32 %v1305, %v1305
    %v1854 = vmul.f32 %v1306, %v1306
    %v1855 = vmul.f32 %v1307, %v1307
    %v1856 = vmul.f32 %v1308, %v1308
    %v1857 = vmul.f32 %v1309, %v1309
    %v1858 = vmul.f32 %v1310, %v1310
    %v1859 = vmul.f32 %v1311, %v1311
    %v1860 = vmul.f32 %v1312, %v1312
    %v1861 = vmul.f32 %v1313, %v1313
    %v1862 = vmul.f32 %v1314, %v1314
    %v1863 = vmul.f32 %v1315, %v1315
    %v1864 = vmul.f32 %v1316, %v1316
    %v1865 = vmul.f32 %v1317, %v1317
    %v1866 = vmul.f32 %v1318, %v1318
    %v1867 = vmul.f32 %v1319, %v1319
    %v1868 = vmul.f32 %v1320, %v1320
    %v1869 = vmul.f32 %v1321, %v1321
    %v1870 = vmul.f32 %v1322, %v1322
    %v1871 = vmul.f32 %v1323, %v1323
    %v1872 = vmul.f32 %v1324, %v1324
    %v1873 = vmul.f32 %v1325, %v1325
    %v1874 = vmul.f32 %v1326, %v1326
    %v1875 = vmul.f32 %v1327, %v1327
    %v1876 = vmul.f32 %v1328, %v1328
    %v1877 = vmul.f32 %v1329, %v1329
    %v1878 = vmul.f32 %v1330, %v1330
    %v1879 = vmul.f32 %v1331, %v1331
    %v1880 = vmul.f32 %v1332, %v1332
    %v1881 = vmul.f32 %v1333, %v1333
    %v1882 = vmul.f32 %v1334, %v1334
    %v1883 = vmul.f32 %v1335, %v1335
    %v1884 = vmul.f32 %v1336, %v1336
    %v1885 = vmul.f32 %v1337, %v1337
    %v1886 = vmul.f32 %v1338, %v1338
    %v1887 = vmul.f32 %v1339, %v1339
    %v1888 = vmul.f32 %v1340, %v1340
    %v1889 = vmul.f32 %v1341, %v1341
    %v1890 = vmul.f32 %v1342, %v1342
    %v1891 = vmul.f32 %v1343, %v1343
    %v1892 = vmul.f32 %v1344, %v1344
    %v1893 = vmul.f32 %v1345, %v1345
    %v1894 = vmul.f32 %v1346, %v1346
    %v1895 = vmul.f32 %v1347, %v1347
    %v1896 = vmul.f32 %v1348, %v1348
    %v1897 = vmul.f32 %v1349, %v1349
    %v1898 = vmul.f32 %v1350, %v1350
    %v1899 = vmul.f32 %v1351, %v1351
    %v1900 = vmul.f32 %v1352, %v1352
    %v1901 = vmul.f32 %v1353, %v1353
    %v1902 = vmul.f32 %v1354, %v1354
    %v1903 = vmul.f32 %v1355, %v1355
    %v1904 = vmul.f32 %v1356, %v1356
    %v1905 = vmul.f32 %v1357, %v1357
    %v1906 = vmul.f32 %v1358, %v1358
    %v1907 = vmul.f32 %v1359, %v1359
    %v1908 = vmul.f32 %v1360, %v1360
    %v1909 = vmul.f32 %v1361, %v1361
    %v1910 = vmul.f32 %v1362, %v1362
    %v1911 = vmul.f32 %v1363, %v1363
    %v1912 = vmul.f32 %v1364, %v1364
    %v1913 = vmul.f32 %v1365, %v1365
    %v1914 = vmul.f32 %v1366, %v1366
    %v1915 = vmul.f32 %v1367, %v1367
    %v1916 = vmul.f32 %v1368, %v1368
    %v1917 = vmul.f32 %v1369, %v1369
    %v1918 = vmul.f32 %v1370, %v1370
    %v1919 = vmul.f32 %v1371, %v1371
    %v1920 = vmul.f32 %v1372, %v1372
    %v1921 = vmul.f32 %v1373, %v1373
    %v1922 = vmul.f32 %v1374, %v1374
    %v1923 = vmul.f32 %v1375, %v1375
    %v1924 = vmul.f32 %v1376, %v1376
    %v1925 = vmul.f32 %v1377, %v1377
    %v1926 = vmul.f32 %v1378, %v1378
    %v1927 = vmul.f32 %v1379, %v1379
    %v1928 = vmul.f32 %v1380, %v1380
    %v1929 = vmul.f32 %v1381, %v1381
    %v1930 = vmul.f32 %v1382, %v1382
    %v1931 = vmul.f32 %v1383, %v1383
    %v1932 = vmul.f32 %v1384, %v1384
    %v1933 = vmul.f32 %v1385, %v1385
    %v1934 = vpack.c.bf16 %v1680, %v1678
    %v1935 = vpack.c.bf16 %v1681, %v1679
    %v1936 = vpack.c.bf16 %v1684, %v1682
    %v1937 = vpack.c.bf16 %v1685, %v1683
    %v1938 = vpack.c.bf16 %v1688, %v1686
    %v1939 = vpack.c.bf16 %v1689, %v1687
    %v1940 = vpack.c.bf16 %v1692, %v1690
    %v1941 = vpack.c.bf16 %v1693, %v1691
    %v1942 = vpack.c.bf16 %v1696, %v1694
    %v1943 = vpack.c.bf16 %v1697, %v1695
    %v1944 = vpack.c.bf16 %v1700, %v1698
    %v1945 = vpack.c.bf16 %v1701, %v1699
    %v1946 = vpack.c.bf16 %v1704, %v1702
    %v1947 = vpack.c.bf16 %v1705, %v1703
    %v1948 = vpack.c.bf16 %v1708, %v1706
    %v1949 = vpack.c.bf16 %v1709, %v1707
    %v1950 = vpack.c.bf16 %v1712, %v1710
    %v1951 = vpack.c.bf16 %v1713, %v1711
    %v1952 = vpack.c.bf16 %v1716, %v1714
    %v1953 = vpack.c.bf16 %v1717, %v1715
    %v1954 = vpack.c.bf16 %v1720, %v1718
    %v1955 = vpack.c.bf16 %v1721, %v1719
    %v1956 = vpack.c.bf16 %v1724, %v1722
    %v1957 = vpack.c.bf16 %v1725, %v1723
    %v1958 = vpack.c.bf16 %v1728, %v1726
    %v1959 = vpack.c.bf16 %v1729, %v1727
    %v1960 = vpack.c.bf16 %v1732, %v1730
    %v1961 = vpack.c.bf16 %v1733, %v1731
    %v1962 = vpack.c.bf16 %v1736, %v1734
    %v1963 = vpack.c.bf16 %v1737, %v1735
    %v1964 = vpack.c.bf16 %v1740, %v1738
    %v1965 = vpack.c.bf16 %v1741, %v1739
    %v1966 = vpack.c.bf16 %v1744, %v1742
    %v1967 = vpack.c.bf16 %v1745, %v1743
    %v1968 = vpack.c.bf16 %v1748, %v1746
    %v1969 = vpack.c.bf16 %v1749, %v1747
    %v1970 = vpack.c.bf16 %v1752, %v1750
    %v1971 = vpack.c.bf16 %v1753, %v1751
    %v1972 = vpack.c.bf16 %v1756, %v1754
    %v1973 = vpack.c.bf16 %v1757, %v1755
    %v1974 = vpack.c.bf16 %v1760, %v1758
    %v1975 = vpack.c.bf16 %v1761, %v1759
    %v1976 = vpack.c.bf16 %v1764, %v1762
    %v1977 = vpack.c.bf16 %v1765, %v1763
    %v1978 = vpack.c.bf16 %v1768, %v1766
    %v1979 = vpack.c.bf16 %v1769, %v1767
    %v1980 = vpack.c.bf16 %v1772, %v1770
    %v1981 = vpack.c.bf16 %v1773, %v1771
    %v1982 = vpack.c.bf16 %v1776, %v1774
    %v1983 = vpack.c.bf16 %v1777, %v1775
    %v1984 = vpack.c.bf16 %v1780, %v1778
    %v1985 = vpack.c.bf16 %v1781, %v1779
    %v1986 = vpack.c.bf16 %v1784, %v1782
    %v1987 = vpack.c.bf16 %v1785, %v1783
    %v1988 = vpack.c.bf16 %v1788, %v1786
    %v1989 = vpack.c.bf16 %v1789, %v1787
    %v1990 = vpack.c.bf16 %v1792, %v1790
    %v1991 = vpack.c.bf16 %v1793, %v1791
    %v1992 = vpack.c.bf16 %v1796, %v1794
    %v1993 = vpack.c.bf16 %v1797, %v1795
    %v1994 = vpack.c.bf16 %v1800, %v1798
    %v1995 = vpack.c.bf16 %v1801, %v1799
    %v1996 = vpack.c.bf16 %v1804, %v1802
    %v1997 = vpack.c.bf16 %v1805, %v1803
    %v1998 = vpack.c.bf16 %v1808, %v1806
    %v1999 = vpack.c.bf16 %v1809, %v1807
    %v2000 = vpack.c.bf16 %v1812, %v1810
    %v2001 = vpack.c.bf16 %v1813, %v1811
    %v2002 = vpack.c.bf16 %v1816, %v1814
    %v2003 = vpack.c.bf16 %v1817, %v1815
    %v2004 = vpack.c.bf16 %v1820, %v1818
    %v2005 = vpack.c.bf16 %v1821, %v1819
    %v2006 = vpack.c.bf16 %v1824, %v1822
    %v2007 = vpack.c.bf16 %v1825, %v1823
    %v2008 = vpack.c.bf16 %v1828, %v1826
    %v2009 = vpack.c.bf16 %v1829, %v1827
    %v2010 = vpack.c.bf16 %v1832, %v1830
    %v2011 = vpack.c.bf16 %v1833, %v1831
    %v2012 = vpack.c.bf16 %v1836, %v1834
    %v2013 = vpack.c.bf16 %v1837, %v1835
    %v2014 = vpack.c.bf16 %v1840, %v1838
    %v2015 = vpack.c.bf16 %v1841, %v1839
    %v2016 = vpack.c.bf16 %v1844, %v1842
    %v2017 = vpack.c.bf16 %v1845, %v1843
    %v2018 = vpack.c.bf16 %v1848, %v1846
    %v2019 = vpack.c.bf16 %v1849, %v1847
    %v2020 = vpack.c.bf16 %v1852, %v1850
    %v2021 = vpack.c.bf16 %v1853, %v1851
    %v2022 = vpack.c.bf16 %v1856, %v1854
    %v2023 = vpack.c.bf16 %v1857, %v1855
    %v2024 = vpack.c.bf16 %v1860, %v1858
    %v2025 = vpack.c.bf16 %v1861, %v1859
    %v2026 = vpack.c.bf16 %v1864, %v1862
    %v2027 = vpack.c.bf16 %v1865, %v1863
    %v2028 = vpack.c.bf16 %v1868, %v1866
    %v2029 = vpack.c.bf16 %v1869, %v1867
    %v2030 = vpack.c.bf16 %v1872, %v1870
    %v2031 = vpack.c.bf16 %v1873, %v1871
    %v2032 = vpack.c.bf16 %v1876, %v1874
    %v2033 = vpack.c.bf16 %v1877, %v1875
    %v2034 = vpack.c.bf16 %v1880, %v1878
    %v2035 = vpack.c.bf16 %v1881, %v1879
    %v2036 = vpack.c.bf16 %v1884, %v1882
    %v2037 = vpack.c.bf16 %v1885, %v1883
    %v2038 = vpack.c.bf16 %v1888, %v1886
    %v2039 = vpack.c.bf16 %v1889, %v1887
    %v2040 = vpack.c.bf16 %v1892, %v1890
    %v2041 = vpack.c.bf16 %v1893, %v1891
    %v2042 = vpack.c.bf16 %v1896, %v1894
    %v2043 = vpack.c.bf16 %v1897, %v1895
    %v2044 = vpack.c.bf16 %v1900, %v1898
    %v2045 = vpack.c.bf16 %v1901, %v1899
    %v2046 = vpack.c.bf16 %v1904, %v1902
    %v2047 = vpack.c.bf16 %v1905, %v1903
    %v2048 = vpack.c.bf16 %v1908, %v1906
    %v2049 = vpack.c.bf16 %v1909, %v1907
    %v2050 = vpack.c.bf16 %v1912, %v1910
    %v2051 = vpack.c.bf16 %v1913, %v1911
    %v2052 = vpack.c.bf16 %v1916, %v1914
    %v2053 = vpack.c.bf16 %v1917, %v1915
    %v2054 = vpack.c.bf16 %v1920, %v1918
    %v2055 = vpack.c.bf16 %v1921, %v1919
    %v2056 = vpack.c.bf16 %v1924, %v1922
    %v2057 = vpack.c.bf16 %v1925, %v1923
    %v2058 = vpack.c.bf16 %v1928, %v1926
    %v2059 = vpack.c.bf16 %v1929, %v1927
    %v2060 = vpack.c.bf16 %v1932, %v1930
    %v2061 = vpack.c.bf16 %v1933, %v1931
    %2062 = vmatprep.subr.bf16.mxu0 %v1935
    %2063 = vmatpush1.bf16.msra.mxu0 %v1934
    %2064 = vmatprep.subr.bf16.mxu0 %v1937
    %2065 = vmatpush1.bf16.msra.mxu0 %v1936
    %2066 = vmatprep.subr.bf16.mxu0 %v1939
    %2067 = vmatpush1.bf16.msra.mxu0 %v1938
    %2068 = vmatprep.subr.bf16.mxu0 %v1941
    %2069 = vmatpush1.bf16.msra.mxu0 %v1940
    %2070 = vmatprep.subr.bf16.mxu0 %v1943
    %2071 = vmatpush1.bf16.msra.mxu0 %v1942
    %2072 = vmatprep.subr.bf16.mxu0 %v1945
    %2073 = vmatpush1.bf16.msra.mxu0 %v1944
    %2074 = vmatprep.subr.bf16.mxu0 %v1947
    %2075 = vmatpush1.bf16.msra.mxu0 %v1946
    %2076 = vmatprep.subr.bf16.mxu0 %v1949
    %2077 = vmatpush1.bf16.msra.mxu0 %v1948
    %2078 = vmatprep.subr.bf16.mxu0 %v1951
    %2079 = vmatpush1.bf16.msra.mxu0 %v1950
    %2080 = vmatprep.subr.bf16.mxu0 %v1953
    %2081 = vmatpush1.bf16.msra.mxu0 %v1952
    %2082 = vmatprep.subr.bf16.mxu0 %v1955
    %2083 = vmatpush1.bf16.msra.mxu0 %v1954
    %2084 = vmatprep.subr.bf16.mxu0 %v1957
    %2085 = vmatpush1.bf16.msra.mxu0 %v1956
    %2086 = vmatprep.subr.bf16.mxu0 %v1959
    %2087 = vmatpush1.bf16.msra.mxu0 %v1958
    %2088 = vmatprep.subr.bf16.mxu0 %v1961
    %2089 = vmatpush1.bf16.msra.mxu0 %v1960
    %2090 = vmatprep.subr.bf16.mxu0 %v1963
    %2091 = vmatpush1.bf16.msra.mxu0 %v1962
    %2092 = vmatprep.subr.bf16.mxu0 %v1965
    %2093 = vmatpush1.bf16.msra.mxu0 %v1964
    %2094 = vmatprep.mubr.bf16.mxu0 1065369472
    %2095 = vmatmul.mubr.bf16.gmra.mrb[0].mxu0 1065369472
    %v2096 = vpop.f32.mrb[0].mxu0
    %v2097 = vadd.f32 0.0, %v2096
    %v2098 = vpop.f32.mrb[0].mxu0
    %v2099 = vadd.f32 0.0, %v2098
    %v2100 = vpop.f32.mrb[0].mxu0
    %v2101 = vpop.f32.mrb[0].mxu0
    %2102 = vdwg.mxu0
    %2103 = vmatprep.subr.bf16.mxu0 %v1967
    %2104 = vmatpush1.bf16.msra.mxu0 %v1966
    %2105 = vmatprep.subr.bf16.mxu0 %v1969
    %2106 = vmatpush1.bf16.msra.mxu0 %v1968
    %2107 = vmatprep.subr.bf16.mxu0 %v1971
    %2108 = vmatpush1.bf16.msra.mxu0 %v1970
    %2109 = vmatprep.subr.bf16.mxu0 %v1973
    %2110 = vmatpush1.bf16.msra.mxu0 %v1972
    %2111 = vmatprep.subr.bf16.mxu0 %v1975
    %2112 = vmatpush1.bf16.msra.mxu0 %v1974
    %2113 = vmatprep.subr.bf16.mxu0 %v1977
    %2114 = vmatpush1.bf16.msra.mxu0 %v1976
    %2115 = vmatprep.subr.bf16.mxu0 %v1979
    %2116 = vmatpush1.bf16.msra.mxu0 %v1978
    %2117 = vmatprep.subr.bf16.mxu0 %v1981
    %2118 = vmatpush1.bf16.msra.mxu0 %v1980
    %2119 = vmatprep.subr.bf16.mxu0 %v1983
    %2120 = vmatpush1.bf16.msra.mxu0 %v1982
    %2121 = vmatprep.subr.bf16.mxu0 %v1985
    %2122 = vmatpush1.bf16.msra.mxu0 %v1984
    %2123 = vmatprep.subr.bf16.mxu0 %v1987
    %2124 = vmatpush1.bf16.msra.mxu0 %v1986
    %2125 = vmatprep.subr.bf16.mxu0 %v1989
    %2126 = vmatpush1.bf16.msra.mxu0 %v1988
    %2127 = vmatprep.subr.bf16.mxu0 %v1991
    %2128 = vmatpush1.bf16.msra.mxu0 %v1990
    %2129 = vmatprep.subr.bf16.mxu0 %v1993
    %2130 = vmatpush1.bf16.msra.mxu0 %v1992
    %2131 = vmatprep.subr.bf16.mxu0 %v1995
    %2132 = vmatpush1.bf16.msra.mxu0 %v1994
    %2133 = vmatprep.subr.bf16.mxu0 %v1997
    %2134 = vmatpush1.bf16.msra.mxu0 %v1996
    %2135 = vmatprep.mubr.bf16.mxu0 1065369472
    %2136 = vmatmul.mubr.bf16.gmra.mrb[0].mxu0 1065369472
    %v2137 = vpop.f32.mrb[0].mxu0
    %v2138 = vadd.f32 %v2097, %v2137
    %v2139 = vpop.f32.mrb[0].mxu0
    %v2140 = vadd.f32 %v2099, %v2139
    %v2141 = vpop.f32.mrb[0].mxu0
    %v2142 = vpop.f32.mrb[0].mxu0
    %2143 = vdwg.mxu0
    %2144 = vmatprep.subr.bf16.mxu0 %v1999
    %2145 = vmatpush1.bf16.msra.mxu0 %v1998
    %2146 = vmatprep.subr.bf16.mxu0 %v2001
    %2147 = vmatpush1.bf16.msra.mxu0 %v2000
    %2148 = vmatprep.subr.bf16.mxu0 %v2003
    %2149 = vmatpush1.bf16.msra.mxu0 %v2002
    %2150 = vmatprep.subr.bf16.mxu0 %v2005
    %2151 = vmatpush1.bf16.msra.mxu0 %v2004
    %2152 = vmatprep.subr.bf16.mxu0 %v2007
    %2153 = vmatpush1.bf16.msra.mxu0 %v2006
    %2154 = vmatprep.subr.bf16.mxu0 %v2009
    %2155 = vmatpush1.bf16.msra.mxu0 %v2008
    %2156 = vmatprep.subr.bf16.mxu0 %v2011
    %2157 = vmatpush1.bf16.msra.mxu0 %v2010
    %2158 = vmatprep.subr.bf16.mxu0 %v2013
    %2159 = vmatpush1.bf16.msra.mxu0 %v2012
    %2160 = vmatprep.subr.bf16.mxu0 %v2015
    %2161 = vmatpush1.bf16.msra.mxu0 %v2014
    %2162 = vmatprep.subr.bf16.mxu0 %v2017
    %2163 = vmatpush1.bf16.msra.mxu0 %v2016
    %2164 = vmatprep.subr.bf16.mxu0 %v2019
    %2165 = vmatpush1.bf16.msra.mxu0 %v2018
    %2166 = vmatprep.subr.bf16.mxu0 %v2021
    %2167 = vmatpush1.bf16.msra.mxu0 %v2020
    %2168 = vmatprep.subr.bf16.mxu0 %v2023
    %2169 = vmatpush1.bf16.msra.mxu0 %v2022
    %2170 = vmatprep.subr.bf16.mxu0 %v2025
    %2171 = vmatpush1.bf16.msra.mxu0 %v2024
    %2172 = vmatprep.subr.bf16.mxu0 %v2027
    %2173 = vmatpush1.bf16.msra.mxu0 %v2026
    %2174 = vmatprep.subr.bf16.mxu0 %v2029
    %2175 = vmatpush1.bf16.msra.mxu0 %v2028
    %2176 = vmatprep.mubr.bf16.mxu0 1065369472
    %2177 = vmatmul.mubr.bf16.gmra.mrb[0].mxu0 1065369472
    %v2178 = vpop.f32.mrb[0].mxu0
    %v2179 = vadd.f32 %v2138, %v2178
    %v2180 = vpop.f32.mrb[0].mxu0
    %v2181 = vadd.f32 %v2140, %v2180
    %v2182 = vpop.f32.mrb[0].mxu0
    %v2183 = vpop.f32.mrb[0].mxu0
    %2184 = vdwg.mxu0
    %2185 = vmatprep.subr.bf16.mxu0 %v2031
    %2186 = vmatpush1.bf16.msra.mxu0 %v2030
    %2187 = vmatprep.subr.bf16.mxu0 %v2033
    %2188 = vmatpush1.bf16.msra.mxu0 %v2032
    %2189 = vmatprep.subr.bf16.mxu0 %v2035
    %2190 = vmatpush1.bf16.msra.mxu0 %v2034
    %2191 = vmatprep.subr.bf16.mxu0 %v2037
    %2192 = vmatpush1.bf16.msra.mxu0 %v2036
    %2193 = vmatprep.subr.bf16.mxu0 %v2039
    %2194 = vmatpush1.bf16.msra.mxu0 %v2038
    %2195 = vmatprep.subr.bf16.mxu0 %v2041
    %2196 = vmatpush1.bf16.msra.mxu0 %v2040
    %2197 = vmatprep.subr.bf16.mxu0 %v2043
    %2198 = vmatpush1.bf16.msra.mxu0 %v2042
    %2199 = vmatprep.subr.bf16.mxu0 %v2045
    %2200 = vmatpush1.bf16.msra.mxu0 %v2044
    %2201 = vmatprep.subr.bf16.mxu0 %v2047
    %2202 = vmatpush1.bf16.msra.mxu0 %v2046
    %2203 = vmatprep.subr.bf16.mxu0 %v2049
    %2204 = vmatpush1.bf16.msra.mxu0 %v2048
    %2205 = vmatprep.subr.bf16.mxu0 %v2051
    %2206 = vmatpush1.bf16.msra.mxu0 %v2050
    %2207 = vmatprep.subr.bf16.mxu0 %v2053
    %2208 = vmatpush1.bf16.msra.mxu0 %v2052
    %2209 = vmatprep.subr.bf16.mxu0 %v2055
    %2210 = vmatpush1.bf16.msra.mxu0 %v2054
    %2211 = vmatprep.subr.bf16.mxu0 %v2057
    %2212 = vmatpush1.bf16.msra.mxu0 %v2056
    %2213 = vmatprep.subr.bf16.mxu0 %v2059
    %2214 = vmatpush1.bf16.msra.mxu0 %v2058
    %2215 = vmatprep.subr.bf16.mxu0 %v2061
    %2216 = vmatpush1.bf16.msra.mxu0 %v2060
    %2217 = vmatprep.mubr.bf16.mxu0 1065369472
    %2218 = vmatmul.mubr.bf16.gmra.mrb[0].mxu0 1065369472
    %v2219 = vpop.f32.mrb[0].mxu0
    %v2220 = vadd.f32 %v2179, %v2219
    %v2221 = vpop.f32.mrb[0].mxu0
    %v2222 = vadd.f32 %v2181, %v2221
    %v2223 = vpop.f32.mrb[0].mxu0
    %v2224 = vpop.f32.mrb[0].mxu0
    %2225 = vdwg.mxu0
    %v2226 = vmul.f32 %v1672, 0.0009765625
    %v2227 = vmul.f32 %v1674, 0.0009765625
    %v2228 = vmul.f32 %v2220, 0.0009765625
    %v2229 = vmul.f32 %v2222, 0.0009765625
    %v2230 = vmul.f32 %v2226, %v2226
    %v2231 = vmul.f32 %v2227, %v2227
    %v2232 = vsub.f32 %v2228, %v2230
    %v2233 = vsub.f32 %v2229, %v2231
    %v2234 = vld [vmem:[%s3] sm:$0x3]
    %v2235 = vadd.f32 %v2232, 1e-05
    %v2236 = vadd.f32 %v2233, 1e-05
    %v2237 = vrsqrt.pop %v2235
    %v2238 = vrsqrt.pop %v2236
    %v2241 = vcombine.low %v2237, %v2238
    %v2243 = vunpack.c.l.s4 1966171168
    %v2244 = vunpack.c.0.s8 %v2243
    %v2245 = vlaneseq
    %v2246 = vshrl.u32 %v2245, 7
    %v2247 = vsub.s32 %v2244, %v2246
    %v2248 = vrot.slane %v2241, %v2247
    %v2250 = vunpack.c.l.s4 1966171168
    %v2251 = vunpack.c.0.s8 %v2250
    %v2252 = vlaneseq
    %v2253 = vshrl.u32 %v2252, 7
    %v2254 = vsub.s32 %v2251, %v2253
    %v2255 = vrot.slane %v2248, %v2254
    %v2257 = vmul.f32 %v2234, %v2255
    %v2258 = vld [vmem:[%s4] sm:$0x3]
    %v2260 = vlaneseq
    %v2261 = vshrl.u32 %v2260, 7
    %v2262 = vsub.s32 0, %v2261
    %v2263 = vrot.slane %v2257, %v2262
    %v2264 = vlaneseq
    %v2265 = vshrl.u32 %v2264, 7
    %v2266 = vsub.s32 1, %v2265
    %v2267 = vrot.slane %v2257, %v2266
    %v2270 = vmul.f32 %v2226, %v2263
    %v2271 = vmul.f32 %v2227, %v2267
    %v2274 = vcombine.low %v2270, %v2271
    %v2276 = vunpack.c.l.s4 1966171168
    %v2277 = vunpack.c.0.s8 %v2276
    %v2278 = vlaneseq
    %v2279 = vshrl.u32 %v2278, 7
    %v2280 = vsub.s32 %v2277, %v2279
    %v2281 = vrot.slane %v2274, %v2280
    %v2283 = vunpack.c.l.s4 1966171168
    %v2284 = vunpack.c.0.s8 %v2283
    %v2285 = vlaneseq
    %v2286 = vshrl.u32 %v2285, 7
    %v2287 = vsub.s32 %v2284, %v2286
    %v2288 = vrot.slane %v2281, %v2287
    %v2290 = vsub.f32 %v2258, %v2288
    %v2291 = vmul.f32 %v1130, %v2263
    %v2292 = vmul.f32 %v1131, %v2267
    %v2293 = vmul.f32 %v1132, %v2263
    %v2294 = vmul.f32 %v1133, %v2267
    %v2295 = vmul.f32 %v1134, %v2263
    %v2296 = vmul.f32 %v1135, %v2267
    %v2297 = vmul.f32 %v1136, %v2263
    %v2298 = vmul.f32 %v1137, %v2267
    %v2299 = vmul.f32 %v1138, %v2263
    %v2300 = vmul.f32 %v1139, %v2267
    %v2301 = vmul.f32 %v1140, %v2263
    %v2302 = vmul.f32 %v1141, %v2267
    %v2303 = vmul.f32 %v1142, %v2263
    %v2304 = vmul.f32 %v1143, %v2267
    %v2305 = vmul.f32 %v1144, %v2263
    %v2306 = vmul.f32 %v1145, %v2267
    %v2307 = vmul.f32 %v1146, %v2263
    %v2308 = vmul.f32 %v1147, %v2267
    %v2309 = vmul.f32 %v1148, %v2263
    %v2310 = vmul.f32 %v1149, %v2267
    %v2311 = vmul.f32 %v1150, %v2263
    %v2312 = vmul.f32 %v1151, %v2267
    %v2313 = vmul.f32 %v1152, %v2263
    %v2314 = vmul.f32 %v1153, %v2267
    %v2315 = vmul.f32 %v1154, %v2263
    %v2316 = vmul.f32 %v1155, %v2267
    %v2317 = vmul.f32 %v1156, %v2263
    %v2318 = vmul.f32 %v1157, %v2267
    %v2319 = vmul.f32 %v1158, %v2263
    %v2320 = vmul.f32 %v1159, %v2267
    %v2321 = vmul.f32 %v1160, %v2263
    %v2322 = vmul.f32 %v1161, %v2267
    %v2323 = vmul.f32 %v1162, %v2263
    %v2324 = vmul.f32 %v1163, %v2267
    %v2325 = vmul.f32 %v1164, %v2263
    %v2326 = vmul.f32 %v1165, %v2267
    %v2327 = vmul.f32 %v1166, %v2263
    %v2328 = vmul.f32 %v1167, %v2267
    %v2329 = vmul.f32 %v1168, %v2263
    %v2330 = vmul.f32 %v1169, %v2267
    %v2331 = vmul.f32 %v1170, %v2263
    %v2332 = vmul.f32 %v1171, %v2267
    %v2333 = vmul.f32 %v1172, %v2263
    %v2334 = vmul.f32 %v1173, %v2267
    %v2335 = vmul.f32 %v1174, %v2263
    %v2336 = vmul.f32 %v1175, %v2267
    %v2337 = vmul.f32 %v1176, %v2263
    %v2338 = vmul.f32 %v1177, %v2267
    %v2339 = vmul.f32 %v1178, %v2263
    %v2340 = vmul.f32 %v1179, %v2267
    %v2341 = vmul.f32 %v1180, %v2263
    %v2342 = vmul.f32 %v1181, %v2267
    %v2343 = vmul.f32 %v1182, %v2263
    %v2344 = vmul.f32 %v1183, %v2267
    %v2345 = vmul.f32 %v1184, %v2263
    %v2346 = vmul.f32 %v1185, %v2267
    %v2347 = vmul.f32 %v1186, %v2263
    %v2348 = vmul.f32 %v1187, %v2267
    %v2349 = vmul.f32 %v1188, %v2263
    %v2350 = vmul.f32 %v1189, %v2267
    %v2351 = vmul.f32 %v1190, %v2263
    %v2352 = vmul.f32 %v1191, %v2267
    %v2353 = vmul.f32 %v1192, %v2263
    %v2354 = vmul.f32 %v1193, %v2267
    %v2355 = vmul.f32 %v1194, %v2263
    %v2356 = vmul.f32 %v1195, %v2267
    %v2357 = vmul.f32 %v1196, %v2263
    %v2358 = vmul.f32 %v1197, %v2267
    %v2359 = vmul.f32 %v1198, %v2263
    %v2360 = vmul.f32 %v1199, %v2267
    %v2361 = vmul.f32 %v1200, %v2263
    %v2362 = vmul.f32 %v1201, %v2267
    %v2363 = vmul.f32 %v1202, %v2263
    %v2364 = vmul.f32 %v1203, %v2267
    %v2365 = vmul.f32 %v1204, %v2263
    %v2366 = vmul.f32 %v1205, %v2267
    %v2367 = vmul.f32 %v1206, %v2263
    %v2368 = vmul.f32 %v1207, %v2267
    %v2369 = vmul.f32 %v1208, %v2263
    %v2370 = vmul.f32 %v1209, %v2267
    %v2371 = vmul.f32 %v1210, %v2263
    %v2372 = vmul.f32 %v1211, %v2267
    %v2373 = vmul.f32 %v1212, %v2263
    %v2374 = vmul.f32 %v1213, %v2267
    %v2375 = vmul.f32 %v1214, %v2263
    %v2376 = vmul.f32 %v1215, %v2267
    %v2377 = vmul.f32 %v1216, %v2263
    %v2378 = vmul.f32 %v1217, %v2267
    %v2379 = vmul.f32 %v1218, %v2263
    %v2380 = vmul.f32 %v1219, %v2267
    %v2381 = vmul.f32 %v1220, %v2263
    %v2382 = vmul.f32 %v1221, %v2267
    %v2383 = vmul.f32 %v1222, %v2263
    %v2384 = vmul.f32 %v1223, %v2267
    %v2385 = vmul.f32 %v1224, %v2263
    %v2386 = vmul.f32 %v1225, %v2267
    %v2387 = vmul.f32 %v1226, %v2263
    %v2388 = vmul.f32 %v1227, %v2267
    %v2389 = vmul.f32 %v1228, %v2263
    %v2390 = vmul.f32 %v1229, %v2267
    %v2391 = vmul.f32 %v1230, %v2263
    %v2392 = vmul.f32 %v1231, %v2267
    %v2393 = vmul.f32 %v1232, %v2263
    %v2394 = vmul.f32 %v1233, %v2267
    %v2395 = vmul.f32 %v1234, %v2263
    %v2396 = vmul.f32 %v1235, %v2267
    %v2397 = vmul.f32 %v1236, %v2263
    %v2398 = vmul.f32 %v1237, %v2267
    %v2399 = vmul.f32 %v1238, %v2263
    %v2400 = vmul.f32 %v1239, %v2267
    %v2401 = vmul.f32 %v1240, %v2263
    %v2402 = vmul.f32 %v1241, %v2267
    %v2403 = vmul.f32 %v1242, %v2263
    %v2404 = vmul.f32 %v1243, %v2267
    %v2405 = vmul.f32 %v1244, %v2263
    %v2406 = vmul.f32 %v1245, %v2267
    %v2407 = vmul.f32 %v1246, %v2263
    %v2408 = vmul.f32 %v1247, %v2267
    %v2409 = vmul.f32 %v1248, %v2263
    %v2410 = vmul.f32 %v1249, %v2267
    %v2411 = vmul.f32 %v1250, %v2263
    %v2412 = vmul.f32 %v1251, %v2267
    %v2413 = vmul.f32 %v1252, %v2263
    %v2414 = vmul.f32 %v1253, %v2267
    %v2415 = vmul.f32 %v1254, %v2263
    %v2416 = vmul.f32 %v1255, %v2267
    %v2417 = vmul.f32 %v1256, %v2263
    %v2418 = vmul.f32 %v1257, %v2267
    %v2419 = vmul.f32 %v1258, %v2263
    %v2420 = vmul.f32 %v1259, %v2267
    %v2421 = vmul.f32 %v1260, %v2263
    %v2422 = vmul.f32 %v1261, %v2267
    %v2423 = vmul.f32 %v1262, %v2263
    %v2424 = vmul.f32 %v1263, %v2267
    %v2425 = vmul.f32 %v1264, %v2263
    %v2426 = vmul.f32 %v1265, %v2267
    %v2427 = vmul.f32 %v1266, %v2263
    %v2428 = vmul.f32 %v1267, %v2267
    %v2429 = vmul.f32 %v1268, %v2263
    %v2430 = vmul.f32 %v1269, %v2267
    %v2431 = vmul.f32 %v1270, %v2263
    %v2432 = vmul.f32 %v1271, %v2267
    %v2433 = vmul.f32 %v1272, %v2263
    %v2434 = vmul.f32 %v1273, %v2267
    %v2435 = vmul.f32 %v1274, %v2263
    %v2436 = vmul.f32 %v1275, %v2267
    %v2437 = vmul.f32 %v1276, %v2263
    %v2438 = vmul.f32 %v1277, %v2267
    %v2439 = vmul.f32 %v1278, %v2263
    %v2440 = vmul.f32 %v1279, %v2267
    %v2441 = vmul.f32 %v1280, %v2263
    %v2442 = vmul.f32 %v1281, %v2267
    %v2443 = vmul.f32 %v1282, %v2263
    %v2444 = vmul.f32 %v1283, %v2267
    %v2445 = vmul.f32 %v1284, %v2263
    %v2446 = vmul.f32 %v1285, %v2267
    %v2447 = vmul.f32 %v1286, %v2263
    %v2448 = vmul.f32 %v1287, %v2267
    %v2449 = vmul.f32 %v1288, %v2263
    %v2450 = vmul.f32 %v1289, %v2267
    %v2451 = vmul.f32 %v1290, %v2263
    %v2452 = vmul.f32 %v1291, %v2267
    %v2453 = vmul.f32 %v1292, %v2263
    %v2454 = vmul.f32 %v1293, %v2267
    %v2455 = vmul.f32 %v1294, %v2263
    %v2456 = vmul.f32 %v1295, %v2267
    %v2457 = vmul.f32 %v1296, %v2263
    %v2458 = vmul.f32 %v1297, %v2267
    %v2459 = vmul.f32 %v1298, %v2263
    %v2460 = vmul.f32 %v1299, %v2267
    %v2461 = vmul.f32 %v1300, %v2263
    %v2462 = vmul.f32 %v1301, %v2267
    %v2463 = vmul.f32 %v1302, %v2263
    %v2464 = vmul.f32 %v1303, %v2267
    %v2465 = vmul.f32 %v1304, %v2263
    %v2466 = vmul.f32 %v1305, %v2267
    %v2467 = vmul.f32 %v1306, %v2263
    %v2468 = vmul.f32 %v1307, %v2267
    %v2469 = vmul.f32 %v1308, %v2263
    %v2470 = vmul.f32 %v1309, %v2267
    %v2471 = vmul.f32 %v1310, %v2263
    %v2472 = vmul.f32 %v1311, %v2267
    %v2473 = vmul.f32 %v1312, %v2263
    %v2474 = vmul.f32 %v1313, %v2267
    %v2475 = vmul.f32 %v1314, %v2263
    %v2476 = vmul.f32 %v1315, %v2267
    %v2477 = vmul.f32 %v1316, %v2263
    %v2478 = vmul.f32 %v1317, %v2267
    %v2479 = vmul.f32 %v1318, %v2263
    %v2480 = vmul.f32 %v1319, %v2267
    %v2481 = vmul.f32 %v1320, %v2263
    %v2482 = vmul.f32 %v1321, %v2267
    %v2483 = vmul.f32 %v1322, %v2263
    %v2484 = vmul.f32 %v1323, %v2267
    %v2485 = vmul.f32 %v1324, %v2263
    %v2486 = vmul.f32 %v1325, %v2267
    %v2487 = vmul.f32 %v1326, %v2263
    %v2488 = vmul.f32 %v1327, %v2267
    %v2489 = vmul.f32 %v1328, %v2263
    %v2490 = vmul.f32 %v1329, %v2267
    %v2491 = vmul.f32 %v1330, %v2263
    %v2492 = vmul.f32 %v1331, %v2267
    %v2493 = vmul.f32 %v1332, %v2263
    %v2494 = vmul.f32 %v1333, %v2267
    %v2495 = vmul.f32 %v1334, %v2263
    %v2496 = vmul.f32 %v1335, %v2267
    %v2497 = vmul.f32 %v1336, %v2263
    %v2498 = vmul.f32 %v1337, %v2267
    %v2499 = vmul.f32 %v1338, %v2263
    %v2500 = vmul.f32 %v1339, %v2267
    %v2501 = vmul.f32 %v1340, %v2263
    %v2502 = vmul.f32 %v1341, %v2267
    %v2503 = vmul.f32 %v1342, %v2263
    %v2504 = vmul.f32 %v1343, %v2267
    %v2505 = vmul.f32 %v1344, %v2263
    %v2506 = vmul.f32 %v1345, %v2267
    %v2507 = vmul.f32 %v1346, %v2263
    %v2508 = vmul.f32 %v1347, %v2267
    %v2509 = vmul.f32 %v1348, %v2263
    %v2510 = vmul.f32 %v1349, %v2267
    %v2511 = vmul.f32 %v1350, %v2263
    %v2512 = vmul.f32 %v1351, %v2267
    %v2513 = vmul.f32 %v1352, %v2263
    %v2514 = vmul.f32 %v1353, %v2267
    %v2515 = vmul.f32 %v1354, %v2263
    %v2516 = vmul.f32 %v1355, %v2267
    %v2517 = vmul.f32 %v1356, %v2263
    %v2518 = vmul.f32 %v1357, %v2267
    %v2519 = vmul.f32 %v1358, %v2263
    %v2520 = vmul.f32 %v1359, %v2267
    %v2521 = vmul.f32 %v1360, %v2263
    %v2522 = vmul.f32 %v1361, %v2267
    %v2523 = vmul.f32 %v1362, %v2263
    %v2524 = vmul.f32 %v1363, %v2267
    %v2525 = vmul.f32 %v1364, %v2263
    %v2526 = vmul.f32 %v1365, %v2267
    %v2527 = vmul.f32 %v1366, %v2263
    %v2528 = vmul.f32 %v1367, %v2267
    %v2529 = vmul.f32 %v1368, %v2263
    %v2530 = vmul.f32 %v1369, %v2267
    %v2531 = vmul.f32 %v1370, %v2263
    %v2532 = vmul.f32 %v1371, %v2267
    %v2533 = vmul.f32 %v1372, %v2263
    %v2534 = vmul.f32 %v1373, %v2267
    %v2535 = vmul.f32 %v1374, %v2263
    %v2536 = vmul.f32 %v1375, %v2267
    %v2537 = vmul.f32 %v1376, %v2263
    %v2538 = vmul.f32 %v1377, %v2267
    %v2539 = vmul.f32 %v1378, %v2263
    %v2540 = vmul.f32 %v1379, %v2267
    %v2541 = vmul.f32 %v1380, %v2263
    %v2542 = vmul.f32 %v1381, %v2267
    %v2543 = vmul.f32 %v1382, %v2263
    %v2544 = vmul.f32 %v1383, %v2267
    %v2545 = vmul.f32 %v1384, %v2263
    %v2546 = vmul.f32 %v1385, %v2267
    %v2548 = vlaneseq
    %v2549 = vshrl.u32 %v2548, 7
    %v2550 = vsub.s32 0, %v2549
    %v2551 = vrot.slane %v2290, %v2550
    %v2552 = vlaneseq
    %v2553 = vshrl.u32 %v2552, 7
    %v2554 = vsub.s32 1, %v2553
    %v2555 = vrot.slane %v2290, %v2554
    %v2558 = vadd.f32 %v2291, %v2551
    %v2559 = vadd.f32 %v2292, %v2555
    %v2560 = vadd.f32 %v2293, %v2551
    %v2561 = vadd.f32 %v2294, %v2555
    %v2562 = vadd.f32 %v2295, %v2551
    %v2563 = vadd.f32 %v2296, %v2555
    %v2564 = vadd.f32 %v2297, %v2551
    %v2565 = vadd.f32 %v2298, %v2555
    %v2566 = vadd.f32 %v2299, %v2551
    %v2567 = vadd.f32 %v2300, %v2555
    %v2568 = vadd.f32 %v2301, %v2551
    %v2569 = vadd.f32 %v2302, %v2555
    %v2570 = vadd.f32 %v2303, %v2551
    %v2571 = vadd.f32 %v2304, %v2555
    %v2572 = vadd.f32 %v2305, %v2551
    %v2573 = vadd.f32 %v2306, %v2555
    %v2574 = vadd.f32 %v2307, %v2551
    %v2575 = vadd.f32 %v2308, %v2555
    %v2576 = vadd.f32 %v2309, %v2551
    %v2577 = vadd.f32 %v2310, %v2555
    %v2578 = vadd.f32 %v2311, %v2551
    %v2579 = vadd.f32 %v2312, %v2555
    %v2580 = vadd.f32 %v2313, %v2551
    %v2581 = vadd.f32 %v2314, %v2555
    %v2582 = vadd.f32 %v2315, %v2551
    %v2583 = vadd.f32 %v2316, %v2555
    %v2584 = vadd.f32 %v2317, %v2551
    %v2585 = vadd.f32 %v2318, %v2555
    %v2586 = vadd.f32 %v2319, %v2551
    %v2587 = vadd.f32 %v2320, %v2555
    %v2588 = vadd.f32 %v2321, %v2551
    %v2589 = vadd.f32 %v2322, %v2555
    %v2590 = vadd.f32 %v2323, %v2551
    %v2591 = vadd.f32 %v2324, %v2555
    %v2592 = vadd.f32 %v2325, %v2551
    %v2593 = vadd.f32 %v2326, %v2555
    %v2594 = vadd.f32 %v2327, %v2551
    %v2595 = vadd.f32 %v2328, %v2555
    %v2596 = vadd.f32 %v2329, %v2551
    %v2597 = vadd.f32 %v2330, %v2555
    %v2598 = vadd.f32 %v2331, %v2551
    %v2599 = vadd.f32 %v2332, %v2555
    %v2600 = vadd.f32 %v2333, %v2551
    %v2601 = vadd.f32 %v2334, %v2555
    %v2602 = vadd.f32 %v2335, %v2551
    %v2603 = vadd.f32 %v2336, %v2555
    %v2604 = vadd.f32 %v2337, %v2551
    %v2605 = vadd.f32 %v2338, %v2555
    %v2606 = vadd.f32 %v2339, %v2551
    %v2607 = vadd.f32 %v2340, %v2555
    %v2608 = vadd.f32 %v2341, %v2551
    %v2609 = vadd.f32 %v2342, %v2555
    %v2610 = vadd.f32 %v2343, %v2551
    %v2611 = vadd.f32 %v2344, %v2555
    %v2612 = vadd.f32 %v2345, %v2551
    %v2613 = vadd.f32 %v2346, %v2555
    %v2614 = vadd.f32 %v2347, %v2551
    %v2615 = vadd.f32 %v2348, %v2555
    %v2616 = vadd.f32 %v2349, %v2551
    %v2617 = vadd.f32 %v2350, %v2555
    %v2618 = vadd.f32 %v2351, %v2551
    %v2619 = vadd.f32 %v2352, %v2555
    %v2620 = vadd.f32 %v2353, %v2551
    %v2621 = vadd.f32 %v2354, %v2555
    %v2622 = vadd.f32 %v2355, %v2551
    %v2623 = vadd.f32 %v2356, %v2555
    %v2624 = vadd.f32 %v2357, %v2551
    %v2625 = vadd.f32 %v2358, %v2555
    %v2626 = vadd.f32 %v2359, %v2551
    %v2627 = vadd.f32 %v2360, %v2555
    %v2628 = vadd.f32 %v2361, %v2551
    %v2629 = vadd.f32 %v2362, %v2555
    %v2630 = vadd.f32 %v2363, %v2551
    %v2631 = vadd.f32 %v2364, %v2555
    %v2632 = vadd.f32 %v2365, %v2551
    %v2633 = vadd.f32 %v2366, %v2555
    %v2634 = vadd.f32 %v2367, %v2551
    %v2635 = vadd.f32 %v2368, %v2555
    %v2636 = vadd.f32 %v2369, %v2551
    %v2637 = vadd.f32 %v2370, %v2555
    %v2638 = vadd.f32 %v2371, %v2551
    %v2639 = vadd.f32 %v2372, %v2555
    %v2640 = vadd.f32 %v2373, %v2551
    %v2641 = vadd.f32 %v2374, %v2555
    %v2642 = vadd.f32 %v2375, %v2551
    %v2643 = vadd.f32 %v2376, %v2555
    %v2644 = vadd.f32 %v2377, %v2551
    %v2645 = vadd.f32 %v2378, %v2555
    %v2646 = vadd.f32 %v2379, %v2551
    %v2647 = vadd.f32 %v2380, %v2555
    %v2648 = vadd.f32 %v2381, %v2551
    %v2649 = vadd.f32 %v2382, %v2555
    %v2650 = vadd.f32 %v2383, %v2551
    %v2651 = vadd.f32 %v2384, %v2555
    %v2652 = vadd.f32 %v2385, %v2551
    %v2653 = vadd.f32 %v2386, %v2555
    %v2654 = vadd.f32 %v2387, %v2551
    %v2655 = vadd.f32 %v2388, %v2555
    %v2656 = vadd.f32 %v2389, %v2551
    %v2657 = vadd.f32 %v2390, %v2555
    %v2658 = vadd.f32 %v2391, %v2551
    %v2659 = vadd.f32 %v2392, %v2555
    %v2660 = vadd.f32 %v2393, %v2551
    %v2661 = vadd.f32 %v2394, %v2555
    %v2662 = vadd.f32 %v2395, %v2551
    %v2663 = vadd.f32 %v2396, %v2555
    %v2664 = vadd.f32 %v2397, %v2551
    %v2665 = vadd.f32 %v2398, %v2555
    %v2666 = vadd.f32 %v2399, %v2551
    %v2667 = vadd.f32 %v2400, %v2555
    %v2668 = vadd.f32 %v2401, %v2551
    %v2669 = vadd.f32 %v2402, %v2555
    %v2670 = vadd.f32 %v2403, %v2551
    %v2671 = vadd.f32 %v2404, %v2555
    %v2672 = vadd.f32 %v2405, %v2551
    %v2673 = vadd.f32 %v2406, %v2555
    %v2674 = vadd.f32 %v2407, %v2551
    %v2675 = vadd.f32 %v2408, %v2555
    %v2676 = vadd.f32 %v2409, %v2551
    %v2677 = vadd.f32 %v2410, %v2555
    %v2678 = vadd.f32 %v2411, %v2551
    %v2679 = vadd.f32 %v2412, %v2555
    %v2680 = vadd.f32 %v2413, %v2551
    %v2681 = vadd.f32 %v2414, %v2555
    %v2682 = vadd.f32 %v2415, %v2551
    %v2683 = vadd.f32 %v2416, %v2555
    %v2684 = vadd.f32 %v2417, %v2551
    %v2685 = vadd.f32 %v2418, %v2555
    %v2686 = vadd.f32 %v2419, %v2551
    %v2687 = vadd.f32 %v2420, %v2555
    %v2688 = vadd.f32 %v2421, %v2551
    %v2689 = vadd.f32 %v2422, %v2555
    %v2690 = vadd.f32 %v2423, %v2551
    %v2691 = vadd.f32 %v2424, %v2555
    %v2692 = vadd.f32 %v2425, %v2551
    %v2693 = vadd.f32 %v2426, %v2555
    %v2694 = vadd.f32 %v2427, %v2551
    %v2695 = vadd.f32 %v2428, %v2555
    %v2696 = vadd.f32 %v2429, %v2551
    %v2697 = vadd.f32 %v2430, %v2555
    %v2698 = vadd.f32 %v2431, %v2551
    %v2699 = vadd.f32 %v2432, %v2555
    %v2700 = vadd.f32 %v2433, %v2551
    %v2701 = vadd.f32 %v2434, %v2555
    %v2702 = vadd.f32 %v2435, %v2551
    %v2703 = vadd.f32 %v2436, %v2555
    %v2704 = vadd.f32 %v2437, %v2551
    %v2705 = vadd.f32 %v2438, %v2555
    %v2706 = vadd.f32 %v2439, %v2551
    %v2707 = vadd.f32 %v2440, %v2555
    %v2708 = vadd.f32 %v2441, %v2551
    %v2709 = vadd.f32 %v2442, %v2555
    %v2710 = vadd.f32 %v2443, %v2551
    %v2711 = vadd.f32 %v2444, %v2555
    %v2712 = vadd.f32 %v2445, %v2551
    %v2713 = vadd.f32 %v2446, %v2555
    %v2714 = vadd.f32 %v2447, %v2551
    %v2715 = vadd.f32 %v2448, %v2555
    %v2716 = vadd.f32 %v2449, %v2551
    %v2717 = vadd.f32 %v2450, %v2555
    %v2718 = vadd.f32 %v2451, %v2551
    %v2719 = vadd.f32 %v2452, %v2555
    %v2720 = vadd.f32 %v2453, %v2551
    %v2721 = vadd.f32 %v2454, %v2555
    %v2722 = vadd.f32 %v2455, %v2551
    %v2723 = vadd.f32 %v2456, %v2555
    %v2724 = vadd.f32 %v2457, %v2551
    %v2725 = vadd.f32 %v2458, %v2555
    %v2726 = vadd.f32 %v2459, %v2551
    %v2727 = vadd.f32 %v2460, %v2555
    %v2728 = vadd.f32 %v2461, %v2551
    %v2729 = vadd.f32 %v2462, %v2555
    %v2730 = vadd.f32 %v2463, %v2551
    %v2731 = vadd.f32 %v2464, %v2555
    %v2732 = vadd.f32 %v2465, %v2551
    %v2733 = vadd.f32 %v2466, %v2555
    %v2734 = vadd.f32 %v2467, %v2551
    %v2735 = vadd.f32 %v2468, %v2555
    %v2736 = vadd.f32 %v2469, %v2551
    %v2737 = vadd.f32 %v2470, %v2555
    %v2738 = vadd.f32 %v2471, %v2551
    %v2739 = vadd.f32 %v2472, %v2555
    %v2740 = vadd.f32 %v2473, %v2551
    %v2741 = vadd.f32 %v2474, %v2555
    %v2742 = vadd.f32 %v2475, %v2551
    %v2743 = vadd.f32 %v2476, %v2555
    %v2744 = vadd.f32 %v2477, %v2551
    %v2745 = vadd.f32 %v2478, %v2555
    %v2746 = vadd.f32 %v2479, %v2551
    %v2747 = vadd.f32 %v2480, %v2555
    %v2748 = vadd.f32 %v2481, %v2551
    %v2749 = vadd.f32 %v2482, %v2555
    %v2750 = vadd.f32 %v2483, %v2551
    %v2751 = vadd.f32 %v2484, %v2555
    %v2752 = vadd.f32 %v2485, %v2551
    %v2753 = vadd.f32 %v2486, %v2555
    %v2754 = vadd.f32 %v2487, %v2551
    %v2755 = vadd.f32 %v2488, %v2555
    %v2756 = vadd.f32 %v2489, %v2551
    %v2757 = vadd.f32 %v2490, %v2555
    %v2758 = vadd.f32 %v2491, %v2551
    %v2759 = vadd.f32 %v2492, %v2555
    %v2760 = vadd.f32 %v2493, %v2551
    %v2761 = vadd.f32 %v2494, %v2555
    %v2762 = vadd.f32 %v2495, %v2551
    %v2763 = vadd.f32 %v2496, %v2555
    %v2764 = vadd.f32 %v2497, %v2551
    %v2765 = vadd.f32 %v2498, %v2555
    %v2766 = vadd.f32 %v2499, %v2551
    %v2767 = vadd.f32 %v2500, %v2555
    %v2768 = vadd.f32 %v2501, %v2551
    %v2769 = vadd.f32 %v2502, %v2555
    %v2770 = vadd.f32 %v2503, %v2551
    %v2771 = vadd.f32 %v2504, %v2555
    %v2772 = vadd.f32 %v2505, %v2551
    %v2773 = vadd.f32 %v2506, %v2555
    %v2774 = vadd.f32 %v2507, %v2551
    %v2775 = vadd.f32 %v2508, %v2555
    %v2776 = vadd.f32 %v2509, %v2551
    %v2777 = vadd.f32 %v2510, %v2555
    %v2778 = vadd.f32 %v2511, %v2551
    %v2779 = vadd.f32 %v2512, %v2555
    %v2780 = vadd.f32 %v2513, %v2551
    %v2781 = vadd.f32 %v2514, %v2555
    %v2782 = vadd.f32 %v2515, %v2551
    %v2783 = vadd.f32 %v2516, %v2555
    %v2784 = vadd.f32 %v2517, %v2551
    %v2785 = vadd.f32 %v2518, %v2555
    %v2786 = vadd.f32 %v2519, %v2551
    %v2787 = vadd.f32 %v2520, %v2555
    %v2788 = vadd.f32 %v2521, %v2551
    %v2789 = vadd.f32 %v2522, %v2555
    %v2790 = vadd.f32 %v2523, %v2551
    %v2791 = vadd.f32 %v2524, %v2555
    %v2792 = vadd.f32 %v2525, %v2551
    %v2793 = vadd.f32 %v2526, %v2555
    %v2794 = vadd.f32 %v2527, %v2551
    %v2795 = vadd.f32 %v2528, %v2555
    %v2796 = vadd.f32 %v2529, %v2551
    %v2797 = vadd.f32 %v2530, %v2555
    %v2798 = vadd.f32 %v2531, %v2551
    %v2799 = vadd.f32 %v2532, %v2555
    %v2800 = vadd.f32 %v2533, %v2551
    %v2801 = vadd.f32 %v2534, %v2555
    %v2802 = vadd.f32 %v2535, %v2551
    %v2803 = vadd.f32 %v2536, %v2555
    %v2804 = vadd.f32 %v2537, %v2551
    %v2805 = vadd.f32 %v2538, %v2555
    %v2806 = vadd.f32 %v2539, %v2551
    %v2807 = vadd.f32 %v2540, %v2555
    %v2808 = vadd.f32 %v2541, %v2551
    %v2809 = vadd.f32 %v2542, %v2555
    %v2810 = vadd.f32 %v2543, %v2551
    %v2811 = vadd.f32 %v2544, %v2555
    %v2812 = vadd.f32 %v2545, %v2551
    %v2813 = vadd.f32 %v2546, %v2555
    %v2814 = vpack.c.bf16 %v2560, %v2558
    %v2815 = vpack.c.bf16 %v2561, %v2559
    %v2816 = vpack.c.bf16 %v2564, %v2562
    %v2817 = vpack.c.bf16 %v2565, %v2563
    %v2818 = vpack.c.bf16 %v2568, %v2566
    %v2819 = vpack.c.bf16 %v2569, %v2567
    %v2820 = vpack.c.bf16 %v2572, %v2570
    %v2821 = vpack.c.bf16 %v2573, %v2571
    %v2822 = vpack.c.bf16 %v2576, %v2574
    %v2823 = vpack.c.bf16 %v2577, %v2575
    %v2824 = vpack.c.bf16 %v2580, %v2578
    %v2825 = vpack.c.bf16 %v2581, %v2579
    %v2826 = vpack.c.bf16 %v2584, %v2582
    %v2827 = vpack.c.bf16 %v2585, %v2583
    %v2828 = vpack.c.bf16 %v2588, %v2586
    %v2829 = vpack.c.bf16 %v2589, %v2587
    %v2830 = vpack.c.bf16 %v2592, %v2590
    %v2831 = vpack.c.bf16 %v2593, %v2591
    %v2832 = vpack.c.bf16 %v2596, %v2594
    %v2833 = vpack.c.bf16 %v2597, %v2595
    %v2834 = vpack.c.bf16 %v2600, %v2598
    %v2835 = vpack.c.bf16 %v2601, %v2599
    %v2836 = vpack.c.bf16 %v2604, %v2602
    %v2837 = vpack.c.bf16 %v2605, %v2603
    %v2838 = vpack.c.bf16 %v2608, %v2606
    %v2839 = vpack.c.bf16 %v2609, %v2607
    %v2840 = vpack.c.bf16 %v2612, %v2610
    %v2841 = vpack.c.bf16 %v2613, %v2611
    %v2842 = vpack.c.bf16 %v2616, %v2614
    %v2843 = vpack.c.bf16 %v2617, %v2615
    %v2844 = vpack.c.bf16 %v2620, %v2618
    %v2845 = vpack.c.bf16 %v2621, %v2619
    %v2846 = vpack.c.bf16 %v2624, %v2622
    %v2847 = vpack.c.bf16 %v2625, %v2623
    %v2848 = vpack.c.bf16 %v2628, %v2626
    %v2849 = vpack.c.bf16 %v2629, %v2627
    %v2850 = vpack.c.bf16 %v2632, %v2630
    %v2851 = vpack.c.bf16 %v2633, %v2631
    %v2852 = vpack.c.bf16 %v2636, %v2634
    %v2853 = vpack.c.bf16 %v2637, %v2635
    %v2854 = vpack.c.bf16 %v2640, %v2638
    %v2855 = vpack.c.bf16 %v2641, %v2639
    %v2856 = vpack.c.bf16 %v2644, %v2642
    %v2857 = vpack.c.bf16 %v2645, %v2643
    %v2858 = vpack.c.bf16 %v2648, %v2646
    %v2859 = vpack.c.bf16 %v2649, %v2647
    %v2860 = vpack.c.bf16 %v2652, %v2650
    %v2861 = vpack.c.bf16 %v2653, %v2651
    %v2862 = vpack.c.bf16 %v2656, %v2654
    %v2863 = vpack.c.bf16 %v2657, %v2655
    %v2864 = vpack.c.bf16 %v2660, %v2658
    %v2865 = vpack.c.bf16 %v2661, %v2659
    %v2866 = vpack.c.bf16 %v2664, %v2662
    %v2867 = vpack.c.bf16 %v2665, %v2663
    %v2868 = vpack.c.bf16 %v2668, %v2666
    %v2869 = vpack.c.bf16 %v2669, %v2667
    %v2870 = vpack.c.bf16 %v2672, %v2670
    %v2871 = vpack.c.bf16 %v2673, %v2671
    %v2872 = vpack.c.bf16 %v2676, %v2674
    %v2873 = vpack.c.bf16 %v2677, %v2675
    %v2874 = vpack.c.bf16 %v2680, %v2678
    %v2875 = vpack.c.bf16 %v2681, %v2679
    %v2876 = vpack.c.bf16 %v2684, %v2682
    %v2877 = vpack.c.bf16 %v2685, %v2683
    %v2878 = vpack.c.bf16 %v2688, %v2686
    %v2879 = vpack.c.bf16 %v2689, %v2687
    %v2880 = vpack.c.bf16 %v2692, %v2690
    %v2881 = vpack.c.bf16 %v2693, %v2691
    %v2882 = vpack.c.bf16 %v2696, %v2694
    %v2883 = vpack.c.bf16 %v2697, %v2695
    %v2884 = vpack.c.bf16 %v2700, %v2698
    %v2885 = vpack.c.bf16 %v2701, %v2699
    %v2886 = vpack.c.bf16 %v2704, %v2702
    %v2887 = vpack.c.bf16 %v2705, %v2703
    %v2888 = vpack.c.bf16 %v2708, %v2706
    %v2889 = vpack.c.bf16 %v2709, %v2707
    %v2890 = vpack.c.bf16 %v2712, %v2710
    %v2891 = vpack.c.bf16 %v2713, %v2711
    %v2892 = vpack.c.bf16 %v2716, %v2714
    %v2893 = vpack.c.bf16 %v2717, %v2715
    %v2894 = vpack.c.bf16 %v2720, %v2718
    %v2895 = vpack.c.bf16 %v2721, %v2719
    %v2896 = vpack.c.bf16 %v2724, %v2722
    %v2897 = vpack.c.bf16 %v2725, %v2723
    %v2898 = vpack.c.bf16 %v2728, %v2726
    %v2899 = vpack.c.bf16 %v2729, %v2727
    %v2900 = vpack.c.bf16 %v2732, %v2730
    %v2901 = vpack.c.bf16 %v2733, %v2731
    %v2902 = vpack.c.bf16 %v2736, %v2734
    %v2903 = vpack.c.bf16 %v2737, %v2735
    %v2904 = vpack.c.bf16 %v2740, %v2738
    %v2905 = vpack.c.bf16 %v2741, %v2739
    %v2906 = vpack.c.bf16 %v2744, %v2742
    %v2907 = vpack.c.bf16 %v2745, %v2743
    %v2908 = vpack.c.bf16 %v2748, %v2746
    %v2909 = vpack.c.bf16 %v2749, %v2747
    %v2910 = vpack.c.bf16 %v2752, %v2750
    %v2911 = vpack.c.bf16 %v2753, %v2751
    %v2912 = vpack.c.bf16 %v2756, %v2754
    %v2913 = vpack.c.bf16 %v2757, %v2755
    %v2914 = vpack.c.bf16 %v2760, %v2758
    %v2915 = vpack.c.bf16 %v2761, %v2759
    %v2916 = vpack.c.bf16 %v2764, %v2762
    %v2917 = vpack.c.bf16 %v2765, %v2763
    %v2918 = vpack.c.bf16 %v2768, %v2766
    %v2919 = vpack.c.bf16 %v2769, %v2767
    %v2920 = vpack.c.bf16 %v2772, %v2770
    %v2921 = vpack.c.bf16 %v2773, %v2771
    %v2922 = vpack.c.bf16 %v2776, %v2774
    %v2923 = vpack.c.bf16 %v2777, %v2775
    %v2924 = vpack.c.bf16 %v2780, %v2778
    %v2925 = vpack.c.bf16 %v2781, %v2779
    %v2926 = vpack.c.bf16 %v2784, %v2782
    %v2927 = vpack.c.bf16 %v2785, %v2783
    %v2928 = vpack.c.bf16 %v2788, %v2786
    %v2929 = vpack.c.bf16 %v2789, %v2787
    %v2930 = vpack.c.bf16 %v2792, %v2790
    %v2931 = vpack.c.bf16 %v2793, %v2791
    %v2932 = vpack.c.bf16 %v2796, %v2794
    %v2933 = vpack.c.bf16 %v2797, %v2795
    %v2934 = vpack.c.bf16 %v2800, %v2798
    %v2935 = vpack.c.bf16 %v2801, %v2799
    %v2936 = vpack.c.bf16 %v2804, %v2802
    %v2937 = vpack.c.bf16 %v2805, %v2803
    %v2938 = vpack.c.bf16 %v2808, %v2806
    %v2939 = vpack.c.bf16 %v2809, %v2807
    %v2940 = vpack.c.bf16 %v2812, %v2810
    %v2941 = vpack.c.bf16 %v2813, %v2811
    %v2942 = vld [vmem:[%s5] sm:$0xff]
    %v2943 = vld [vmem:[%s5 + $0x8] sm:$0xff]
    %v2944 = vld [vmem:[%s5 + $0x10] sm:$0xff]
    %v2945 = vld [vmem:[%s5 + $0x18] sm:$0xff]
    %v2946 = vld [vmem:[%s5 + $0x20] sm:$0xff]
    %v2947 = vld [vmem:[%s5 + $0x28] sm:$0xff]
    %v2948 = vld [vmem:[%s5 + $0x30] sm:$0xff]
    %v2949 = vld [vmem:[%s5 + $0x38] sm:$0xff]
    %v2950 = vld [vmem:[%s5 + $0x40] sm:$0xff]
    %v2951 = vld [vmem:[%s5 + $0x48] sm:$0xff]
    %v2952 = vld [vmem:[%s5 + $0x50] sm:$0xff]
    %v2953 = vld [vmem:[%s5 + $0x58] sm:$0xff]
    %v2954 = vld [vmem:[%s5 + $0x60] sm:$0xff]
    %v2955 = vld [vmem:[%s5 + $0x68] sm:$0xff]
    %v2956 = vld [vmem:[%s5 + $0x70] sm:$0xff]
    %v2957 = vld [vmem:[%s5 + $0x78] sm:$0xff]
    %v2958 = vld [vmem:[%s5 + $0x80] sm:$0xff]
    %v2959 = vld [vmem:[%s5 + $0x88] sm:$0xff]
    %v2960 = vld [vmem:[%s5 + $0x90] sm:$0xff]
    %v2961 = vld [vmem:[%s5 + $0x98] sm:$0xff]
    %v2962 = vld [vmem:[%s5 + $0xa0] sm:$0xff]
    %v2963 = vld [vmem:[%s5 + $0xa8] sm:$0xff]
    %v2964 = vld [vmem:[%s5 + $0xb0] sm:$0xff]
    %v2965 = vld [vmem:[%s5 + $0xb8] sm:$0xff]
    %v2966 = vld [vmem:[%s5 + $0xc0] sm:$0xff]
    %v2967 = vld [vmem:[%s5 + $0xc8] sm:$0xff]
    %v2968 = vld [vmem:[%s5 + $0xd0] sm:$0xff]
    %v2969 = vld [vmem:[%s5 + $0xd8] sm:$0xff]
    %v2970 = vld [vmem:[%s5 + $0xe0] sm:$0xff]
    %v2971 = vld [vmem:[%s5 + $0xe8] sm:$0xff]
    %v2972 = vld [vmem:[%s5 + $0xf0] sm:$0xff]
    %v2973 = vld [vmem:[%s5 + $0xf8] sm:$0xff]
    %v2974 = vld [vmem:[%s6] sm:$0x3]
    %v2976 = vlaneseq
    %v2977 = vshrl.u32 %v2976, 7
    %v2978 = vsub.s32 0, %v2977
    %v2979 = vrot.slane %v2974, %v2978
    %v2980 = vlaneseq
    %v2981 = vshrl.u32 %v2980, 7
    %v2982 = vsub.s32 1, %v2981
    %v2983 = vrot.slane %v2974, %v2982
    %v3018 = vunpack.c.l.b16 %v2942
    %v3019 = vunpack.c.h.b16 %v2942
    %v3020 = vunpack.c.l.b16 %v2943
    %v3021 = vunpack.c.h.b16 %v2943
    %v3022 = vunpack.c.l.b16 %v2944
    %v3023 = vunpack.c.h.b16 %v2944
    %v3024 = vunpack.c.l.b16 %v2945
    %v3025 = vunpack.c.h.b16 %v2945
    %v3026 = vunpack.c.l.b16 %v2946
    %v3027 = vunpack.c.h.b16 %v2946
    %v3028 = vunpack.c.l.b16 %v2947
    %v3029 = vunpack.c.h.b16 %v2947
    %v3030 = vunpack.c.l.b16 %v2948
    %v3031 = vunpack.c.h.b16 %v2948
    %v3032 = vunpack.c.l.b16 %v2949
    %v3033 = vunpack.c.h.b16 %v2949
    %v3034 = vunpack.c.l.b16 %v2950
    %v3035 = vunpack.c.h.b16 %v2950
    %v3036 = vunpack.c.l.b16 %v2951
    %v3037 = vunpack.c.h.b16 %v2951
    %v3038 = vunpack.c.l.b16 %v2952
    %v3039 = vunpack.c.h.b16 %v2952
    %v3040 = vunpack.c.l.b16 %v2953
    %v3041 = vunpack.c.h.b16 %v2953
    %v3042 = vunpack.c.l.b16 %v2954
    %v3043 = vunpack.c.h.b16 %v2954
    %v3044 = vunpack.c.l.b16 %v2955
    %v3045 = vunpack.c.h.b16 %v2955
    %v3046 = vunpack.c.l.b16 %v2956
    %v3047 = vunpack.c.h.b16 %v2956
    %v3048 = vunpack.c.l.b16 %v2957
    %v3049 = vunpack.c.h.b16 %v2957
    %v3050 = vunpack.c.l.b16 %v2958
    %v3051 = vunpack.c.h.b16 %v2958
    %v3052 = vunpack.c.l.b16 %v2959
    %v3053 = vunpack.c.h.b16 %v2959
    %v3054 = vunpack.c.l.b16 %v2960
    %v3055 = vunpack.c.h.b16 %v2960
    %v3056 = vunpack.c.l.b16 %v2961
    %v3057 = vunpack.c.h.b16 %v2961
    %v3058 = vunpack.c.l.b16 %v2962
    %v3059 = vunpack.c.h.b16 %v2962
    %v3060 = vunpack.c.l.b16 %v2963
    %v3061 = vunpack.c.h.b16 %v2963
    %v3062 = vunpack.c.l.b16 %v2964
    %v3063 = vunpack.c.h.b16 %v2964
    %v3064 = vunpack.c.l.b16 %v2965
    %v3065 = vunpack.c.h.b16 %v2965
    %v3066 = vunpack.c.l.b16 %v2966
    %v3067 = vunpack.c.h.b16 %v2966
    %v3068 = vunpack.c.l.b16 %v2967
    %v3069 = vunpack.c.h.b16 %v2967
    %v3070 = vunpack.c.l.b16 %v2968
    %v3071 = vunpack.c.h.b16 %v2968
    %v3072 = vunpack.c.l.b16 %v2969
    %v3073 = vunpack.c.h.b16 %v2969
    %v3074 = vunpack.c.l.b16 %v2970
    %v3075 = vunpack.c.h.b16 %v2970
    %v3076 = vunpack.c.l.b16 %v2971
    %v3077 = vunpack.c.h.b16 %v2971
    %v3078 = vunpack.c.l.b16 %v2972
    %v3079 = vunpack.c.h.b16 %v2972
    %v3080 = vunpack.c.l.b16 %v2973
    %v3081 = vunpack.c.h.b16 %v2973
    %v3082 = vpack.c.b16 %v3020, %v3018
    %v3083 = vpack.c.b16 %v3021, %v3019
    %v3084 = vpack.c.b16 %v3024, %v3022
    %v3085 = vpack.c.b16 %v3025, %v3023
    %v3086 = vpack.c.b16 %v3028, %v3026
    %v3087 = vpack.c.b16 %v3029, %v3027
    %v3088 = vpack.c.b16 %v3032, %v3030
    %v3089 = vpack.c.b16 %v3033, %v3031
    %v3090 = vpack.c.b16 %v3036, %v3034
    %v3091 = vpack.c.b16 %v3037, %v3035
    %v3092 = vpack.c.b16 %v3040, %v3038
    %v3093 = vpack.c.b16 %v3041, %v3039
    %v3094 = vpack.c.b16 %v3044, %v3042
    %v3095 = vpack.c.b16 %v3045, %v3043
    %v3096 = vpack.c.b16 %v3048, %v3046
    %v3097 = vpack.c.b16 %v3049, %v3047
    %v3098 = vpack.c.b16 %v3052, %v3050
    %v3099 = vpack.c.b16 %v3053, %v3051
    %v3100 = vpack.c.b16 %v3056, %v3054
    %v3101 = vpack.c.b16 %v3057, %v3055
    %v3102 = vpack.c.b16 %v3060, %v3058
    %v3103 = vpack.c.b16 %v3061, %v3059
    %v3104 = vpack.c.b16 %v3064, %v3062
    %v3105 = vpack.c.b16 %v3065, %v3063
    %v3106 = vpack.c.b16 %v3068, %v3066
    %v3107 = vpack.c.b16 %v3069, %v3067
    %v3108 = vpack.c.b16 %v3072, %v3070
    %v3109 = vpack.c.b16 %v3073, %v3071
    %v3110 = vpack.c.b16 %v3076, %v3074
    %v3111 = vpack.c.b16 %v3077, %v3075
    %v3112 = vpack.c.b16 %v3080, %v3078
    %v3113 = vpack.c.b16 %v3081, %v3079
    %3146 = vmatprep.subr.bf16.mxu0 %v3083
    %3147 = vmatpush1.bf16.msra.mxu0 %v3082
    %3148 = vmatprep.subr.bf16.mxu0 %v3085
    %3149 = vmatpush1.bf16.msra.mxu0 %v3084
    %3150 = vmatprep.subr.bf16.mxu0 %v3087
    %3151 = vmatpush1.bf16.msra.mxu0 %v3086
    %3152 = vmatprep.subr.bf16.mxu0 %v3089
    %3153 = vmatpush1.bf16.msra.mxu0 %v3088
    %3154 = vmatprep.subr.bf16.mxu0 %v3091
    %3155 = vmatpush1.bf16.msra.mxu0 %v3090
    %3156 = vmatprep.subr.bf16.mxu0 %v3093
    %3157 = vmatpush1.bf16.msra.mxu0 %v3092
    %3158 = vmatprep.subr.bf16.mxu0 %v3095
    %3159 = vmatpush1.bf16.msra.mxu0 %v3094
    %3160 = vmatprep.subr.bf16.mxu0 %v3097
    %3161 = vmatpush1.bf16.msra.mxu0 %v3096
    %3162 = vmatprep.subr.bf16.mxu0 %v3099
    %3163 = vmatpush1.bf16.msra.mxu0 %v3098
    %3164 = vmatprep.subr.bf16.mxu0 %v3101
    %3165 = vmatpush1.bf16.msra.mxu0 %v3100
    %3166 = vmatprep.subr.bf16.mxu0 %v3103
    %3167 = vmatpush1.bf16.msra.mxu0 %v3102
    %3168 = vmatprep.subr.bf16.mxu0 %v3105
    %3169 = vmatpush1.bf16.msra.mxu0 %v3104
    %3170 = vmatprep.subr.bf16.mxu0 %v3107
    %3171 = vmatpush1.bf16.msra.mxu0 %v3106
    %3172 = vmatprep.subr.bf16.mxu0 %v3109
    %3173 = vmatpush1.bf16.msra.mxu0 %v3108
    %3174 = vmatprep.subr.bf16.mxu0 %v3111
    %3175 = vmatpush1.bf16.msra.mxu0 %v3110
    %3176 = vmatprep.subr.bf16.mxu0 %v3113
    %3177 = vmatpush1.bf16.msra.mxu0 %v3112
    %3178 = vmatprep.mubr.bf16.mxu0 %v2815
    %3179 = vmatmul.mubr.bf16.gmra.mrb[0].mxu0 %v2814
    %v3180 = vpop.f32.mrb[0].mxu0
    %v3181 = vadd.f32 %v2979, %v3180
    %v3182 = vpop.f32.mrb[0].mxu0
    %v3183 = vadd.f32 %v2983, %v3182
    %v3184 = vpop.f32.mrb[0].mxu0
    %v3185 = vadd.f32 %v2979, %v3184
    %v3186 = vpop.f32.mrb[0].mxu0
    %v3187 = vadd.f32 %v2983, %v3186
    %3188 = vmatprep.mubr.bf16.mxu0 %v2817
    %3189 = vmatmul.mubr.bf16.gmra.mrb[0].mxu0 %v2816
    %v3190 = vpop.f32.mrb[0].mxu0
    %v3191 = vadd.f32 %v2979, %v3190
    %v3192 = vpop.f32.mrb[0].mxu0
    %v3193 = vadd.f32 %v2983, %v3192
    %v3194 = vpop.f32.mrb[0].mxu0
    %v3195 = vadd.f32 %v2979, %v3194
    %v3196 = vpop.f32.mrb[0].mxu0
    %v3197 = vadd.f32 %v2983, %v3196
    %3198 = vmatprep.mubr.bf16.mxu0 %v2819
    %3199 = vmatmul.mubr.bf16.gmra.mrb[0].mxu0 %v2818
    %v3200 = vpop.f32.mrb[0].mxu0
    %v3201 = vadd.f32 %v2979, %v3200
    %v3202 = vpop.f32.mrb[0].mxu0
    %v3203 = vadd.f32 %v2983, %v3202
    %v3204 = vpop.f32.mrb[0].mxu0
    %v3205 = vadd.f32 %v2979, %v3204
    %v3206 = vpop.f32.mrb[0].mxu0
    %v3207 = vadd.f32 %v2983, %v3206
    %3208 = vmatprep.mubr.bf16.mxu0 %v2821
    %3209 = vmatmul.mubr.bf16.gmra.mrb[0].mxu0 %v2820
    %v3210 = vpop.f32.mrb[0].mxu0
    %v3211 = vadd.f32 %v2979, %v3210
    %v3212 = vpop.f32.mrb[0].mxu0
    %v3213 = vadd.f32 %v2983, %v3212
    %v3214 = vpop.f32.mrb[0].mxu0
    %v3215 = vadd.f32 %v2979, %v3214
    %v3216 = vpop.f32.mrb[0].mxu0
    %v3217 = vadd.f32 %v2983, %v3216
    %3218 = vmatprep.mubr.bf16.mxu0 %v2823
    %3219 = vmatmul.mubr.bf16.gmra.mrb[0].mxu0 %v2822
    %v3220 = vpop.f32.mrb[0].mxu0
    %v3221 = vadd.f32 %v2979, %v3220
    %v3222 = vpop.f32.mrb[0].mxu0
    %v3223 = vadd.f32 %v2983, %v3222
    %v3224 = vpop.f32.mrb[0].mxu0
    %v3225 = vadd.f32 %v2979, %v3224
    %v3226 = vpop.f32.mrb[0].mxu0
    %v3227 = vadd.f32 %v2983, %v3226
    %3228 = vmatprep.mubr.bf16.mxu0 %v2825
    %3229 = vmatmul.mubr.bf16.gmra.mrb[0].mxu0 %v2824
    %v3230 = vpop.f32.mrb[0].mxu0
    %v3231 = vadd.f32 %v2979, %v3230
    %v3232 = vpop.f32.mrb[0].mxu0
    %v3233 = vadd.f32 %v2983, %v3232
    %v3234 = vpop.f32.mrb[0].mxu0
    %v3235 = vadd.f32 %v2979, %v3234
    %v3236 = vpop.f32.mrb[0].mxu0
    %v3237 = vadd.f32 %v2983, %v3236
    %3238 = vmatprep.mubr.bf16.mxu0 %v2827
    %3239 = vmatmul.mubr.bf16.gmra.mrb[0].mxu0 %v2826
    %v3240 = vpop.f32.mrb[0].mxu0
    %v3241 = vadd.f32 %v2979, %v3240
    %v3242 = vpop.f32.mrb[0].mxu0
    %v3243 = vadd.f32 %v2983, %v3242
    %v3244 = vpop.f32.mrb[0].mxu0
    %v3245 = vadd.f32 %v2979, %v3244
    %v3246 = vpop.f32.mrb[0].mxu0
    %v3247 = vadd.f32 %v2983, %v3246
    %3248 = vmatprep.mubr.bf16.mxu0 %v2829
    %3249 = vmatmul.mubr.bf16.gmra.mrb[0].mxu0 %v2828
    %v3250 = vpop.f32.mrb[0].mxu0
    %v3251 = vadd.f32 %v2979, %v3250
    %v3252 = vpop.f32.mrb[0].mxu0
    %v3253 = vadd.f32 %v2983, %v3252
    %v3254 = vpop.f32.mrb[0].mxu0
    %v3255 = vadd.f32 %v2979, %v3254
    %v3256 = vpop.f32.mrb[0].mxu0
    %v3257 = vadd.f32 %v2983, %v3256
    %3258 = vmatprep.mubr.bf16.mxu0 %v2831
    %3259 = vmatmul.mubr.bf16.gmra.mrb[0].mxu0 %v2830
    %v3260 = vpop.f32.mrb[0].mxu0
    %v3261 = vadd.f32 %v2979, %v3260
    %v3262 = vpop.f32.mrb[0].mxu0
    %v3263 = vadd.f32 %v2983, %v3262
    %v3264 = vpop.f32.mrb[0].mxu0
    %v3265 = vadd.f32 %v2979, %v3264
    %v3266 = vpop.f32.mrb[0].mxu0
    %v3267 = vadd.f32 %v2983, %v3266
    %3268 = vmatprep.mubr.bf16.mxu0 %v2833
    %3269 = vmatmul.mubr.bf16.gmra.mrb[0].mxu0 %v2832
    %v3270 = vpop.f32.mrb[0].mxu0
    %v3271 = vadd.f32 %v2979, %v3270
    %v3272 = vpop.f32.mrb[0].mxu0
    %v3273 = vadd.f32 %v2983, %v3272
    %v3274 = vpop.f32.mrb[0].mxu0
    %v3275 = vadd.f32 %v2979, %v3274
    %v3276 = vpop.f32.mrb[0].mxu0
    %v3277 = vadd.f32 %v2983, %v3276
    %3278 = vmatprep.mubr.bf16.mxu0 %v2835
    %3279 = vmatmul.mubr.bf16.gmra.mrb[0].mxu0 %v2834
    %v3280 = vpop.f32.mrb[0].mxu0
    %v3281 = vadd.f32 %v2979, %v3280
    %v3282 = vpop.f32.mrb[0].mxu0
    %v3283 = vadd.f32 %v2983, %v3282
    %v3284 = vpop.f32.mrb[0].mxu0
    %v3285 = vadd.f32 %v2979, %v3284
    %v3286 = vpop.f32.mrb[0].mxu0
    %v3287 = vadd.f32 %v2983, %v3286
    %3288 = vmatprep.mubr.bf16.mxu0 %v2837
    %3289 = vmatmul.mubr.bf16.gmra.mrb[0].mxu0 %v2836
    %v3290 = vpop.f32.mrb[0].mxu0
    %v3291 = vadd.f32 %v2979, %v3290
    %v3292 = vpop.f32.mrb[0].mxu0
    %v3293 = vadd.f32 %v2983, %v3292
    %v3294 = vpop.f32.mrb[0].mxu0
    %v3295 = vadd.f32 %v2979, %v3294
    %v3296 = vpop.f32.mrb[0].mxu0
    %v3297 = vadd.f32 %v2983, %v3296
    %3298 = vmatprep.mubr.bf16.mxu0 %v2839
    %3299 = vmatmul.mubr.bf16.gmra.mrb[0].mxu0 %v2838
    %v3300 = vpop.f32.mrb[0].mxu0
    %v3301 = vadd.f32 %v2979, %v3300
    %v3302 = vpop.f32.mrb[0].mxu0
    %v3303 = vadd.f32 %v2983, %v3302
    %v3304 = vpop.f32.mrb[0].mxu0
    %v3305 = vadd.f32 %v2979, %v3304
    %v3306 = vpop.f32.mrb[0].mxu0
    %v3307 = vadd.f32 %v2983, %v3306
    %3308 = vmatprep.mubr.bf16.mxu0 %v2841
    %3309 = vmatmul.mubr.bf16.gmra.mrb[0].mxu0 %v2840
    %v3310 = vpop.f32.mrb[0].mxu0
    %v3311 = vadd.f32 %v2979, %v3310
    %v3312 = vpop.f32.mrb[0].mxu0
    %v3313 = vadd.f32 %v2983, %v3312
    %v3314 = vpop.f32.mrb[0].mxu0
    %v3315 = vadd.f32 %v2979, %v3314
    %v3316 = vpop.f32.mrb[0].mxu0
    %v3317 = vadd.f32 %v2983, %v3316
    %3318 = vmatprep.mubr.bf16.mxu0 %v2843
    %3319 = vmatmul.mubr.bf16.gmra.mrb[0].mxu0 %v2842
    %v3320 = vpop.f32.mrb[0].mxu0
    %v3321 = vadd.f32 %v2979, %v3320
    %v3322 = vpop.f32.mrb[0].mxu0
    %v3323 = vadd.f32 %v2983, %v3322
    %v3324 = vpop.f32.mrb[0].mxu0
    %v3325 = vadd.f32 %v2979, %v3324
    %v3326 = vpop.f32.mrb[0].mxu0
    %v3327 = vadd.f32 %v2983, %v3326
    %3328 = vmatprep.mubr.bf16.mxu0 %v2845
    %3329 = vmatmul.mubr.bf16.gmra.mrb[0].mxu0 %v2844
    %v3330 = vpop.f32.mrb[0].mxu0
    %v3331 = vadd.f32 %v2979, %v3330
    %v3332 = vpop.f32.mrb[0].mxu0
    %v3333 = vadd.f32 %v2983, %v3332
    %v3334 = vpop.f32.mrb[0].mxu0
    %v3335 = vadd.f32 %v2979, %v3334
    %v3336 = vpop.f32.mrb[0].mxu0
    %v3337 = vadd.f32 %v2983, %v3336
    %3338 = vmatprep.mubr.bf16.mxu0 %v2847
    %3339 = vmatmul.mubr.bf16.gmra.mrb[0].mxu0 %v2846
    %v3340 = vpop.f32.mrb[0].mxu0
    %v3341 = vadd.f32 %v2979, %v3340
    %v3342 = vpop.f32.mrb[0].mxu0
    %v3343 = vadd.f32 %v2983, %v3342
    %v3344 = vpop.f32.mrb[0].mxu0
    %v3345 = vadd.f32 %v2979, %v3344
    %v3346 = vpop.f32.mrb[0].mxu0
    %v3347 = vadd.f32 %v2983, %v3346
    %3348 = vmatprep.mubr.bf16.mxu0 %v2849
    %3349 = vmatmul.mubr.bf16.gmra.mrb[0].mxu0 %v2848
    %v3350 = vpop.f32.mrb[0].mxu0
    %v3351 = vadd.f32 %v2979, %v3350
    %v3352 = vpop.f32.mrb[0].mxu0
    %v3353 = vadd.f32 %v2983, %v3352
    %v3354 = vpop.f32.mrb[0].mxu0
    %v3355 = vadd.f32 %v2979, %v3354
    %v3356 = vpop.f32.mrb[0].mxu0
    %v3357 = vadd.f32 %v2983, %v3356
    %3358 = vmatprep.mubr.bf16.mxu0 %v2851
    %3359 = vmatmul.mubr.bf16.gmra.mrb[0].mxu0 %v2850
    %v3360 = vpop.f32.mrb[0].mxu0
    %v3361 = vadd.f32 %v2979, %v3360
    %v3362 = vpop.f32.mrb[0].mxu0
    %v3363 = vadd.f32 %v2983, %v3362
    %v3364 = vpop.f32.mrb[0].mxu0
    %v3365 = vadd.f32 %v2979, %v3364
    %v3366 = vpop.f32.mrb[0].mxu0
    %v3367 = vadd.f32 %v2983, %v3366
    %3368 = vmatprep.mubr.bf16.mxu0 %v2853
    %3369 = vmatmul.mubr.bf16.gmra.mrb[0].mxu0 %v2852
    %v3370 = vpop.f32.mrb[0].mxu0
    %v3371 = vadd.f32 %v2979, %v3370
    %v3372 = vpop.f32.mrb[0].mxu0
    %v3373 = vadd.f32 %v2983, %v3372
    %v3374 = vpop.f32.mrb[0].mxu0
    %v3375 = vadd.f32 %v2979, %v3374
    %v3376 = vpop.f32.mrb[0].mxu0
    %v3377 = vadd.f32 %v2983, %v3376
    %3378 = vmatprep.mubr.bf16.mxu0 %v2855
    %3379 = vmatmul.mubr.bf16.gmra.mrb[0].mxu0 %v2854
    %v3380 = vpop.f32.mrb[0].mxu0
    %v3381 = vadd.f32 %v2979, %v3380
    %v3382 = vpop.f32.mrb[0].mxu0
    %v3383 = vadd.f32 %v2983, %v3382
    %v3384 = vpop.f32.mrb[0].mxu0
    %v3385 = vadd.f32 %v2979, %v3384
    %v3386 = vpop.f32.mrb[0].mxu0
    %v3387 = vadd.f32 %v2983, %v3386
    %3388 = vmatprep.mubr.bf16.mxu0 %v2857
    %3389 = vmatmul.mubr.bf16.gmra.mrb[0].mxu0 %v2856
    %v3390 = vpop.f32.mrb[0].mxu0
    %v3391 = vadd.f32 %v2979, %v3390
    %v3392 = vpop.f32.mrb[0].mxu0
    %v3393 = vadd.f32 %v2983, %v3392
    %v3394 = vpop.f32.mrb[0].mxu0
    %v3395 = vadd.f32 %v2979, %v3394
    %v3396 = vpop.f32.mrb[0].mxu0
    %v3397 = vadd.f32 %v2983, %v3396
    %3398 = vmatprep.mubr.bf16.mxu0 %v2859
    %3399 = vmatmul.mubr.bf16.gmra.mrb[0].mxu0 %v2858
    %v3400 = vpop.f32.mrb[0].mxu0
    %v3401 = vadd.f32 %v2979, %v3400
    %v3402 = vpop.f32.mrb[0].mxu0
    %v3403 = vadd.f32 %v2983, %v3402
    %v3404 = vpop.f32.mrb[0].mxu0
    %v3405 = vadd.f32 %v2979, %v3404
    %v3406 = vpop.f32.mrb[0].mxu0
    %v3407 = vadd.f32 %v2983, %v3406
    %3408 = vmatprep.mubr.bf16.mxu0 %v2861
    %3409 = vmatmul.mubr.bf16.gmra.mrb[0].mxu0 %v2860
    %v3410 = vpop.f32.mrb[0].mxu0
    %v3411 = vadd.f32 %v2979, %v3410
    %v3412 = vpop.f32.mrb[0].mxu0
    %v3413 = vadd.f32 %v2983, %v3412
    %v3414 = vpop.f32.mrb[0].mxu0
    %v3415 = vadd.f32 %v2979, %v3414
    %v3416 = vpop.f32.mrb[0].mxu0
    %v3417 = vadd.f32 %v2983, %v3416
    %3418 = vmatprep.mubr.bf16.mxu0 %v2863
    %3419 = vmatmul.mubr.bf16.gmra.mrb[0].mxu0 %v2862
    %v3420 = vpop.f32.mrb[0].mxu0
    %v3421 = vadd.f32 %v2979, %v3420
    %v3422 = vpop.f32.mrb[0].mxu0
    %v3423 = vadd.f32 %v2983, %v3422
    %v3424 = vpop.f32.mrb[0].mxu0
    %v3425 = vadd.f32 %v2979, %v3424
    %v3426 = vpop.f32.mrb[0].mxu0
    %v3427 = vadd.f32 %v2983, %v3426
    %3428 = vmatprep.mubr.bf16.mxu0 %v2865
    %3429 = vmatmul.mubr.bf16.gmra.mrb[0].mxu0 %v2864
    %v3430 = vpop.f32.mrb[0].mxu0
    %v3431 = vadd.f32 %v2979, %v3430
    %v3432 = vpop.f32.mrb[0].mxu0
    %v3433 = vadd.f32 %v2983, %v3432
    %v3434 = vpop.f32.mrb[0].mxu0
    %v3435 = vadd.f32 %v2979, %v3434
    %v3436 = vpop.f32.mrb[0].mxu0
    %v3437 = vadd.f32 %v2983, %v3436
    %3438 = vmatprep.mubr.bf16.mxu0 %v2867
    %3439 = vmatmul.mubr.bf16.gmra.mrb[0].mxu0 %v2866
    %v3440 = vpop.f32.mrb[0].mxu0
    %v3441 = vadd.f32 %v2979, %v3440
    %v3442 = vpop.f32.mrb[0].mxu0
    %v3443 = vadd.f32 %v2983, %v3442
    %v3444 = vpop.f32.mrb[0].mxu0
    %v3445 = vadd.f32 %v2979, %v3444
    %v3446 = vpop.f32.mrb[0].mxu0
    %v3447 = vadd.f32 %v2983, %v3446
    %3448 = vmatprep.mubr.bf16.mxu0 %v2869
    %3449 = vmatmul.mubr.bf16.gmra.mrb[0].mxu0 %v2868
    %v3450 = vpop.f32.mrb[0].mxu0
    %v3451 = vadd.f32 %v2979, %v3450
    %v3452 = vpop.f32.mrb[0].mxu0
    %v3453 = vadd.f32 %v2983, %v3452
    %v3454 = vpop.f32.mrb[0].mxu0
    %v3455 = vadd.f32 %v2979, %v3454
    %v3456 = vpop.f32.mrb[0].mxu0
    %v3457 = vadd.f32 %v2983, %v3456
    %3458 = vmatprep.mubr.bf16.mxu0 %v2871
    %3459 = vmatmul.mubr.bf16.gmra.mrb[0].mxu0 %v2870
    %v3460 = vpop.f32.mrb[0].mxu0
    %v3461 = vadd.f32 %v2979, %v3460
    %v3462 = vpop.f32.mrb[0].mxu0
    %v3463 = vadd.f32 %v2983, %v3462
    %v3464 = vpop.f32.mrb[0].mxu0
    %v3465 = vadd.f32 %v2979, %v3464
    %v3466 = vpop.f32.mrb[0].mxu0
    %v3467 = vadd.f32 %v2983, %v3466
    %3468 = vmatprep.mubr.bf16.mxu0 %v2873
    %3469 = vmatmul.mubr.bf16.gmra.mrb[0].mxu0 %v2872
    %v3470 = vpop.f32.mrb[0].mxu0
    %v3471 = vadd.f32 %v2979, %v3470
    %v3472 = vpop.f32.mrb[0].mxu0
    %v3473 = vadd.f32 %v2983, %v3472
    %v3474 = vpop.f32.mrb[0].mxu0
    %v3475 = vadd.f32 %v2979, %v3474
    %v3476 = vpop.f32.mrb[0].mxu0
    %v3477 = vadd.f32 %v2983, %v3476
    %3478 = vmatprep.mubr.bf16.mxu0 %v2875
    %3479 = vmatmul.mubr.bf16.gmra.mrb[0].mxu0 %v2874
    %v3480 = vpop.f32.mrb[0].mxu0
    %v3481 = vadd.f32 %v2979, %v3480
    %v3482 = vpop.f32.mrb[0].mxu0
    %v3483 = vadd.f32 %v2983, %v3482
    %v3484 = vpop.f32.mrb[0].mxu0
    %v3485 = vadd.f32 %v2979, %v3484
    %v3486 = vpop.f32.mrb[0].mxu0
    %v3487 = vadd.f32 %v2983, %v3486
    %3488 = vmatprep.mubr.bf16.mxu0 %v2877
    %3489 = vmatmul.mubr.bf16.gmra.mrb[0].mxu0 %v2876
    %v3490 = vpop.f32.mrb[0].mxu0
    %v3491 = vadd.f32 %v2979, %v3490
    %v3492 = vpop.f32.mrb[0].mxu0
    %v3493 = vadd.f32 %v2983, %v3492
    %v3494 = vpop.f32.mrb[0].mxu0
    %v3495 = vadd.f32 %v2979, %v3494
    %v3496 = vpop.f32.mrb[0].mxu0
    %v3497 = vadd.f32 %v2983, %v3496
    %3498 = vmatprep.mubr.bf16.mxu0 %v2879
    %3499 = vmatmul.mubr.bf16.gmra.mrb[0].mxu0 %v2878
    %v3500 = vpop.f32.mrb[0].mxu0
    %v3501 = vadd.f32 %v2979, %v3500
    %v3502 = vpop.f32.mrb[0].mxu0
    %v3503 = vadd.f32 %v2983, %v3502
    %v3504 = vpop.f32.mrb[0].mxu0
    %v3505 = vadd.f32 %v2979, %v3504
    %v3506 = vpop.f32.mrb[0].mxu0
    %v3507 = vadd.f32 %v2983, %v3506
    %3508 = vmatprep.mubr.bf16.mxu0 %v2881
    %3509 = vmatmul.mubr.bf16.gmra.mrb[0].mxu0 %v2880
    %v3510 = vpop.f32.mrb[0].mxu0
    %v3511 = vadd.f32 %v2979, %v3510
    %v3512 = vpop.f32.mrb[0].mxu0
    %v3513 = vadd.f32 %v2983, %v3512
    %v3514 = vpop.f32.mrb[0].mxu0
    %v3515 = vadd.f32 %v2979, %v3514
    %v3516 = vpop.f32.mrb[0].mxu0
    %v3517 = vadd.f32 %v2983, %v3516
    %3518 = vmatprep.mubr.bf16.mxu0 %v2883
    %3519 = vmatmul.mubr.bf16.gmra.mrb[0].mxu0 %v2882
    %v3520 = vpop.f32.mrb[0].mxu0
    %v3521 = vadd.f32 %v2979, %v3520
    %v3522 = vpop.f32.mrb[0].mxu0
    %v3523 = vadd.f32 %v2983, %v3522
    %v3524 = vpop.f32.mrb[0].mxu0
    %v3525 = vadd.f32 %v2979, %v3524
    %v3526 = vpop.f32.mrb[0].mxu0
    %v3527 = vadd.f32 %v2983, %v3526
    %3528 = vmatprep.mubr.bf16.mxu0 %v2885
    %3529 = vmatmul.mubr.bf16.gmra.mrb[0].mxu0 %v2884
    %v3530 = vpop.f32.mrb[0].mxu0
    %v3531 = vadd.f32 %v2979, %v3530
    %v3532 = vpop.f32.mrb[0].mxu0
    %v3533 = vadd.f32 %v2983, %v3532
    %v3534 = vpop.f32.mrb[0].mxu0
    %v3535 = vadd.f32 %v2979, %v3534
    %v3536 = vpop.f32.mrb[0].mxu0
    %v3537 = vadd.f32 %v2983, %v3536
    %3538 = vmatprep.mubr.bf16.mxu0 %v2887
    %3539 = vmatmul.mubr.bf16.gmra.mrb[0].mxu0 %v2886
    %v3540 = vpop.f32.mrb[0].mxu0
    %v3541 = vadd.f32 %v2979, %v3540
    %v3542 = vpop.f32.mrb[0].mxu0
    %v3543 = vadd.f32 %v2983, %v3542
    %v3544 = vpop.f32.mrb[0].mxu0
    %v3545 = vadd.f32 %v2979, %v3544
    %v3546 = vpop.f32.mrb[0].mxu0
    %v3547 = vadd.f32 %v2983, %v3546
    %3548 = vmatprep.mubr.bf16.mxu0 %v2889
    %3549 = vmatmul.mubr.bf16.gmra.mrb[0].mxu0 %v2888
    %v3550 = vpop.f32.mrb[0].mxu0
    %v3551 = vadd.f32 %v2979, %v3550
    %v3552 = vpop.f32.mrb[0].mxu0
    %v3553 = vadd.f32 %v2983, %v3552
    %v3554 = vpop.f32.mrb[0].mxu0
    %v3555 = vadd.f32 %v2979, %v3554
    %v3556 = vpop.f32.mrb[0].mxu0
    %v3557 = vadd.f32 %v2983, %v3556
    %3558 = vmatprep.mubr.bf16.mxu0 %v2891
    %3559 = vmatmul.mubr.bf16.gmra.mrb[0].mxu0 %v2890
    %v3560 = vpop.f32.mrb[0].mxu0
    %v3561 = vadd.f32 %v2979, %v3560
    %v3562 = vpop.f32.mrb[0].mxu0
    %v3563 = vadd.f32 %v2983, %v3562
    %v3564 = vpop.f32.mrb[0].mxu0
    %v3565 = vadd.f32 %v2979, %v3564
    %v3566 = vpop.f32.mrb[0].mxu0
    %v3567 = vadd.f32 %v2983, %v3566
    %3568 = vmatprep.mubr.bf16.mxu0 %v2893
    %3569 = vmatmul.mubr.bf16.gmra.mrb[0].mxu0 %v2892
    %v3570 = vpop.f32.mrb[0].mxu0
    %v3571 = vadd.f32 %v2979, %v3570
    %v3572 = vpop.f32.mrb[0].mxu0
    %v3573 = vadd.f32 %v2983, %v3572
    %v3574 = vpop.f32.mrb[0].mxu0
    %v3575 = vadd.f32 %v2979, %v3574
    %v3576 = vpop.f32.mrb[0].mxu0
    %v3577 = vadd.f32 %v2983, %v3576
    %3578 = vmatprep.mubr.bf16.mxu0 %v2895
    %3579 = vmatmul.mubr.bf16.gmra.mrb[0].mxu0 %v2894
    %v3580 = vpop.f32.mrb[0].mxu0
    %v3581 = vadd.f32 %v2979, %v3580
    %v3582 = vpop.f32.mrb[0].mxu0
    %v3583 = vadd.f32 %v2983, %v3582
    %v3584 = vpop.f32.mrb[0].mxu0
    %v3585 = vadd.f32 %v2979, %v3584
    %v3586 = vpop.f32.mrb[0].mxu0
    %v3587 = vadd.f32 %v2983, %v3586
    %3588 = vmatprep.mubr.bf16.mxu0 %v2897
    %3589 = vmatmul.mubr.bf16.gmra.mrb[0].mxu0 %v2896
    %v3590 = vpop.f32.mrb[0].mxu0
    %v3591 = vadd.f32 %v2979, %v3590
    %v3592 = vpop.f32.mrb[0].mxu0
    %v3593 = vadd.f32 %v2983, %v3592
    %v3594 = vpop.f32.mrb[0].mxu0
    %v3595 = vadd.f32 %v2979, %v3594
    %v3596 = vpop.f32.mrb[0].mxu0
    %v3597 = vadd.f32 %v2983, %v3596
    %3598 = vmatprep.mubr.bf16.mxu0 %v2899
    %3599 = vmatmul.mubr.bf16.gmra.mrb[0].mxu0 %v2898
    %v3600 = vpop.f32.mrb[0].mxu0
    %v3601 = vadd.f32 %v2979, %v3600
    %v3602 = vpop.f32.mrb[0].mxu0
    %v3603 = vadd.f32 %v2983, %v3602
    %v3604 = vpop.f32.mrb[0].mxu0
    %v3605 = vadd.f32 %v2979, %v3604
    %v3606 = vpop.f32.mrb[0].mxu0
    %v3607 = vadd.f32 %v2983, %v3606
    %3608 = vmatprep.mubr.bf16.mxu0 %v2901
    %3609 = vmatmul.mubr.bf16.gmra.mrb[0].mxu0 %v2900
    %v3610 = vpop.f32.mrb[0].mxu0
    %v3611 = vadd.f32 %v2979, %v3610
    %v3612 = vpop.f32.mrb[0].mxu0
    %v3613 = vadd.f32 %v2983, %v3612
    %v3614 = vpop.f32.mrb[0].mxu0
    %v3615 = vadd.f32 %v2979, %v3614
    %v3616 = vpop.f32.mrb[0].mxu0
    %v3617 = vadd.f32 %v2983, %v3616
    %3618 = vmatprep.mubr.bf16.mxu0 %v2903
    %3619 = vmatmul.mubr.bf16.gmra.mrb[0].mxu0 %v2902
    %v3620 = vpop.f32.mrb[0].mxu0
    %v3621 = vadd.f32 %v2979, %v3620
    %v3622 = vpop.f32.mrb[0].mxu0
    %v3623 = vadd.f32 %v2983, %v3622
    %v3624 = vpop.f32.mrb[0].mxu0
    %v3625 = vadd.f32 %v2979, %v3624
    %v3626 = vpop.f32.mrb[0].mxu0
    %v3627 = vadd.f32 %v2983, %v3626
    %3628 = vmatprep.mubr.bf16.mxu0 %v2905
    %3629 = vmatmul.mubr.bf16.gmra.mrb[0].mxu0 %v2904
    %v3630 = vpop.f32.mrb[0].mxu0
    %v3631 = vadd.f32 %v2979, %v3630
    %v3632 = vpop.f32.mrb[0].mxu0
    %v3633 = vadd.f32 %v2983, %v3632
    %v3634 = vpop.f32.mrb[0].mxu0
    %v3635 = vadd.f32 %v2979, %v3634
    %v3636 = vpop.f32.mrb[0].mxu0
    %v3637 = vadd.f32 %v2983, %v3636
    %3638 = vmatprep.mubr.bf16.mxu0 %v2907
    %3639 = vmatmul.mubr.bf16.gmra.mrb[0].mxu0 %v2906
    %v3640 = vpop.f32.mrb[0].mxu0
    %v3641 = vadd.f32 %v2979, %v3640
    %v3642 = vpop.f32.mrb[0].mxu0
    %v3643 = vadd.f32 %v2983, %v3642
    %v3644 = vpop.f32.mrb[0].mxu0
    %v3645 = vadd.f32 %v2979, %v3644
    %v3646 = vpop.f32.mrb[0].mxu0
    %v3647 = vadd.f32 %v2983, %v3646
    %3648 = vmatprep.mubr.bf16.mxu0 %v2909
    %3649 = vmatmul.mubr.bf16.gmra.mrb[0].mxu0 %v2908
    %v3650 = vpop.f32.mrb[0].mxu0
    %v3651 = vadd.f32 %v2979, %v3650
    %v3652 = vpop.f32.mrb[0].mxu0
    %v3653 = vadd.f32 %v2983, %v3652
    %v3654 = vpop.f32.mrb[0].mxu0
    %v3655 = vadd.f32 %v2979, %v3654
    %v3656 = vpop.f32.mrb[0].mxu0
    %v3657 = vadd.f32 %v2983, %v3656
    %3658 = vmatprep.mubr.bf16.mxu0 %v2911
    %3659 = vmatmul.mubr.bf16.gmra.mrb[0].mxu0 %v2910
    %v3660 = vpop.f32.mrb[0].mxu0
    %v3661 = vadd.f32 %v2979, %v3660
    %v3662 = vpop.f32.mrb[0].mxu0
    %v3663 = vadd.f32 %v2983, %v3662
    %v3664 = vpop.f32.mrb[0].mxu0
    %v3665 = vadd.f32 %v2979, %v3664
    %v3666 = vpop.f32.mrb[0].mxu0
    %v3667 = vadd.f32 %v2983, %v3666
    %3668 = vmatprep.mubr.bf16.mxu0 %v2913
    %3669 = vmatmul.mubr.bf16.gmra.mrb[0].mxu0 %v2912
    %v3670 = vpop.f32.mrb[0].mxu0
    %v3671 = vadd.f32 %v2979, %v3670
    %v3672 = vpop.f32.mrb[0].mxu0
    %v3673 = vadd.f32 %v2983, %v3672
    %v3674 = vpop.f32.mrb[0].mxu0
    %v3675 = vadd.f32 %v2979, %v3674
    %v3676 = vpop.f32.mrb[0].mxu0
    %v3677 = vadd.f32 %v2983, %v3676
    %3678 = vmatprep.mubr.bf16.mxu0 %v2915
    %3679 = vmatmul.mubr.bf16.gmra.mrb[0].mxu0 %v2914
    %v3680 = vpop.f32.mrb[0].mxu0
    %v3681 = vadd.f32 %v2979, %v3680
    %v3682 = vpop.f32.mrb[0].mxu0
    %v3683 = vadd.f32 %v2983, %v3682
    %v3684 = vpop.f32.mrb[0].mxu0
    %v3685 = vadd.f32 %v2979, %v3684
    %v3686 = vpop.f32.mrb[0].mxu0
    %v3687 = vadd.f32 %v2983, %v3686
    %3688 = vmatprep.mubr.bf16.mxu0 %v2917
    %3689 = vmatmul.mubr.bf16.gmra.mrb[0].mxu0 %v2916
    %v3690 = vpop.f32.mrb[0].mxu0
    %v3691 = vadd.f32 %v2979, %v3690
    %v3692 = vpop.f32.mrb[0].mxu0
    %v3693 = vadd.f32 %v2983, %v3692
    %v3694 = vpop.f32.mrb[0].mxu0
    %v3695 = vadd.f32 %v2979, %v3694
    %v3696 = vpop.f32.mrb[0].mxu0
    %v3697 = vadd.f32 %v2983, %v3696
    %3698 = vmatprep.mubr.bf16.mxu0 %v2919
    %3699 = vmatmul.mubr.bf16.gmra.mrb[0].mxu0 %v2918
    %v3700 = vpop.f32.mrb[0].mxu0
    %v3701 = vadd.f32 %v2979, %v3700
    %v3702 = vpop.f32.mrb[0].mxu0
    %v3703 = vadd.f32 %v2983, %v3702
    %v3704 = vpop.f32.mrb[0].mxu0
    %v3705 = vadd.f32 %v2979, %v3704
    %v3706 = vpop.f32.mrb[0].mxu0
    %v3707 = vadd.f32 %v2983, %v3706
    %3708 = vmatprep.mubr.bf16.mxu0 %v2921
    %3709 = vmatmul.mubr.bf16.gmra.mrb[0].mxu0 %v2920
    %v3710 = vpop.f32.mrb[0].mxu0
    %v3711 = vadd.f32 %v2979, %v3710
    %v3712 = vpop.f32.mrb[0].mxu0
    %v3713 = vadd.f32 %v2983, %v3712
    %v3714 = vpop.f32.mrb[0].mxu0
    %v3715 = vadd.f32 %v2979, %v3714
    %v3716 = vpop.f32.mrb[0].mxu0
    %v3717 = vadd.f32 %v2983, %v3716
    %3718 = vmatprep.mubr.bf16.mxu0 %v2923
    %3719 = vmatmul.mubr.bf16.gmra.mrb[0].mxu0 %v2922
    %v3720 = vpop.f32.mrb[0].mxu0
    %v3721 = vadd.f32 %v2979, %v3720
    %v3722 = vpop.f32.mrb[0].mxu0
    %v3723 = vadd.f32 %v2983, %v3722
    %v3724 = vpop.f32.mrb[0].mxu0
    %v3725 = vadd.f32 %v2979, %v3724
    %v3726 = vpop.f32.mrb[0].mxu0
    %v3727 = vadd.f32 %v2983, %v3726
    %3728 = vmatprep.mubr.bf16.mxu0 %v2925
    %3729 = vmatmul.mubr.bf16.gmra.mrb[0].mxu0 %v2924
    %v3730 = vpop.f32.mrb[0].mxu0
    %v3731 = vadd.f32 %v2979, %v3730
    %v3732 = vpop.f32.mrb[0].mxu0
    %v3733 = vadd.f32 %v2983, %v3732
    %v3734 = vpop.f32.mrb[0].mxu0
    %v3735 = vadd.f32 %v2979, %v3734
    %v3736 = vpop.f32.mrb[0].mxu0
    %v3737 = vadd.f32 %v2983, %v3736
    %3738 = vmatprep.mubr.bf16.mxu0 %v2927
    %3739 = vmatmul.mubr.bf16.gmra.mrb[0].mxu0 %v2926
    %v3740 = vpop.f32.mrb[0].mxu0
    %v3741 = vadd.f32 %v2979, %v3740
    %v3742 = vpop.f32.mrb[0].mxu0
    %v3743 = vadd.f32 %v2983, %v3742
    %v3744 = vpop.f32.mrb[0].mxu0
    %v3745 = vadd.f32 %v2979, %v3744
    %v3746 = vpop.f32.mrb[0].mxu0
    %v3747 = vadd.f32 %v2983, %v3746
    %3748 = vmatprep.mubr.bf16.mxu0 %v2929
    %3749 = vmatmul.mubr.bf16.gmra.mrb[0].mxu0 %v2928
    %v3750 = vpop.f32.mrb[0].mxu0
    %v3751 = vadd.f32 %v2979, %v3750
    %v3752 = vpop.f32.mrb[0].mxu0
    %v3753 = vadd.f32 %v2983, %v3752
    %v3754 = vpop.f32.mrb[0].mxu0
    %v3755 = vadd.f32 %v2979, %v3754
    %v3756 = vpop.f32.mrb[0].mxu0
    %v3757 = vadd.f32 %v2983, %v3756
    %3758 = vmatprep.mubr.bf16.mxu0 %v2931
    %3759 = vmatmul.mubr.bf16.gmra.mrb[0].mxu0 %v2930
    %v3760 = vpop.f32.mrb[0].mxu0
    %v3761 = vadd.f32 %v2979, %v3760
    %v3762 = vpop.f32.mrb[0].mxu0
    %v3763 = vadd.f32 %v2983, %v3762
    %v3764 = vpop.f32.mrb[0].mxu0
    %v3765 = vadd.f32 %v2979, %v3764
    %v3766 = vpop.f32.mrb[0].mxu0
    %v3767 = vadd.f32 %v2983, %v3766
    %3768 = vmatprep.mubr.bf16.mxu0 %v2933
    %3769 = vmatmul.mubr.bf16.gmra.mrb[0].mxu0 %v2932
    %v3770 = vpop.f32.mrb[0].mxu0
    %v3771 = vadd.f32 %v2979, %v3770
    %v3772 = vpop.f32.mrb[0].mxu0
    %v3773 = vadd.f32 %v2983, %v3772
    %v3774 = vpop.f32.mrb[0].mxu0
    %v3775 = vadd.f32 %v2979, %v3774
    %v3776 = vpop.f32.mrb[0].mxu0
    %v3777 = vadd.f32 %v2983, %v3776
    %3778 = vmatprep.mubr.bf16.mxu0 %v2935
    %3779 = vmatmul.mubr.bf16.gmra.mrb[0].mxu0 %v2934
    %v3780 = vpop.f32.mrb[0].mxu0
    %v3781 = vadd.f32 %v2979, %v3780
    %v3782 = vpop.f32.mrb[0].mxu0
    %v3783 = vadd.f32 %v2983, %v3782
    %v3784 = vpop.f32.mrb[0].mxu0
    %v3785 = vadd.f32 %v2979, %v3784
    %v3786 = vpop.f32.mrb[0].mxu0
    %v3787 = vadd.f32 %v2983, %v3786
    %3788 = vmatprep.mubr.bf16.mxu0 %v2937
    %3789 = vmatmul.mubr.bf16.gmra.mrb[0].mxu0 %v2936
    %v3790 = vpop.f32.mrb[0].mxu0
    %v3791 = vadd.f32 %v2979, %v3790
    %v3792 = vpop.f32.mrb[0].mxu0
    %v3793 = vadd.f32 %v2983, %v3792
    %v3794 = vpop.f32.mrb[0].mxu0
    %v3795 = vadd.f32 %v2979, %v3794
    %v3796 = vpop.f32.mrb[0].mxu0
    %v3797 = vadd.f32 %v2983, %v3796
    %3798 = vmatprep.mubr.bf16.mxu0 %v2939
    %3799 = vmatmul.mubr.bf16.gmra.mrb[0].mxu0 %v2938
    %v3800 = vpop.f32.mrb[0].mxu0
    %v3801 = vadd.f32 %v2979, %v3800
    %v3802 = vpop.f32.mrb[0].mxu0
    %v3803 = vadd.f32 %v2983, %v3802
    %v3804 = vpop.f32.mrb[0].mxu0
    %v3805 = vadd.f32 %v2979, %v3804
    %v3806 = vpop.f32.mrb[0].mxu0
    %v3807 = vadd.f32 %v2983, %v3806
    %3808 = vmatprep.mubr.bf16.mxu0 %v2941
    %3809 = vmatmul.mubr.bf16.gmra.mrb[0].mxu0 %v2940
    %v3810 = vpop.f32.mrb[0].mxu0
    %v3811 = vadd.f32 %v2979, %v3810
    %v3812 = vpop.f32.mrb[0].mxu0
    %v3813 = vadd.f32 %v2983, %v3812
    %v3814 = vpop.f32.mrb[0].mxu0
    %v3815 = vadd.f32 %v2979, %v3814
    %v3816 = vpop.f32.mrb[0].mxu0
    %v3817 = vadd.f32 %v2983, %v3816
    %3818 = vdwg.mxu0
    %v3819 = vmax.f32 %v3181, 0.0
    %v3820 = vmax.f32 %v3183, 0.0
    %v3821 = vmax.f32 %v3185, 0.0
    %v3822 = vmax.f32 %v3187, 0.0
    %v3823 = vmax.f32 %v3191, 0.0
    %v3824 = vmax.f32 %v3193, 0.0
    %v3825 = vmax.f32 %v3195, 0.0
    %v3826 = vmax.f32 %v3197, 0.0
    %v3827 = vmax.f32 %v3201, 0.0
    %v3828 = vmax.f32 %v3203, 0.0
    %v3829 = vmax.f32 %v3205, 0.0
    %v3830 = vmax.f32 %v3207, 0.0
    %v3831 = vmax.f32 %v3211, 0.0
    %v3832 = vmax.f32 %v3213, 0.0
    %v3833 = vmax.f32 %v3215, 0.0
    %v3834 = vmax.f32 %v3217, 0.0
    %v3835 = vmax.f32 %v3221, 0.0
    %v3836 = vmax.f32 %v3223, 0.0
    %v3837 = vmax.f32 %v3225, 0.0
    %v3838 = vmax.f32 %v3227, 0.0
    %v3839 = vmax.f32 %v3231, 0.0
    %v3840 = vmax.f32 %v3233, 0.0
    %v3841 = vmax.f32 %v3235, 0.0
    %v3842 = vmax.f32 %v3237, 0.0
    %v3843 = vmax.f32 %v3241, 0.0
    %v3844 = vmax.f32 %v3243, 0.0
    %v3845 = vmax.f32 %v3245, 0.0
    %v3846 = vmax.f32 %v3247, 0.0
    %v3847 = vmax.f32 %v3251, 0.0
    %v3848 = vmax.f32 %v3253, 0.0
    %v3849 = vmax.f32 %v3255, 0.0
    %v3850 = vmax.f32 %v3257, 0.0
    %v3851 = vmax.f32 %v3261, 0.0
    %v3852 = vmax.f32 %v3263, 0.0
    %v3853 = vmax.f32 %v3265, 0.0
    %v3854 = vmax.f32 %v3267, 0.0
    %v3855 = vmax.f32 %v3271, 0.0
    %v3856 = vmax.f32 %v3273, 0.0
    %v3857 = vmax.f32 %v3275, 0.0
    %v3858 = vmax.f32 %v3277, 0.0
    %v3859 = vmax.f32 %v3281, 0.0
    %v3860 = vmax.f32 %v3283, 0.0
    %v3861 = vmax.f32 %v3285, 0.0
    %v3862 = vmax.f32 %v3287, 0.0
    %v3863 = vmax.f32 %v3291, 0.0
    %v3864 = vmax.f32 %v3293, 0.0
    %v3865 = vmax.f32 %v3295, 0.0
    %v3866 = vmax.f32 %v3297, 0.0
    %v3867 = vmax.f32 %v3301, 0.0
    %v3868 = vmax.f32 %v3303, 0.0
    %v3869 = vmax.f32 %v3305, 0.0
    %v3870 = vmax.f32 %v3307, 0.0
    %v3871 = vmax.f32 %v3311, 0.0
    %v3872 = vmax.f32 %v3313, 0.0
    %v3873 = vmax.f32 %v3315, 0.0
    %v3874 = vmax.f32 %v3317, 0.0
    %v3875 = vmax.f32 %v3321, 0.0
    %v3876 = vmax.f32 %v3323, 0.0
    %v3877 = vmax.f32 %v3325, 0.0
    %v3878 = vmax.f32 %v3327, 0.0
    %v3879 = vmax.f32 %v3331, 0.0
    %v3880 = vmax.f32 %v3333, 0.0
    %v3881 = vmax.f32 %v3335, 0.0
    %v3882 = vmax.f32 %v3337, 0.0
    %v3883 = vmax.f32 %v3341, 0.0
    %v3884 = vmax.f32 %v3343, 0.0
    %v3885 = vmax.f32 %v3345, 0.0
    %v3886 = vmax.f32 %v3347, 0.0
    %v3887 = vmax.f32 %v3351, 0.0
    %v3888 = vmax.f32 %v3353, 0.0
    %v3889 = vmax.f32 %v3355, 0.0
    %v3890 = vmax.f32 %v3357, 0.0
    %v3891 = vmax.f32 %v3361, 0.0
    %v3892 = vmax.f32 %v3363, 0.0
    %v3893 = vmax.f32 %v3365, 0.0
    %v3894 = vmax.f32 %v3367, 0.0
    %v3895 = vmax.f32 %v3371, 0.0
    %v3896 = vmax.f32 %v3373, 0.0
    %v3897 = vmax.f32 %v3375, 0.0
    %v3898 = vmax.f32 %v3377, 0.0
    %v3899 = vmax.f32 %v3381, 0.0
    %v3900 = vmax.f32 %v3383, 0.0
    %v3901 = vmax.f32 %v3385, 0.0
    %v3902 = vmax.f32 %v3387, 0.0
    %v3903 = vmax.f32 %v3391, 0.0
    %v3904 = vmax.f32 %v3393, 0.0
    %v3905 = vmax.f32 %v3395, 0.0
    %v3906 = vmax.f32 %v3397, 0.0
    %v3907 = vmax.f32 %v3401, 0.0
    %v3908 = vmax.f32 %v3403, 0.0
    %v3909 = vmax.f32 %v3405, 0.0
    %v3910 = vmax.f32 %v3407, 0.0
    %v3911 = vmax.f32 %v3411, 0.0
    %v3912 = vmax.f32 %v3413, 0.0
    %v3913 = vmax.f32 %v3415, 0.0
    %v3914 = vmax.f32 %v3417, 0.0
    %v3915 = vmax.f32 %v3421, 0.0
    %v3916 = vmax.f32 %v3423, 0.0
    %v3917 = vmax.f32 %v3425, 0.0
    %v3918 = vmax.f32 %v3427, 0.0
    %v3919 = vmax.f32 %v3431, 0.0
    %v3920 = vmax.f32 %v3433, 0.0
    %v3921 = vmax.f32 %v3435, 0.0
    %v3922 = vmax.f32 %v3437, 0.0
    %v3923 = vmax.f32 %v3441, 0.0
    %v3924 = vmax.f32 %v3443, 0.0
    %v3925 = vmax.f32 %v3445, 0.0
    %v3926 = vmax.f32 %v3447, 0.0
    %v3927 = vmax.f32 %v3451, 0.0
    %v3928 = vmax.f32 %v3453, 0.0
    %v3929 = vmax.f32 %v3455, 0.0
    %v3930 = vmax.f32 %v3457, 0.0
    %v3931 = vmax.f32 %v3461, 0.0
    %v3932 = vmax.f32 %v3463, 0.0
    %v3933 = vmax.f32 %v3465, 0.0
    %v3934 = vmax.f32 %v3467, 0.0
    %v3935 = vmax.f32 %v3471, 0.0
    %v3936 = vmax.f32 %v3473, 0.0
    %v3937 = vmax.f32 %v3475, 0.0
    %v3938 = vmax.f32 %v3477, 0.0
    %v3939 = vmax.f32 %v3481, 0.0
    %v3940 = vmax.f32 %v3483, 0.0
    %v3941 = vmax.f32 %v3485, 0.0
    %v3942 = vmax.f32 %v3487, 0.0
    %v3943 = vmax.f32 %v3491, 0.0
    %v3944 = vmax.f32 %v3493, 0.0
    %v3945 = vmax.f32 %v3495, 0.0
    %v3946 = vmax.f32 %v3497, 0.0
    %v3947 = vmax.f32 %v3501, 0.0
    %v3948 = vmax.f32 %v3503, 0.0
    %v3949 = vmax.f32 %v3505, 0.0
    %v3950 = vmax.f32 %v3507, 0.0
    %v3951 = vmax.f32 %v3511, 0.0
    %v3952 = vmax.f32 %v3513, 0.0
    %v3953 = vmax.f32 %v3515, 0.0
    %v3954 = vmax.f32 %v3517, 0.0
    %v3955 = vmax.f32 %v3521, 0.0
    %v3956 = vmax.f32 %v3523, 0.0
    %v3957 = vmax.f32 %v3525, 0.0
    %v3958 = vmax.f32 %v3527, 0.0
    %v3959 = vmax.f32 %v3531, 0.0
    %v3960 = vmax.f32 %v3533, 0.0
    %v3961 = vmax.f32 %v3535, 0.0
    %v3962 = vmax.f32 %v3537, 0.0
    %v3963 = vmax.f32 %v3541, 0.0
    %v3964 = vmax.f32 %v3543, 0.0
    %v3965 = vmax.f32 %v3545, 0.0
    %v3966 = vmax.f32 %v3547, 0.0
    %v3967 = vmax.f32 %v3551, 0.0
    %v3968 = vmax.f32 %v3553, 0.0
    %v3969 = vmax.f32 %v3555, 0.0
    %v3970 = vmax.f32 %v3557, 0.0
    %v3971 = vmax.f32 %v3561, 0.0
    %v3972 = vmax.f32 %v3563, 0.0
    %v3973 = vmax.f32 %v3565, 0.0
    %v3974 = vmax.f32 %v3567, 0.0
    %v3975 = vmax.f32 %v3571, 0.0
    %v3976 = vmax.f32 %v3573, 0.0
    %v3977 = vmax.f32 %v3575, 0.0
    %v3978 = vmax.f32 %v3577, 0.0
    %v3979 = vmax.f32 %v3581, 0.0
    %v3980 = vmax.f32 %v3583, 0.0
    %v3981 = vmax.f32 %v3585, 0.0
    %v3982 = vmax.f32 %v3587, 0.0
    %v3983 = vmax.f32 %v3591, 0.0
    %v3984 = vmax.f32 %v3593, 0.0
    %v3985 = vmax.f32 %v3595, 0.0
    %v3986 = vmax.f32 %v3597, 0.0
    %v3987 = vmax.f32 %v3601, 0.0
    %v3988 = vmax.f32 %v3603, 0.0
    %v3989 = vmax.f32 %v3605, 0.0
    %v3990 = vmax.f32 %v3607, 0.0
    %v3991 = vmax.f32 %v3611, 0.0
    %v3992 = vmax.f32 %v3613, 0.0
    %v3993 = vmax.f32 %v3615, 0.0
    %v3994 = vmax.f32 %v3617, 0.0
    %v3995 = vmax.f32 %v3621, 0.0
    %v3996 = vmax.f32 %v3623, 0.0
    %v3997 = vmax.f32 %v3625, 0.0
    %v3998 = vmax.f32 %v3627, 0.0
    %v3999 = vmax.f32 %v3631, 0.0
    %v4000 = vmax.f32 %v3633, 0.0
    %v4001 = vmax.f32 %v3635, 0.0
    %v4002 = vmax.f32 %v3637, 0.0
    %v4003 = vmax.f32 %v3641, 0.0
    %v4004 = vmax.f32 %v3643, 0.0
    %v4005 = vmax.f32 %v3645, 0.0
    %v4006 = vmax.f32 %v3647, 0.0
    %v4007 = vmax.f32 %v3651, 0.0
    %v4008 = vmax.f32 %v3653, 0.0
    %v4009 = vmax.f32 %v3655, 0.0
    %v4010 = vmax.f32 %v3657, 0.0
    %v4011 = vmax.f32 %v3661, 0.0
    %v4012 = vmax.f32 %v3663, 0.0
    %v4013 = vmax.f32 %v3665, 0.0
    %v4014 = vmax.f32 %v3667, 0.0
    %v4015 = vmax.f32 %v3671, 0.0
    %v4016 = vmax.f32 %v3673, 0.0
    %v4017 = vmax.f32 %v3675, 0.0
    %v4018 = vmax.f32 %v3677, 0.0
    %v4019 = vmax.f32 %v3681, 0.0
    %v4020 = vmax.f32 %v3683, 0.0
    %v4021 = vmax.f32 %v3685, 0.0
    %v4022 = vmax.f32 %v3687, 0.0
    %v4023 = vmax.f32 %v3691, 0.0
    %v4024 = vmax.f32 %v3693, 0.0
    %v4025 = vmax.f32 %v3695, 0.0
    %v4026 = vmax.f32 %v3697, 0.0
    %v4027 = vmax.f32 %v3701, 0.0
    %v4028 = vmax.f32 %v3703, 0.0
    %v4029 = vmax.f32 %v3705, 0.0
    %v4030 = vmax.f32 %v3707, 0.0
    %v4031 = vmax.f32 %v3711, 0.0
    %v4032 = vmax.f32 %v3713, 0.0
    %v4033 = vmax.f32 %v3715, 0.0
    %v4034 = vmax.f32 %v3717, 0.0
    %v4035 = vmax.f32 %v3721, 0.0
    %v4036 = vmax.f32 %v3723, 0.0
    %v4037 = vmax.f32 %v3725, 0.0
    %v4038 = vmax.f32 %v3727, 0.0
    %v4039 = vmax.f32 %v3731, 0.0
    %v4040 = vmax.f32 %v3733, 0.0
    %v4041 = vmax.f32 %v3735, 0.0
    %v4042 = vmax.f32 %v3737, 0.0
    %v4043 = vmax.f32 %v3741, 0.0
    %v4044 = vmax.f32 %v3743, 0.0
    %v4045 = vmax.f32 %v3745, 0.0
    %v4046 = vmax.f32 %v3747, 0.0
    %v4047 = vmax.f32 %v3751, 0.0
    %v4048 = vmax.f32 %v3753, 0.0
    %v4049 = vmax.f32 %v3755, 0.0
    %v4050 = vmax.f32 %v3757, 0.0
    %v4051 = vmax.f32 %v3761, 0.0
    %v4052 = vmax.f32 %v3763, 0.0
    %v4053 = vmax.f32 %v3765, 0.0
    %v4054 = vmax.f32 %v3767, 0.0
    %v4055 = vmax.f32 %v3771, 0.0
    %v4056 = vmax.f32 %v3773, 0.0
    %v4057 = vmax.f32 %v3775, 0.0
    %v4058 = vmax.f32 %v3777, 0.0
    %v4059 = vmax.f32 %v3781, 0.0
    %v4060 = vmax.f32 %v3783, 0.0
    %v4061 = vmax.f32 %v3785, 0.0
    %v4062 = vmax.f32 %v3787, 0.0
    %v4063 = vmax.f32 %v3791, 0.0
    %v4064 = vmax.f32 %v3793, 0.0
    %v4065 = vmax.f32 %v3795, 0.0
    %v4066 = vmax.f32 %v3797, 0.0
    %v4067 = vmax.f32 %v3801, 0.0
    %v4068 = vmax.f32 %v3803, 0.0
    %v4069 = vmax.f32 %v3805, 0.0
    %v4070 = vmax.f32 %v3807, 0.0
    %v4071 = vmax.f32 %v3811, 0.0
    %v4072 = vmax.f32 %v3813, 0.0
    %v4073 = vmax.f32 %v3815, 0.0
    %v4074 = vmax.f32 %v3817, 0.0
    %v4075 = vpack.c.bf16 %v3821, %v3819
    %v4076 = vpack.c.bf16 %v3822, %v3820
    %v4077 = vpack.c.bf16 %v3825, %v3823
    %v4078 = vpack.c.bf16 %v3826, %v3824
    %v4079 = vpack.c.bf16 %v3829, %v3827
    %v4080 = vpack.c.bf16 %v3830, %v3828
    %v4081 = vpack.c.bf16 %v3833, %v3831
    %v4082 = vpack.c.bf16 %v3834, %v3832
    %v4083 = vpack.c.bf16 %v3837, %v3835
    %v4084 = vpack.c.bf16 %v3838, %v3836
    %v4085 = vpack.c.bf16 %v3841, %v3839
    %v4086 = vpack.c.bf16 %v3842, %v3840
    %v4087 = vpack.c.bf16 %v3845, %v3843
    %v4088 = vpack.c.bf16 %v3846, %v3844
    %v4089 = vpack.c.bf16 %v3849, %v3847
    %v4090 = vpack.c.bf16 %v3850, %v3848
    %v4091 = vpack.c.bf16 %v3853, %v3851
    %v4092 = vpack.c.bf16 %v3854, %v3852
    %v4093 = vpack.c.bf16 %v3857, %v3855
    %v4094 = vpack.c.bf16 %v3858, %v3856
    %v4095 = vpack.c.bf16 %v3861, %v3859
    %v4096 = vpack.c.bf16 %v3862, %v3860
    %v4097 = vpack.c.bf16 %v3865, %v3863
    %v4098 = vpack.c.bf16 %v3866, %v3864
    %v4099 = vpack.c.bf16 %v3869, %v3867
    %v4100 = vpack.c.bf16 %v3870, %v3868
    %v4101 = vpack.c.bf16 %v3873, %v3871
    %v4102 = vpack.c.bf16 %v3874, %v3872
    %v4103 = vpack.c.bf16 %v3877, %v3875
    %v4104 = vpack.c.bf16 %v3878, %v3876
    %v4105 = vpack.c.bf16 %v3881, %v3879
    %v4106 = vpack.c.bf16 %v3882, %v3880
    %v4107 = vpack.c.bf16 %v3885, %v3883
    %v4108 = vpack.c.bf16 %v3886, %v3884
    %v4109 = vpack.c.bf16 %v3889, %v3887
    %v4110 = vpack.c.bf16 %v3890, %v3888
    %v4111 = vpack.c.bf16 %v3893, %v3891
    %v4112 = vpack.c.bf16 %v3894, %v3892
    %v4113 = vpack.c.bf16 %v3897, %v3895
    %v4114 = vpack.c.bf16 %v3898, %v3896
    %v4115 = vpack.c.bf16 %v3901, %v3899
    %v4116 = vpack.c.bf16 %v3902, %v3900
    %v4117 = vpack.c.bf16 %v3905, %v3903
    %v4118 = vpack.c.bf16 %v3906, %v3904
    %v4119 = vpack.c.bf16 %v3909, %v3907
    %v4120 = vpack.c.bf16 %v3910, %v3908
    %v4121 = vpack.c.bf16 %v3913, %v3911
    %v4122 = vpack.c.bf16 %v3914, %v3912
    %v4123 = vpack.c.bf16 %v3917, %v3915
    %v4124 = vpack.c.bf16 %v3918, %v3916
    %v4125 = vpack.c.bf16 %v3921, %v3919
    %v4126 = vpack.c.bf16 %v3922, %v3920
    %v4127 = vpack.c.bf16 %v3925, %v3923
    %v4128 = vpack.c.bf16 %v3926, %v3924
    %v4129 = vpack.c.bf16 %v3929, %v3927
    %v4130 = vpack.c.bf16 %v3930, %v3928
    %v4131 = vpack.c.bf16 %v3933, %v3931
    %v4132 = vpack.c.bf16 %v3934, %v3932
    %v4133 = vpack.c.bf16 %v3937, %v3935
    %v4134 = vpack.c.bf16 %v3938, %v3936
    %v4135 = vpack.c.bf16 %v3941, %v3939
    %v4136 = vpack.c.bf16 %v3942, %v3940
    %v4137 = vpack.c.bf16 %v3945, %v3943
    %v4138 = vpack.c.bf16 %v3946, %v3944
    %v4139 = vpack.c.bf16 %v3949, %v3947
    %v4140 = vpack.c.bf16 %v3950, %v3948
    %v4141 = vpack.c.bf16 %v3953, %v3951
    %v4142 = vpack.c.bf16 %v3954, %v3952
    %v4143 = vpack.c.bf16 %v3957, %v3955
    %v4144 = vpack.c.bf16 %v3958, %v3956
    %v4145 = vpack.c.bf16 %v3961, %v3959
    %v4146 = vpack.c.bf16 %v3962, %v3960
    %v4147 = vpack.c.bf16 %v3965, %v3963
    %v4148 = vpack.c.bf16 %v3966, %v3964
    %v4149 = vpack.c.bf16 %v3969, %v3967
    %v4150 = vpack.c.bf16 %v3970, %v3968
    %v4151 = vpack.c.bf16 %v3973, %v3971
    %v4152 = vpack.c.bf16 %v3974, %v3972
    %v4153 = vpack.c.bf16 %v3977, %v3975
    %v4154 = vpack.c.bf16 %v3978, %v3976
    %v4155 = vpack.c.bf16 %v3981, %v3979
    %v4156 = vpack.c.bf16 %v3982, %v3980
    %v4157 = vpack.c.bf16 %v3985, %v3983
    %v4158 = vpack.c.bf16 %v3986, %v3984
    %v4159 = vpack.c.bf16 %v3989, %v3987
    %v4160 = vpack.c.bf16 %v3990, %v3988
    %v4161 = vpack.c.bf16 %v3993, %v3991
    %v4162 = vpack.c.bf16 %v3994, %v3992
    %v4163 = vpack.c.bf16 %v3997, %v3995
    %v4164 = vpack.c.bf16 %v3998, %v3996
    %v4165 = vpack.c.bf16 %v4001, %v3999
    %v4166 = vpack.c.bf16 %v4002, %v4000
    %v4167 = vpack.c.bf16 %v4005, %v4003
    %v4168 = vpack.c.bf16 %v4006, %v4004
    %v4169 = vpack.c.bf16 %v4009, %v4007
    %v4170 = vpack.c.bf16 %v4010, %v4008
    %v4171 = vpack.c.bf16 %v4013, %v4011
    %v4172 = vpack.c.bf16 %v4014, %v4012
    %v4173 = vpack.c.bf16 %v4017, %v4015
    %v4174 = vpack.c.bf16 %v4018, %v4016
    %v4175 = vpack.c.bf16 %v4021, %v4019
    %v4176 = vpack.c.bf16 %v4022, %v4020
    %v4177 = vpack.c.bf16 %v4025, %v4023
    %v4178 = vpack.c.bf16 %v4026, %v4024
    %v4179 = vpack.c.bf16 %v4029, %v4027
    %v4180 = vpack.c.bf16 %v4030, %v4028
    %v4181 = vpack.c.bf16 %v4033, %v4031
    %v4182 = vpack.c.bf16 %v4034, %v4032
    %v4183 = vpack.c.bf16 %v4037, %v4035
    %v4184 = vpack.c.bf16 %v4038, %v4036
    %v4185 = vpack.c.bf16 %v4041, %v4039
    %v4186 = vpack.c.bf16 %v4042, %v4040
    %v4187 = vpack.c.bf16 %v4045, %v4043
    %v4188 = vpack.c.bf16 %v4046, %v4044
    %v4189 = vpack.c.bf16 %v4049, %v4047
    %v4190 = vpack.c.bf16 %v4050, %v4048
    %v4191 = vpack.c.bf16 %v4053, %v4051
    %v4192 = vpack.c.bf16 %v4054, %v4052
    %v4193 = vpack.c.bf16 %v4057, %v4055
    %v4194 = vpack.c.bf16 %v4058, %v4056
    %v4195 = vpack.c.bf16 %v4061, %v4059
    %v4196 = vpack.c.bf16 %v4062, %v4060
    %v4197 = vpack.c.bf16 %v4065, %v4063
    %v4198 = vpack.c.bf16 %v4066, %v4064
    %v4199 = vpack.c.bf16 %v4069, %v4067
    %v4200 = vpack.c.bf16 %v4070, %v4068
    %v4201 = vpack.c.bf16 %v4073, %v4071
    %v4202 = vpack.c.bf16 %v4074, %v4072
    %v4203 = vld [vmem:[%s7] sm:$0xf]
    %v4204 = vld [vmem:[%s7 + $0x4] sm:$0xf]
    %v4205 = vld [vmem:[%s7 + $0x8] sm:$0xf]
    %v4206 = vld [vmem:[%s7 + $0xc] sm:$0xf]
    %v4207 = vld [vmem:[%s7 + $0x10] sm:$0xf]
    %v4208 = vld [vmem:[%s7 + $0x14] sm:$0xf]
    %v4209 = vld [vmem:[%s7 + $0x18] sm:$0xf]
    %v4210 = vld [vmem:[%s7 + $0x1c] sm:$0xf]
    %v4211 = vld [vmem:[%s7 + $0x20] sm:$0xf]
    %v4212 = vld [vmem:[%s7 + $0x24] sm:$0xf]
    %v4213 = vld [vmem:[%s7 + $0x28] sm:$0xf]
    %v4214 = vld [vmem:[%s7 + $0x2c] sm:$0xf]
    %v4215 = vld [vmem:[%s7 + $0x30] sm:$0xf]
    %v4216 = vld [vmem:[%s7 + $0x34] sm:$0xf]
    %v4217 = vld [vmem:[%s7 + $0x38] sm:$0xf]
    %v4218 = vld [vmem:[%s7 + $0x3c] sm:$0xf]
    %v4219 = vld [vmem:[%s7 + $0x40] sm:$0xf]
    %v4220 = vld [vmem:[%s7 + $0x44] sm:$0xf]
    %v4221 = vld [vmem:[%s7 + $0x48] sm:$0xf]
    %v4222 = vld [vmem:[%s7 + $0x4c] sm:$0xf]
    %v4223 = vld [vmem:[%s7 + $0x50] sm:$0xf]
    %v4224 = vld [vmem:[%s7 + $0x54] sm:$0xf]
    %v4225 = vld [vmem:[%s7 + $0x58] sm:$0xf]
    %v4226 = vld [vmem:[%s7 + $0x5c] sm:$0xf]
    %v4227 = vld [vmem:[%s7 + $0x60] sm:$0xf]
    %v4228 = vld [vmem:[%s7 + $0x64] sm:$0xf]
    %v4229 = vld [vmem:[%s7 + $0x68] sm:$0xf]
    %v4230 = vld [vmem:[%s7 + $0x6c] sm:$0xf]
    %v4231 = vld [vmem:[%s7 + $0x70] sm:$0xf]
    %v4232 = vld [vmem:[%s7 + $0x74] sm:$0xf]
    %v4233 = vld [vmem:[%s7 + $0x78] sm:$0xf]
    %v4234 = vld [vmem:[%s7 + $0x7c] sm:$0xf]
    %v4235 = vld [vmem:[%s8] sm:$0x1]
    %v4237 = vlaneseq
    %v4238 = vshrl.u32 %v4237, 7
    %v4239 = vsub.s32 0, %v4238
    %v4240 = vrot.slane %v4235, %v4239
    %v4274 = vunpack.c.l.b16 %v4203
    %v4275 = vunpack.c.l.b16 %v4204
    %v4276 = vunpack.c.l.b16 %v4205
    %v4277 = vunpack.c.l.b16 %v4206
    %v4278 = vunpack.c.l.b16 %v4207
    %v4279 = vunpack.c.l.b16 %v4208
    %v4280 = vunpack.c.l.b16 %v4209
    %v4281 = vunpack.c.l.b16 %v4210
    %v4282 = vunpack.c.l.b16 %v4211
    %v4283 = vunpack.c.l.b16 %v4212
    %v4284 = vunpack.c.l.b16 %v4213
    %v4285 = vunpack.c.l.b16 %v4214
    %v4286 = vunpack.c.l.b16 %v4215
    %v4287 = vunpack.c.l.b16 %v4216
    %v4288 = vunpack.c.l.b16 %v4217
    %v4289 = vunpack.c.l.b16 %v4218
    %v4290 = vunpack.c.l.b16 %v4219
    %v4291 = vunpack.c.l.b16 %v4220
    %v4292 = vunpack.c.l.b16 %v4221
    %v4293 = vunpack.c.l.b16 %v4222
    %v4294 = vunpack.c.l.b16 %v4223
    %v4295 = vunpack.c.l.b16 %v4224
    %v4296 = vunpack.c.l.b16 %v4225
    %v4297 = vunpack.c.l.b16 %v4226
    %v4298 = vunpack.c.l.b16 %v4227
    %v4299 = vunpack.c.l.b16 %v4228
    %v4300 = vunpack.c.l.b16 %v4229
    %v4301 = vunpack.c.l.b16 %v4230
    %v4302 = vunpack.c.l.b16 %v4231
    %v4303 = vunpack.c.l.b16 %v4232
    %v4304 = vunpack.c.l.b16 %v4233
    %v4305 = vunpack.c.l.b16 %v4234
    %v4306 = vpack.c.b16 %v4275, %v4274
    %v4307 = vpack.c.b16 %v4277, %v4276
    %v4308 = vpack.c.b16 %v4279, %v4278
    %v4309 = vpack.c.b16 %v4281, %v4280
    %v4310 = vpack.c.b16 %v4283, %v4282
    %v4311 = vpack.c.b16 %v4285, %v4284
    %v4312 = vpack.c.b16 %v4287, %v4286
    %v4313 = vpack.c.b16 %v4289, %v4288
    %v4314 = vpack.c.b16 %v4291, %v4290
    %v4315 = vpack.c.b16 %v4293, %v4292
    %v4316 = vpack.c.b16 %v4295, %v4294
    %v4317 = vpack.c.b16 %v4297, %v4296
    %v4318 = vpack.c.b16 %v4299, %v4298
    %v4319 = vpack.c.b16 %v4301, %v4300
    %v4320 = vpack.c.b16 %v4303, %v4302
    %v4321 = vpack.c.b16 %v4305, %v4304
    %4338 = vmatprep.subr.bf16.mxu0 0
    %4339 = vmatpush1.bf16.msra.mxu0 %v4306
    %4340 = vmatprep.subr.bf16.mxu0 0
    %4341 = vmatpush1.bf16.msra.mxu0 %v4307
    %4342 = vmatprep.subr.bf16.mxu0 0
    %4343 = vmatpush1.bf16.msra.mxu0 %v4308
    %4344 = vmatprep.subr.bf16.mxu0 0
    %4345 = vmatpush1.bf16.msra.mxu0 %v4309
    %4346 = vmatprep.subr.bf16.mxu0 0
    %4347 = vmatpush1.bf16.msra.mxu0 %v4310
    %4348 = vmatprep.subr.bf16.mxu0 0
    %4349 = vmatpush1.bf16.msra.mxu0 %v4311
    %4350 = vmatprep.subr.bf16.mxu0 0
    %4351 = vmatpush1.bf16.msra.mxu0 %v4312
    %4352 = vmatprep.subr.bf16.mxu0 0
    %4353 = vmatpush1.bf16.msra.mxu0 %v4313
    %4354 = vmatprep.subr.bf16.mxu0 0
    %4355 = vmatpush1.bf16.msra.mxu0 %v4314
    %4356 = vmatprep.subr.bf16.mxu0 0
    %4357 = vmatpush1.bf16.msra.mxu0 %v4315
    %4358 = vmatprep.subr.bf16.mxu0 0
    %4359 = vmatpush1.bf16.msra.mxu0 %v4316
    %4360 = vmatprep.subr.bf16.mxu0 0
    %4361 = vmatpush1.bf16.msra.mxu0 %v4317
    %4362 = vmatprep.subr.bf16.mxu0 0
    %4363 = vmatpush1.bf16.msra.mxu0 %v4318
    %4364 = vmatprep.subr.bf16.mxu0 0
    %4365 = vmatpush1.bf16.msra.mxu0 %v4319
    %4366 = vmatprep.subr.bf16.mxu0 0
    %4367 = vmatpush1.bf16.msra.mxu0 %v4320
    %4368 = vmatprep.subr.bf16.mxu0 0
    %4369 = vmatpush1.bf16.msra.mxu0 %v4321
    %4370 = vmatprep.mubr.bf16.mxu0 %v4076
    %4371 = vmatmul.mubr.bf16.gmra.mrb[0].mxu0 %v4075
    %v4372 = vpop.f32.mrb[0].mxu0
    %v4373 = vadd.f32 %v4240, %v4372
    %v4374 = vpop.f32.mrb[0].mxu0
    %v4375 = vpop.f32.mrb[0].mxu0
    %v4376 = vadd.f32 %v4240, %v4375
    %v4377 = vpop.f32.mrb[0].mxu0
    %4378 = vmatprep.mubr.bf16.mxu0 %v4078
    %4379 = vmatmul.mubr.bf16.gmra.mrb[0].mxu0 %v4077
    %v4380 = vpop.f32.mrb[0].mxu0
    %v4381 = vadd.f32 %v4240, %v4380
    %v4382 = vpop.f32.mrb[0].mxu0
    %v4383 = vpop.f32.mrb[0].mxu0
    %v4384 = vadd.f32 %v4240, %v4383
    %v4385 = vpop.f32.mrb[0].mxu0
    %4386 = vmatprep.mubr.bf16.mxu0 %v4080
    %4387 = vmatmul.mubr.bf16.gmra.mrb[0].mxu0 %v4079
    %v4388 = vpop.f32.mrb[0].mxu0
    %v4389 = vadd.f32 %v4240, %v4388
    %v4390 = vpop.f32.mrb[0].mxu0
    %v4391 = vpop.f32.mrb[0].mxu0
    %v4392 = vadd.f32 %v4240, %v4391
    %v4393 = vpop.f32.mrb[0].mxu0
    %4394 = vmatprep.mubr.bf16.mxu0 %v4082
    %4395 = vmatmul.mubr.bf16.gmra.mrb[0].mxu0 %v4081
    %v4396 = vpop.f32.mrb[0].mxu0
    %v4397 = vadd.f32 %v4240, %v4396
    %v4398 = vpop.f32.mrb[0].mxu0
    %v4399 = vpop.f32.mrb[0].mxu0
    %v4400 = vadd.f32 %v4240, %v4399
    %v4401 = vpop.f32.mrb[0].mxu0
    %4402 = vmatprep.mubr.bf16.mxu0 %v4084
    %4403 = vmatmul.mubr.bf16.gmra.mrb[0].mxu0 %v4083
    %v4404 = vpop.f32.mrb[0].mxu0
    %v4405 = vadd.f32 %v4240, %v4404
    %v4406 = vpop.f32.mrb[0].mxu0
    %v4407 = vpop.f32.mrb[0].mxu0
    %v4408 = vadd.f32 %v4240, %v4407
    %v4409 = vpop.f32.mrb[0].mxu0
    %4410 = vmatprep.mubr.bf16.mxu0 %v4086
    %4411 = vmatmul.mubr.bf16.gmra.mrb[0].mxu0 %v4085
    %v4412 = vpop.f32.mrb[0].mxu0
    %v4413 = vadd.f32 %v4240, %v4412
    %v4414 = vpop.f32.mrb[0].mxu0
    %v4415 = vpop.f32.mrb[0].mxu0
    %v4416 = vadd.f32 %v4240, %v4415
    %v4417 = vpop.f32.mrb[0].mxu0
    %4418 = vmatprep.mubr.bf16.mxu0 %v4088
    %4419 = vmatmul.mubr.bf16.gmra.mrb[0].mxu0 %v4087
    %v4420 = vpop.f32.mrb[0].mxu0
    %v4421 = vadd.f32 %v4240, %v4420
    %v4422 = vpop.f32.mrb[0].mxu0
    %v4423 = vpop.f32.mrb[0].mxu0
    %v4424 = vadd.f32 %v4240, %v4423
    %v4425 = vpop.f32.mrb[0].mxu0
    %4426 = vmatprep.mubr.bf16.mxu0 %v4090
    %4427 = vmatmul.mubr.bf16.gmra.mrb[0].mxu0 %v4089
    %v4428 = vpop.f32.mrb[0].mxu0
    %v4429 = vadd.f32 %v4240, %v4428
    %v4430 = vpop.f32.mrb[0].mxu0
    %v4431 = vpop.f32.mrb[0].mxu0
    %v4432 = vadd.f32 %v4240, %v4431
    %v4433 = vpop.f32.mrb[0].mxu0
    %4434 = vmatprep.mubr.bf16.mxu0 %v4092
    %4435 = vmatmul.mubr.bf16.gmra.mrb[0].mxu0 %v4091
    %v4436 = vpop.f32.mrb[0].mxu0
    %v4437 = vadd.f32 %v4240, %v4436
    %v4438 = vpop.f32.mrb[0].mxu0
    %v4439 = vpop.f32.mrb[0].mxu0
    %v4440 = vadd.f32 %v4240, %v4439
    %v4441 = vpop.f32.mrb[0].mxu0
    %4442 = vmatprep.mubr.bf16.mxu0 %v4094
    %4443 = vmatmul.mubr.bf16.gmra.mrb[0].mxu0 %v4093
    %v4444 = vpop.f32.mrb[0].mxu0
    %v4445 = vadd.f32 %v4240, %v4444
    %v4446 = vpop.f32.mrb[0].mxu0
    %v4447 = vpop.f32.mrb[0].mxu0
    %v4448 = vadd.f32 %v4240, %v4447
    %v4449 = vpop.f32.mrb[0].mxu0
    %4450 = vmatprep.mubr.bf16.mxu0 %v4096
    %4451 = vmatmul.mubr.bf16.gmra.mrb[0].mxu0 %v4095
    %v4452 = vpop.f32.mrb[0].mxu0
    %v4453 = vadd.f32 %v4240, %v4452
    %v4454 = vpop.f32.mrb[0].mxu0
    %v4455 = vpop.f32.mrb[0].mxu0
    %v4456 = vadd.f32 %v4240, %v4455
    %v4457 = vpop.f32.mrb[0].mxu0
    %4458 = vmatprep.mubr.bf16.mxu0 %v4098
    %4459 = vmatmul.mubr.bf16.gmra.mrb[0].mxu0 %v4097
    %v4460 = vpop.f32.mrb[0].mxu0
    %v4461 = vadd.f32 %v4240, %v4460
    %v4462 = vpop.f32.mrb[0].mxu0
    %v4463 = vpop.f32.mrb[0].mxu0
    %v4464 = vadd.f32 %v4240, %v4463
    %v4465 = vpop.f32.mrb[0].mxu0
    %4466 = vmatprep.mubr.bf16.mxu0 %v4100
    %4467 = vmatmul.mubr.bf16.gmra.mrb[0].mxu0 %v4099
    %v4468 = vpop.f32.mrb[0].mxu0
    %v4469 = vadd.f32 %v4240, %v4468
    %v4470 = vpop.f32.mrb[0].mxu0
    %v4471 = vpop.f32.mrb[0].mxu0
    %v4472 = vadd.f32 %v4240, %v4471
    %v4473 = vpop.f32.mrb[0].mxu0
    %4474 = vmatprep.mubr.bf16.mxu0 %v4102
    %4475 = vmatmul.mubr.bf16.gmra.mrb[0].mxu0 %v4101
    %v4476 = vpop.f32.mrb[0].mxu0
    %v4477 = vadd.f32 %v4240, %v4476
    %v4478 = vpop.f32.mrb[0].mxu0
    %v4479 = vpop.f32.mrb[0].mxu0
    %v4480 = vadd.f32 %v4240, %v4479
    %v4481 = vpop.f32.mrb[0].mxu0
    %4482 = vmatprep.mubr.bf16.mxu0 %v4104
    %4483 = vmatmul.mubr.bf16.gmra.mrb[0].mxu0 %v4103
    %v4484 = vpop.f32.mrb[0].mxu0
    %v4485 = vadd.f32 %v4240, %v4484
    %v4486 = vpop.f32.mrb[0].mxu0
    %v4487 = vpop.f32.mrb[0].mxu0
    %v4488 = vadd.f32 %v4240, %v4487
    %v4489 = vpop.f32.mrb[0].mxu0
    %4490 = vmatprep.mubr.bf16.mxu0 %v4106
    %4491 = vmatmul.mubr.bf16.gmra.mrb[0].mxu0 %v4105
    %v4492 = vpop.f32.mrb[0].mxu0
    %v4493 = vadd.f32 %v4240, %v4492
    %v4494 = vpop.f32.mrb[0].mxu0
    %v4495 = vpop.f32.mrb[0].mxu0
    %v4496 = vadd.f32 %v4240, %v4495
    %v4497 = vpop.f32.mrb[0].mxu0
    %4498 = vmatprep.mubr.bf16.mxu0 %v4108
    %4499 = vmatmul.mubr.bf16.gmra.mrb[0].mxu0 %v4107
    %v4500 = vpop.f32.mrb[0].mxu0
    %v4501 = vadd.f32 %v4240, %v4500
    %v4502 = vpop.f32.mrb[0].mxu0
    %v4503 = vpop.f32.mrb[0].mxu0
    %v4504 = vadd.f32 %v4240, %v4503
    %v4505 = vpop.f32.mrb[0].mxu0
    %4506 = vmatprep.mubr.bf16.mxu0 %v4110
    %4507 = vmatmul.mubr.bf16.gmra.mrb[0].mxu0 %v4109
    %v4508 = vpop.f32.mrb[0].mxu0
    %v4509 = vadd.f32 %v4240, %v4508
    %v4510 = vpop.f32.mrb[0].mxu0
    %v4511 = vpop.f32.mrb[0].mxu0
    %v4512 = vadd.f32 %v4240, %v4511
    %v4513 = vpop.f32.mrb[0].mxu0
    %4514 = vmatprep.mubr.bf16.mxu0 %v4112
    %4515 = vmatmul.mubr.bf16.gmra.mrb[0].mxu0 %v4111
    %v4516 = vpop.f32.mrb[0].mxu0
    %v4517 = vadd.f32 %v4240, %v4516
    %v4518 = vpop.f32.mrb[0].mxu0
    %v4519 = vpop.f32.mrb[0].mxu0
    %v4520 = vadd.f32 %v4240, %v4519
    %v4521 = vpop.f32.mrb[0].mxu0
    %4522 = vmatprep.mubr.bf16.mxu0 %v4114
    %4523 = vmatmul.mubr.bf16.gmra.mrb[0].mxu0 %v4113
    %v4524 = vpop.f32.mrb[0].mxu0
    %v4525 = vadd.f32 %v4240, %v4524
    %v4526 = vpop.f32.mrb[0].mxu0
    %v4527 = vpop.f32.mrb[0].mxu0
    %v4528 = vadd.f32 %v4240, %v4527
    %v4529 = vpop.f32.mrb[0].mxu0
    %4530 = vmatprep.mubr.bf16.mxu0 %v4116
    %4531 = vmatmul.mubr.bf16.gmra.mrb[0].mxu0 %v4115
    %v4532 = vpop.f32.mrb[0].mxu0
    %v4533 = vadd.f32 %v4240, %v4532
    %v4534 = vpop.f32.mrb[0].mxu0
    %v4535 = vpop.f32.mrb[0].mxu0
    %v4536 = vadd.f32 %v4240, %v4535
    %v4537 = vpop.f32.mrb[0].mxu0
    %4538 = vmatprep.mubr.bf16.mxu0 %v4118
    %4539 = vmatmul.mubr.bf16.gmra.mrb[0].mxu0 %v4117
    %v4540 = vpop.f32.mrb[0].mxu0
    %v4541 = vadd.f32 %v4240, %v4540
    %v4542 = vpop.f32.mrb[0].mxu0
    %v4543 = vpop.f32.mrb[0].mxu0
    %v4544 = vadd.f32 %v4240, %v4543
    %v4545 = vpop.f32.mrb[0].mxu0
    %4546 = vmatprep.mubr.bf16.mxu0 %v4120
    %4547 = vmatmul.mubr.bf16.gmra.mrb[0].mxu0 %v4119
    %v4548 = vpop.f32.mrb[0].mxu0
    %v4549 = vadd.f32 %v4240, %v4548
    %v4550 = vpop.f32.mrb[0].mxu0
    %v4551 = vpop.f32.mrb[0].mxu0
    %v4552 = vadd.f32 %v4240, %v4551
    %v4553 = vpop.f32.mrb[0].mxu0
    %4554 = vmatprep.mubr.bf16.mxu0 %v4122
    %4555 = vmatmul.mubr.bf16.gmra.mrb[0].mxu0 %v4121
    %v4556 = vpop.f32.mrb[0].mxu0
    %v4557 = vadd.f32 %v4240, %v4556
    %v4558 = vpop.f32.mrb[0].mxu0
    %v4559 = vpop.f32.mrb[0].mxu0
    %v4560 = vadd.f32 %v4240, %v4559
    %v4561 = vpop.f32.mrb[0].mxu0
    %4562 = vmatprep.mubr.bf16.mxu0 %v4124
    %4563 = vmatmul.mubr.bf16.gmra.mrb[0].mxu0 %v4123
    %v4564 = vpop.f32.mrb[0].mxu0
    %v4565 = vadd.f32 %v4240, %v4564
    %v4566 = vpop.f32.mrb[0].mxu0
    %v4567 = vpop.f32.mrb[0].mxu0
    %v4568 = vadd.f32 %v4240, %v4567
    %v4569 = vpop.f32.mrb[0].mxu0
    %4570 = vmatprep.mubr.bf16.mxu0 %v4126
    %4571 = vmatmul.mubr.bf16.gmra.mrb[0].mxu0 %v4125
    %v4572 = vpop.f32.mrb[0].mxu0
    %v4573 = vadd.f32 %v4240, %v4572
    %v4574 = vpop.f32.mrb[0].mxu0
    %v4575 = vpop.f32.mrb[0].mxu0
    %v4576 = vadd.f32 %v4240, %v4575
    %v4577 = vpop.f32.mrb[0].mxu0
    %4578 = vmatprep.mubr.bf16.mxu0 %v4128
    %4579 = vmatmul.mubr.bf16.gmra.mrb[0].mxu0 %v4127
    %v4580 = vpop.f32.mrb[0].mxu0
    %v4581 = vadd.f32 %v4240, %v4580
    %v4582 = vpop.f32.mrb[0].mxu0
    %v4583 = vpop.f32.mrb[0].mxu0
    %v4584 = vadd.f32 %v4240, %v4583
    %v4585 = vpop.f32.mrb[0].mxu0
    %4586 = vmatprep.mubr.bf16.mxu0 %v4130
    %4587 = vmatmul.mubr.bf16.gmra.mrb[0].mxu0 %v4129
    %v4588 = vpop.f32.mrb[0].mxu0
    %v4589 = vadd.f32 %v4240, %v4588
    %v4590 = vpop.f32.mrb[0].mxu0
    %v4591 = vpop.f32.mrb[0].mxu0
    %v4592 = vadd.f32 %v4240, %v4591
    %v4593 = vpop.f32.mrb[0].mxu0
    %4594 = vmatprep.mubr.bf16.mxu0 %v4132
    %4595 = vmatmul.mubr.bf16.gmra.mrb[0].mxu0 %v4131
    %v4596 = vpop.f32.mrb[0].mxu0
    %v4597 = vadd.f32 %v4240, %v4596
    %v4598 = vpop.f32.mrb[0].mxu0
    %v4599 = vpop.f32.mrb[0].mxu0
    %v4600 = vadd.f32 %v4240, %v4599
    %v4601 = vpop.f32.mrb[0].mxu0
    %4602 = vmatprep.mubr.bf16.mxu0 %v4134
    %4603 = vmatmul.mubr.bf16.gmra.mrb[0].mxu0 %v4133
    %v4604 = vpop.f32.mrb[0].mxu0
    %v4605 = vadd.f32 %v4240, %v4604
    %v4606 = vpop.f32.mrb[0].mxu0
    %v4607 = vpop.f32.mrb[0].mxu0
    %v4608 = vadd.f32 %v4240, %v4607
    %v4609 = vpop.f32.mrb[0].mxu0
    %4610 = vmatprep.mubr.bf16.mxu0 %v4136
    %4611 = vmatmul.mubr.bf16.gmra.mrb[0].mxu0 %v4135
    %v4612 = vpop.f32.mrb[0].mxu0
    %v4613 = vadd.f32 %v4240, %v4612
    %v4614 = vpop.f32.mrb[0].mxu0
    %v4615 = vpop.f32.mrb[0].mxu0
    %v4616 = vadd.f32 %v4240, %v4615
    %v4617 = vpop.f32.mrb[0].mxu0
    %4618 = vmatprep.mubr.bf16.mxu0 %v4138
    %4619 = vmatmul.mubr.bf16.gmra.mrb[0].mxu0 %v4137
    %v4620 = vpop.f32.mrb[0].mxu0
    %v4621 = vadd.f32 %v4240, %v4620
    %v4622 = vpop.f32.mrb[0].mxu0
    %v4623 = vpop.f32.mrb[0].mxu0
    %v4624 = vadd.f32 %v4240, %v4623
    %v4625 = vpop.f32.mrb[0].mxu0
    %4626 = vmatprep.mubr.bf16.mxu0 %v4140
    %4627 = vmatmul.mubr.bf16.gmra.mrb[0].mxu0 %v4139
    %v4628 = vpop.f32.mrb[0].mxu0
    %v4629 = vadd.f32 %v4240, %v4628
    %v4630 = vpop.f32.mrb[0].mxu0
    %v4631 = vpop.f32.mrb[0].mxu0
    %v4632 = vadd.f32 %v4240, %v4631
    %v4633 = vpop.f32.mrb[0].mxu0
    %4634 = vmatprep.mubr.bf16.mxu0 %v4142
    %4635 = vmatmul.mubr.bf16.gmra.mrb[0].mxu0 %v4141
    %v4636 = vpop.f32.mrb[0].mxu0
    %v4637 = vadd.f32 %v4240, %v4636
    %v4638 = vpop.f32.mrb[0].mxu0
    %v4639 = vpop.f32.mrb[0].mxu0
    %v4640 = vadd.f32 %v4240, %v4639
    %v4641 = vpop.f32.mrb[0].mxu0
    %4642 = vmatprep.mubr.bf16.mxu0 %v4144
    %4643 = vmatmul.mubr.bf16.gmra.mrb[0].mxu0 %v4143
    %v4644 = vpop.f32.mrb[0].mxu0
    %v4645 = vadd.f32 %v4240, %v4644
    %v4646 = vpop.f32.mrb[0].mxu0
    %v4647 = vpop.f32.mrb[0].mxu0
    %v4648 = vadd.f32 %v4240, %v4647
    %v4649 = vpop.f32.mrb[0].mxu0
    %4650 = vmatprep.mubr.bf16.mxu0 %v4146
    %4651 = vmatmul.mubr.bf16.gmra.mrb[0].mxu0 %v4145
    %v4652 = vpop.f32.mrb[0].mxu0
    %v4653 = vadd.f32 %v4240, %v4652
    %v4654 = vpop.f32.mrb[0].mxu0
    %v4655 = vpop.f32.mrb[0].mxu0
    %v4656 = vadd.f32 %v4240, %v4655
    %v4657 = vpop.f32.mrb[0].mxu0
    %4658 = vmatprep.mubr.bf16.mxu0 %v4148
    %4659 = vmatmul.mubr.bf16.gmra.mrb[0].mxu0 %v4147
    %v4660 = vpop.f32.mrb[0].mxu0
    %v4661 = vadd.f32 %v4240, %v4660
    %v4662 = vpop.f32.mrb[0].mxu0
    %v4663 = vpop.f32.mrb[0].mxu0
    %v4664 = vadd.f32 %v4240, %v4663
    %v4665 = vpop.f32.mrb[0].mxu0
    %4666 = vmatprep.mubr.bf16.mxu0 %v4150
    %4667 = vmatmul.mubr.bf16.gmra.mrb[0].mxu0 %v4149
    %v4668 = vpop.f32.mrb[0].mxu0
    %v4669 = vadd.f32 %v4240, %v4668
    %v4670 = vpop.f32.mrb[0].mxu0
    %v4671 = vpop.f32.mrb[0].mxu0
    %v4672 = vadd.f32 %v4240, %v4671
    %v4673 = vpop.f32.mrb[0].mxu0
    %4674 = vmatprep.mubr.bf16.mxu0 %v4152
    %4675 = vmatmul.mubr.bf16.gmra.mrb[0].mxu0 %v4151
    %v4676 = vpop.f32.mrb[0].mxu0
    %v4677 = vadd.f32 %v4240, %v4676
    %v4678 = vpop.f32.mrb[0].mxu0
    %v4679 = vpop.f32.mrb[0].mxu0
    %v4680 = vadd.f32 %v4240, %v4679
    %v4681 = vpop.f32.mrb[0].mxu0
    %4682 = vmatprep.mubr.bf16.mxu0 %v4154
    %4683 = vmatmul.mubr.bf16.gmra.mrb[0].mxu0 %v4153
    %v4684 = vpop.f32.mrb[0].mxu0
    %v4685 = vadd.f32 %v4240, %v4684
    %v4686 = vpop.f32.mrb[0].mxu0
    %v4687 = vpop.f32.mrb[0].mxu0
    %v4688 = vadd.f32 %v4240, %v4687
    %v4689 = vpop.f32.mrb[0].mxu0
    %4690 = vmatprep.mubr.bf16.mxu0 %v4156
    %4691 = vmatmul.mubr.bf16.gmra.mrb[0].mxu0 %v4155
    %v4692 = vpop.f32.mrb[0].mxu0
    %v4693 = vadd.f32 %v4240, %v4692
    %v4694 = vpop.f32.mrb[0].mxu0
    %v4695 = vpop.f32.mrb[0].mxu0
    %v4696 = vadd.f32 %v4240, %v4695
    %v4697 = vpop.f32.mrb[0].mxu0
    %4698 = vmatprep.mubr.bf16.mxu0 %v4158
    %4699 = vmatmul.mubr.bf16.gmra.mrb[0].mxu0 %v4157
    %v4700 = vpop.f32.mrb[0].mxu0
    %v4701 = vadd.f32 %v4240, %v4700
    %v4702 = vpop.f32.mrb[0].mxu0
    %v4703 = vpop.f32.mrb[0].mxu0
    %v4704 = vadd.f32 %v4240, %v4703
    %v4705 = vpop.f32.mrb[0].mxu0
    %4706 = vmatprep.mubr.bf16.mxu0 %v4160
    %4707 = vmatmul.mubr.bf16.gmra.mrb[0].mxu0 %v4159
    %v4708 = vpop.f32.mrb[0].mxu0
    %v4709 = vadd.f32 %v4240, %v4708
    %v4710 = vpop.f32.mrb[0].mxu0
    %v4711 = vpop.f32.mrb[0].mxu0
    %v4712 = vadd.f32 %v4240, %v4711
    %v4713 = vpop.f32.mrb[0].mxu0
    %4714 = vmatprep.mubr.bf16.mxu0 %v4162
    %4715 = vmatmul.mubr.bf16.gmra.mrb[0].mxu0 %v4161
    %v4716 = vpop.f32.mrb[0].mxu0
    %v4717 = vadd.f32 %v4240, %v4716
    %v4718 = vpop.f32.mrb[0].mxu0
    %v4719 = vpop.f32.mrb[0].mxu0
    %v4720 = vadd.f32 %v4240, %v4719
    %v4721 = vpop.f32.mrb[0].mxu0
    %4722 = vmatprep.mubr.bf16.mxu0 %v4164
    %4723 = vmatmul.mubr.bf16.gmra.mrb[0].mxu0 %v4163
    %v4724 = vpop.f32.mrb[0].mxu0
    %v4725 = vadd.f32 %v4240, %v4724
    %v4726 = vpop.f32.mrb[0].mxu0
    %v4727 = vpop.f32.mrb[0].mxu0
    %v4728 = vadd.f32 %v4240, %v4727
    %v4729 = vpop.f32.mrb[0].mxu0
    %4730 = vmatprep.mubr.bf16.mxu0 %v4166
    %4731 = vmatmul.mubr.bf16.gmra.mrb[0].mxu0 %v4165
    %v4732 = vpop.f32.mrb[0].mxu0
    %v4733 = vadd.f32 %v4240, %v4732
    %v4734 = vpop.f32.mrb[0].mxu0
    %v4735 = vpop.f32.mrb[0].mxu0
    %v4736 = vadd.f32 %v4240, %v4735
    %v4737 = vpop.f32.mrb[0].mxu0
    %4738 = vmatprep.mubr.bf16.mxu0 %v4168
    %4739 = vmatmul.mubr.bf16.gmra.mrb[0].mxu0 %v4167
    %v4740 = vpop.f32.mrb[0].mxu0
    %v4741 = vadd.f32 %v4240, %v4740
    %v4742 = vpop.f32.mrb[0].mxu0
    %v4743 = vpop.f32.mrb[0].mxu0
    %v4744 = vadd.f32 %v4240, %v4743
    %v4745 = vpop.f32.mrb[0].mxu0
    %4746 = vmatprep.mubr.bf16.mxu0 %v4170
    %4747 = vmatmul.mubr.bf16.gmra.mrb[0].mxu0 %v4169
    %v4748 = vpop.f32.mrb[0].mxu0
    %v4749 = vadd.f32 %v4240, %v4748
    %v4750 = vpop.f32.mrb[0].mxu0
    %v4751 = vpop.f32.mrb[0].mxu0
    %v4752 = vadd.f32 %v4240, %v4751
    %v4753 = vpop.f32.mrb[0].mxu0
    %4754 = vmatprep.mubr.bf16.mxu0 %v4172
    %4755 = vmatmul.mubr.bf16.gmra.mrb[0].mxu0 %v4171
    %v4756 = vpop.f32.mrb[0].mxu0
    %v4757 = vadd.f32 %v4240, %v4756
    %v4758 = vpop.f32.mrb[0].mxu0
    %v4759 = vpop.f32.mrb[0].mxu0
    %v4760 = vadd.f32 %v4240, %v4759
    %v4761 = vpop.f32.mrb[0].mxu0
    %4762 = vmatprep.mubr.bf16.mxu0 %v4174
    %4763 = vmatmul.mubr.bf16.gmra.mrb[0].mxu0 %v4173
    %v4764 = vpop.f32.mrb[0].mxu0
    %v4765 = vadd.f32 %v4240, %v4764
    %v4766 = vpop.f32.mrb[0].mxu0
    %v4767 = vpop.f32.mrb[0].mxu0
    %v4768 = vadd.f32 %v4240, %v4767
    %v4769 = vpop.f32.mrb[0].mxu0
    %4770 = vmatprep.mubr.bf16.mxu0 %v4176
    %4771 = vmatmul.mubr.bf16.gmra.mrb[0].mxu0 %v4175
    %v4772 = vpop.f32.mrb[0].mxu0
    %v4773 = vadd.f32 %v4240, %v4772
    %v4774 = vpop.f32.mrb[0].mxu0
    %v4775 = vpop.f32.mrb[0].mxu0
    %v4776 = vadd.f32 %v4240, %v4775
    %v4777 = vpop.f32.mrb[0].mxu0
    %4778 = vmatprep.mubr.bf16.mxu0 %v4178
    %4779 = vmatmul.mubr.bf16.gmra.mrb[0].mxu0 %v4177
    %v4780 = vpop.f32.mrb[0].mxu0
    %v4781 = vadd.f32 %v4240, %v4780
    %v4782 = vpop.f32.mrb[0].mxu0
    %v4783 = vpop.f32.mrb[0].mxu0
    %v4784 = vadd.f32 %v4240, %v4783
    %v4785 = vpop.f32.mrb[0].mxu0
    %4786 = vmatprep.mubr.bf16.mxu0 %v4180
    %4787 = vmatmul.mubr.bf16.gmra.mrb[0].mxu0 %v4179
    %v4788 = vpop.f32.mrb[0].mxu0
    %v4789 = vadd.f32 %v4240, %v4788
    %v4790 = vpop.f32.mrb[0].mxu0
    %v4791 = vpop.f32.mrb[0].mxu0
    %v4792 = vadd.f32 %v4240, %v4791
    %v4793 = vpop.f32.mrb[0].mxu0
    %4794 = vmatprep.mubr.bf16.mxu0 %v4182
    %4795 = vmatmul.mubr.bf16.gmra.mrb[0].mxu0 %v4181
    %v4796 = vpop.f32.mrb[0].mxu0
    %v4797 = vadd.f32 %v4240, %v4796
    %v4798 = vpop.f32.mrb[0].mxu0
    %v4799 = vpop.f32.mrb[0].mxu0
    %v4800 = vadd.f32 %v4240, %v4799
    %v4801 = vpop.f32.mrb[0].mxu0
    %4802 = vmatprep.mubr.bf16.mxu0 %v4184
    %4803 = vmatmul.mubr.bf16.gmra.mrb[0].mxu0 %v4183
    %v4804 = vpop.f32.mrb[0].mxu0
    %v4805 = vadd.f32 %v4240, %v4804
    %v4806 = vpop.f32.mrb[0].mxu0
    %v4807 = vpop.f32.mrb[0].mxu0
    %v4808 = vadd.f32 %v4240, %v4807
    %v4809 = vpop.f32.mrb[0].mxu0
    %4810 = vmatprep.mubr.bf16.mxu0 %v4186
    %4811 = vmatmul.mubr.bf16.gmra.mrb[0].mxu0 %v4185
    %v4812 = vpop.f32.mrb[0].mxu0
    %v4813 = vadd.f32 %v4240, %v4812
    %v4814 = vpop.f32.mrb[0].mxu0
    %v4815 = vpop.f32.mrb[0].mxu0
    %v4816 = vadd.f32 %v4240, %v4815
    %v4817 = vpop.f32.mrb[0].mxu0
    %4818 = vmatprep.mubr.bf16.mxu0 %v4188
    %4819 = vmatmul.mubr.bf16.gmra.mrb[0].mxu0 %v4187
    %v4820 = vpop.f32.mrb[0].mxu0
    %v4821 = vadd.f32 %v4240, %v4820
    %v4822 = vpop.f32.mrb[0].mxu0
    %v4823 = vpop.f32.mrb[0].mxu0
    %v4824 = vadd.f32 %v4240, %v4823
    %v4825 = vpop.f32.mrb[0].mxu0
    %4826 = vmatprep.mubr.bf16.mxu0 %v4190
    %4827 = vmatmul.mubr.bf16.gmra.mrb[0].mxu0 %v4189
    %v4828 = vpop.f32.mrb[0].mxu0
    %v4829 = vadd.f32 %v4240, %v4828
    %v4830 = vpop.f32.mrb[0].mxu0
    %v4831 = vpop.f32.mrb[0].mxu0
    %v4832 = vadd.f32 %v4240, %v4831
    %v4833 = vpop.f32.mrb[0].mxu0
    %4834 = vmatprep.mubr.bf16.mxu0 %v4192
    %4835 = vmatmul.mubr.bf16.gmra.mrb[0].mxu0 %v4191
    %v4836 = vpop.f32.mrb[0].mxu0
    %v4837 = vadd.f32 %v4240, %v4836
    %v4838 = vpop.f32.mrb[0].mxu0
    %v4839 = vpop.f32.mrb[0].mxu0
    %v4840 = vadd.f32 %v4240, %v4839
    %v4841 = vpop.f32.mrb[0].mxu0
    %4842 = vmatprep.mubr.bf16.mxu0 %v4194
    %4843 = vmatmul.mubr.bf16.gmra.mrb[0].mxu0 %v4193
    %v4844 = vpop.f32.mrb[0].mxu0
    %v4845 = vadd.f32 %v4240, %v4844
    %v4846 = vpop.f32.mrb[0].mxu0
    %v4847 = vpop.f32.mrb[0].mxu0
    %v4848 = vadd.f32 %v4240, %v4847
    %v4849 = vpop.f32.mrb[0].mxu0
    %4850 = vmatprep.mubr.bf16.mxu0 %v4196
    %4851 = vmatmul.mubr.bf16.gmra.mrb[0].mxu0 %v4195
    %v4852 = vpop.f32.mrb[0].mxu0
    %v4853 = vadd.f32 %v4240, %v4852
    %v4854 = vpop.f32.mrb[0].mxu0
    %v4855 = vpop.f32.mrb[0].mxu0
    %v4856 = vadd.f32 %v4240, %v4855
    %v4857 = vpop.f32.mrb[0].mxu0
    %4858 = vmatprep.mubr.bf16.mxu0 %v4198
    %4859 = vmatmul.mubr.bf16.gmra.mrb[0].mxu0 %v4197
    %v4860 = vpop.f32.mrb[0].mxu0
    %v4861 = vadd.f32 %v4240, %v4860
    %v4862 = vpop.f32.mrb[0].mxu0
    %v4863 = vpop.f32.mrb[0].mxu0
    %v4864 = vadd.f32 %v4240, %v4863
    %v4865 = vpop.f32.mrb[0].mxu0
    %4866 = vmatprep.mubr.bf16.mxu0 %v4200
    %4867 = vmatmul.mubr.bf16.gmra.mrb[0].mxu0 %v4199
    %v4868 = vpop.f32.mrb[0].mxu0
    %v4869 = vadd.f32 %v4240, %v4868
    %v4870 = vpop.f32.mrb[0].mxu0
    %v4871 = vpop.f32.mrb[0].mxu0
    %v4872 = vadd.f32 %v4240, %v4871
    %v4873 = vpop.f32.mrb[0].mxu0
    %4874 = vmatprep.mubr.bf16.mxu0 %v4202
    %4875 = vmatmul.mubr.bf16.gmra.mrb[0].mxu0 %v4201
    %v4876 = vpop.f32.mrb[0].mxu0
    %v4877 = vadd.f32 %v4240, %v4876
    %v4878 = vpop.f32.mrb[0].mxu0
    %v4879 = vpop.f32.mrb[0].mxu0
    %v4880 = vadd.f32 %v4240, %v4879
    %v4881 = vpop.f32.mrb[0].mxu0
    %4882 = vdwg.mxu0
    %v4883 = vpack.c.bf16 %v4376, %v4373
    %v4884 = vpack.c.bf16 %v4384, %v4381
    %v4885 = vpack.c.bf16 %v4392, %v4389
    %v4886 = vpack.c.bf16 %v4400, %v4397
    %v4887 = vpack.c.bf16 %v4408, %v4405
    %v4888 = vpack.c.bf16 %v4416, %v4413
    %v4889 = vpack.c.bf16 %v4424, %v4421
    %v4890 = vpack.c.bf16 %v4432, %v4429
    %v4891 = vpack.c.bf16 %v4440, %v4437
    %v4892 = vpack.c.bf16 %v4448, %v4445
    %v4893 = vpack.c.bf16 %v4456, %v4453
    %v4894 = vpack.c.bf16 %v4464, %v4461
    %v4895 = vpack.c.bf16 %v4472, %v4469
    %v4896 = vpack.c.bf16 %v4480, %v4477
    %v4897 = vpack.c.bf16 %v4488, %v4485
    %v4898 = vpack.c.bf16 %v4496, %v4493
    %v4899 = vpack.c.bf16 %v4504, %v4501
    %v4900 = vpack.c.bf16 %v4512, %v4509
    %v4901 = vpack.c.bf16 %v4520, %v4517
    %v4902 = vpack.c.bf16 %v4528, %v4525
    %v4903 = vpack.c.bf16 %v4536, %v4533
    %v4904 = vpack.c.bf16 %v4544, %v4541
    %v4905 = vpack.c.bf16 %v4552, %v4549
    %v4906 = vpack.c.bf16 %v4560, %v4557
    %v4907 = vpack.c.bf16 %v4568, %v4565
    %v4908 = vpack.c.bf16 %v4576, %v4573
    %v4909 = vpack.c.bf16 %v4584, %v4581
    %v4910 = vpack.c.bf16 %v4592, %v4589
    %v4911 = vpack.c.bf16 %v4600, %v4597
    %v4912 = vpack.c.bf16 %v4608, %v4605
    %v4913 = vpack.c.bf16 %v4616, %v4613
    %v4914 = vpack.c.bf16 %v4624, %v4621
    %v4915 = vpack.c.bf16 %v4632, %v4629
    %v4916 = vpack.c.bf16 %v4640, %v4637
    %v4917 = vpack.c.bf16 %v4648, %v4645
    %v4918 = vpack.c.bf16 %v4656, %v4653
    %v4919 = vpack.c.bf16 %v4664, %v4661
    %v4920 = vpack.c.bf16 %v4672, %v4669
    %v4921 = vpack.c.bf16 %v4680, %v4677
    %v4922 = vpack.c.bf16 %v4688, %v4685
    %v4923 = vpack.c.bf16 %v4696, %v4693
    %v4924 = vpack.c.bf16 %v4704, %v4701
    %v4925 = vpack.c.bf16 %v4712, %v4709
    %v4926 = vpack.c.bf16 %v4720, %v4717
    %v4927 = vpack.c.bf16 %v4728, %v4725
    %v4928 = vpack.c.bf16 %v4736, %v4733
    %v4929 = vpack.c.bf16 %v4744, %v4741
    %v4930 = vpack.c.bf16 %v4752, %v4749
    %v4931 = vpack.c.bf16 %v4760, %v4757
    %v4932 = vpack.c.bf16 %v4768, %v4765
    %v4933 = vpack.c.bf16 %v4776, %v4773
    %v4934 = vpack.c.bf16 %v4784, %v4781
    %v4935 = vpack.c.bf16 %v4792, %v4789
    %v4936 = vpack.c.bf16 %v4800, %v4797
    %v4937 = vpack.c.bf16 %v4808, %v4805
    %v4938 = vpack.c.bf16 %v4816, %v4813
    %v4939 = vpack.c.bf16 %v4824, %v4821
    %v4940 = vpack.c.bf16 %v4832, %v4829
    %v4941 = vpack.c.bf16 %v4840, %v4837
    %v4942 = vpack.c.bf16 %v4848, %v4845
    %v4943 = vpack.c.bf16 %v4856, %v4853
    %v4944 = vpack.c.bf16 %v4864, %v4861
    %v4945 = vpack.c.bf16 %v4872, %v4869
    %v4946 = vpack.c.bf16 %v4880, %v4877
    %v5011 = vunpack.c.l.b16 %v4883
    %v5012 = vunpack.c.h.b16 %v4883
    %v5013 = vunpack.c.l.b16 %v4884
    %v5014 = vunpack.c.h.b16 %v4884
    %v5015 = vunpack.c.l.b16 %v4885
    %v5016 = vunpack.c.h.b16 %v4885
    %v5017 = vunpack.c.l.b16 %v4886
    %v5018 = vunpack.c.h.b16 %v4886
    %v5019 = vunpack.c.l.b16 %v4887
    %v5020 = vunpack.c.h.b16 %v4887
    %v5021 = vunpack.c.l.b16 %v4888
    %v5022 = vunpack.c.h.b16 %v4888
    %v5023 = vunpack.c.l.b16 %v4889
    %v5024 = vunpack.c.h.b16 %v4889
    %v5025 = vunpack.c.l.b16 %v4890
    %v5026 = vunpack.c.h.b16 %v4890
    %v5027 = vunpack.c.l.b16 %v4891
    %v5028 = vunpack.c.h.b16 %v4891
    %v5029 = vunpack.c.l.b16 %v4892
    %v5030 = vunpack.c.h.b16 %v4892
    %v5031 = vunpack.c.l.b16 %v4893
    %v5032 = vunpack.c.h.b16 %v4893
    %v5033 = vunpack.c.l.b16 %v4894
    %v5034 = vunpack.c.h.b16 %v4894
    %v5035 = vunpack.c.l.b16 %v4895
    %v5036 = vunpack.c.h.b16 %v4895
    %v5037 = vunpack.c.l.b16 %v4896
    %v5038 = vunpack.c.h.b16 %v4896
    %v5039 = vunpack.c.l.b16 %v4897
    %v5040 = vunpack.c.h.b16 %v4897
    %v5041 = vunpack.c.l.b16 %v4898
    %v5042 = vunpack.c.h.b16 %v4898
    %v5043 = vunpack.c.l.b16 %v4899
    %v5044 = vunpack.c.h.b16 %v4899
    %v5045 = vunpack.c.l.b16 %v4900
    %v5046 = vunpack.c.h.b16 %v4900
    %v5047 = vunpack.c.l.b16 %v4901
    %v5048 = vunpack.c.h.b16 %v4901
    %v5049 = vunpack.c.l.b16 %v4902
    %v5050 = vunpack.c.h.b16 %v4902
    %v5051 = vunpack.c.l.b16 %v4903
    %v5052 = vunpack.c.h.b16 %v4903
    %v5053 = vunpack.c.l.b16 %v4904
    %v5054 = vunpack.c.h.b16 %v4904
    %v5055 = vunpack.c.l.b16 %v4905
    %v5056 = vunpack.c.h.b16 %v4905
    %v5057 = vunpack.c.l.b16 %v4906
    %v5058 = vunpack.c.h.b16 %v4906
    %v5059 = vunpack.c.l.b16 %v4907
    %v5060 = vunpack.c.h.b16 %v4907
    %v5061 = vunpack.c.l.b16 %v4908
    %v5062 = vunpack.c.h.b16 %v4908
    %v5063 = vunpack.c.l.b16 %v4909
    %v5064 = vunpack.c.h.b16 %v4909
    %v5065 = vunpack.c.l.b16 %v4910
    %v5066 = vunpack.c.h.b16 %v4910
    %v5067 = vunpack.c.l.b16 %v4911
    %v5068 = vunpack.c.h.b16 %v4911
    %v5069 = vunpack.c.l.b16 %v4912
    %v5070 = vunpack.c.h.b16 %v4912
    %v5071 = vunpack.c.l.b16 %v4913
    %v5072 = vunpack.c.h.b16 %v4913
    %v5073 = vunpack.c.l.b16 %v4914
    %v5074 = vunpack.c.h.b16 %v4914
    %v5075 = vunpack.c.l.b16 %v4915
    %v5076 = vunpack.c.h.b16 %v4915
    %v5077 = vunpack.c.l.b16 %v4916
    %v5078 = vunpack.c.h.b16 %v4916
    %v5079 = vunpack.c.l.b16 %v4917
    %v5080 = vunpack.c.h.b16 %v4917
    %v5081 = vunpack.c.l.b16 %v4918
    %v5082 = vunpack.c.h.b16 %v4918
    %v5083 = vunpack.c.l.b16 %v4919
    %v5084 = vunpack.c.h.b16 %v4919
    %v5085 = vunpack.c.l.b16 %v4920
    %v5086 = vunpack.c.h.b16 %v4920
    %v5087 = vunpack.c.l.b16 %v4921
    %v5088 = vunpack.c.h.b16 %v4921
    %v5089 = vunpack.c.l.b16 %v4922
    %v5090 = vunpack.c.h.b16 %v4922
    %v5091 = vunpack.c.l.b16 %v4923
    %v5092 = vunpack.c.h.b16 %v4923
    %v5093 = vunpack.c.l.b16 %v4924
    %v5094 = vunpack.c.h.b16 %v4924
    %v5095 = vunpack.c.l.b16 %v4925
    %v5096 = vunpack.c.h.b16 %v4925
    %v5097 = vunpack.c.l.b16 %v4926
    %v5098 = vunpack.c.h.b16 %v4926
    %v5099 = vunpack.c.l.b16 %v4927
    %v5100 = vunpack.c.h.b16 %v4927
    %v5101 = vunpack.c.l.b16 %v4928
    %v5102 = vunpack.c.h.b16 %v4928
    %v5103 = vunpack.c.l.b16 %v4929
    %v5104 = vunpack.c.h.b16 %v4929
    %v5105 = vunpack.c.l.b16 %v4930
    %v5106 = vunpack.c.h.b16 %v4930
    %v5107 = vunpack.c.l.b16 %v4931
    %v5108 = vunpack.c.h.b16 %v4931
    %v5109 = vunpack.c.l.b16 %v4932
    %v5110 = vunpack.c.h.b16 %v4932
    %v5111 = vunpack.c.l.b16 %v4933
    %v5112 = vunpack.c.h.b16 %v4933
    %v5113 = vunpack.c.l.b16 %v4934
    %v5114 = vunpack.c.h.b16 %v4934
    %v5115 = vunpack.c.l.b16 %v4935
    %v5116 = vunpack.c.h.b16 %v4935
    %v5117 = vunpack.c.l.b16 %v4936
    %v5118 = vunpack.c.h.b16 %v4936
    %v5119 = vunpack.c.l.b16 %v4937
    %v5120 = vunpack.c.h.b16 %v4937
    %v5121 = vunpack.c.l.b16 %v4938
    %v5122 = vunpack.c.h.b16 %v4938
    %v5123 = vunpack.c.l.b16 %v4939
    %v5124 = vunpack.c.h.b16 %v4939
    %v5125 = vunpack.c.l.b16 %v4940
    %v5126 = vunpack.c.h.b16 %v4940
    %v5127 = vunpack.c.l.b16 %v4941
    %v5128 = vunpack.c.h.b16 %v4941
    %v5129 = vunpack.c.l.b16 %v4942
    %v5130 = vunpack.c.h.b16 %v4942
    %v5131 = vunpack.c.l.b16 %v4943
    %v5132 = vunpack.c.h.b16 %v4943
    %v5133 = vunpack.c.l.b16 %v4944
    %v5134 = vunpack.c.h.b16 %v4944
    %v5135 = vunpack.c.l.b16 %v4945
    %v5136 = vunpack.c.h.b16 %v4945
    %v5137 = vunpack.c.l.b16 %v4946
    %v5138 = vunpack.c.h.b16 %v4946
    %v5139 = vpack.c.b16 %v5011, %v5011
    %v5140 = vpack.c.b16 %v5012, %v5012
    %v5141 = vpack.c.b16 %v5013, %v5013
    %v5142 = vpack.c.b16 %v5014, %v5014
    %v5143 = vpack.c.b16 %v5015, %v5015
    %v5144 = vpack.c.b16 %v5016, %v5016
    %v5145 = vpack.c.b16 %v5017, %v5017
    %v5146 = vpack.c.b16 %v5018, %v5018
    %v5147 = vpack.c.b16 %v5019, %v5019
    %v5148 = vpack.c.b16 %v5020, %v5020
    %v5149 = vpack.c.b16 %v5021, %v5021
    %v5150 = vpack.c.b16 %v5022, %v5022
    %v5151 = vpack.c.b16 %v5023, %v5023
    %v5152 = vpack.c.b16 %v5024, %v5024
    %v5153 = vpack.c.b16 %v5025, %v5025
    %v5154 = vpack.c.b16 %v5026, %v5026
    %v5155 = vpack.c.b16 %v5027, %v5027
    %v5156 = vpack.c.b16 %v5028, %v5028
    %v5157 = vpack.c.b16 %v5029, %v5029
    %v5158 = vpack.c.b16 %v5030, %v5030
    %v5159 = vpack.c.b16 %v5031, %v5031
    %v5160 = vpack.c.b16 %v5032, %v5032
    %v5161 = vpack.c.b16 %v5033, %v5033
    %v5162 = vpack.c.b16 %v5034, %v5034
    %v5163 = vpack.c.b16 %v5035, %v5035
    %v5164 = vpack.c.b16 %v5036, %v5036
    %v5165 = vpack.c.b16 %v5037, %v5037
    %v5166 = vpack.c.b16 %v5038, %v5038
    %v5167 = vpack.c.b16 %v5039, %v5039
    %v5168 = vpack.c.b16 %v5040, %v5040
    %v5169 = vpack.c.b16 %v5041, %v5041
    %v5170 = vpack.c.b16 %v5042, %v5042
    %v5171 = vpack.c.b16 %v5043, %v5043
    %v5172 = vpack.c.b16 %v5044, %v5044
    %v5173 = vpack.c.b16 %v5045, %v5045
    %v5174 = vpack.c.b16 %v5046, %v5046
    %v5175 = vpack.c.b16 %v5047, %v5047
    %v5176 = vpack.c.b16 %v5048, %v5048
    %v5177 = vpack.c.b16 %v5049, %v5049
    %v5178 = vpack.c.b16 %v5050, %v5050
    %v5179 = vpack.c.b16 %v5051, %v5051
    %v5180 = vpack.c.b16 %v5052, %v5052
    %v5181 = vpack.c.b16 %v5053, %v5053
    %v5182 = vpack.c.b16 %v5054, %v5054
    %v5183 = vpack.c.b16 %v5055, %v5055
    %v5184 = vpack.c.b16 %v5056, %v5056
    %v5185 = vpack.c.b16 %v5057, %v5057
    %v5186 = vpack.c.b16 %v5058, %v5058
    %v5187 = vpack.c.b16 %v5059, %v5059
    %v5188 = vpack.c.b16 %v5060, %v5060
    %v5189 = vpack.c.b16 %v5061, %v5061
    %v5190 = vpack.c.b16 %v5062, %v5062
    %v5191 = vpack.c.b16 %v5063, %v5063
    %v5192 = vpack.c.b16 %v5064, %v5064
    %v5193 = vpack.c.b16 %v5065, %v5065
    %v5194 = vpack.c.b16 %v5066, %v5066
    %v5195 = vpack.c.b16 %v5067, %v5067
    %v5196 = vpack.c.b16 %v5068, %v5068
    %v5197 = vpack.c.b16 %v5069, %v5069
    %v5198 = vpack.c.b16 %v5070, %v5070
    %v5199 = vpack.c.b16 %v5071, %v5071
    %v5200 = vpack.c.b16 %v5072, %v5072
    %v5201 = vpack.c.b16 %v5073, %v5073
    %v5202 = vpack.c.b16 %v5074, %v5074
    %v5203 = vpack.c.b16 %v5075, %v5075
    %v5204 = vpack.c.b16 %v5076, %v5076
    %v5205 = vpack.c.b16 %v5077, %v5077
    %v5206 = vpack.c.b16 %v5078, %v5078
    %v5207 = vpack.c.b16 %v5079, %v5079
    %v5208 = vpack.c.b16 %v5080, %v5080
    %v5209 = vpack.c.b16 %v5081, %v5081
    %v5210 = vpack.c.b16 %v5082, %v5082
    %v5211 = vpack.c.b16 %v5083, %v5083
    %v5212 = vpack.c.b16 %v5084, %v5084
    %v5213 = vpack.c.b16 %v5085, %v5085
    %v5214 = vpack.c.b16 %v5086, %v5086
    %v5215 = vpack.c.b16 %v5087, %v5087
    %v5216 = vpack.c.b16 %v5088, %v5088
    %v5217 = vpack.c.b16 %v5089, %v5089
    %v5218 = vpack.c.b16 %v5090, %v5090
    %v5219 = vpack.c.b16 %v5091, %v5091
    %v5220 = vpack.c.b16 %v5092, %v5092
    %v5221 = vpack.c.b16 %v5093, %v5093
    %v5222 = vpack.c.b16 %v5094, %v5094
    %v5223 = vpack.c.b16 %v5095, %v5095
    %v5224 = vpack.c.b16 %v5096, %v5096
    %v5225 = vpack.c.b16 %v5097, %v5097
    %v5226 = vpack.c.b16 %v5098, %v5098
    %v5227 = vpack.c.b16 %v5099, %v5099
    %v5228 = vpack.c.b16 %v5100, %v5100
    %v5229 = vpack.c.b16 %v5101, %v5101
    %v5230 = vpack.c.b16 %v5102, %v5102
    %v5231 = vpack.c.b16 %v5103, %v5103
    %v5232 = vpack.c.b16 %v5104, %v5104
    %v5233 = vpack.c.b16 %v5105, %v5105
    %v5234 = vpack.c.b16 %v5106, %v5106
    %v5235 = vpack.c.b16 %v5107, %v5107
    %v5236 = vpack.c.b16 %v5108, %v5108
    %v5237 = vpack.c.b16 %v5109, %v5109
    %v5238 = vpack.c.b16 %v5110, %v5110
    %v5239 = vpack.c.b16 %v5111, %v5111
    %v5240 = vpack.c.b16 %v5112, %v5112
    %v5241 = vpack.c.b16 %v5113, %v5113
    %v5242 = vpack.c.b16 %v5114, %v5114
    %v5243 = vpack.c.b16 %v5115, %v5115
    %v5244 = vpack.c.b16 %v5116, %v5116
    %v5245 = vpack.c.b16 %v5117, %v5117
    %v5246 = vpack.c.b16 %v5118, %v5118
    %v5247 = vpack.c.b16 %v5119, %v5119
    %v5248 = vpack.c.b16 %v5120, %v5120
    %v5249 = vpack.c.b16 %v5121, %v5121
    %v5250 = vpack.c.b16 %v5122, %v5122
    %v5251 = vpack.c.b16 %v5123, %v5123
    %v5252 = vpack.c.b16 %v5124, %v5124
    %v5253 = vpack.c.b16 %v5125, %v5125
    %v5254 = vpack.c.b16 %v5126, %v5126
    %v5255 = vpack.c.b16 %v5127, %v5127
    %v5256 = vpack.c.b16 %v5128, %v5128
    %v5257 = vpack.c.b16 %v5129, %v5129
    %v5258 = vpack.c.b16 %v5130, %v5130
    %v5259 = vpack.c.b16 %v5131, %v5131
    %v5260 = vpack.c.b16 %v5132, %v5132
    %v5261 = vpack.c.b16 %v5133, %v5133
    %v5262 = vpack.c.b16 %v5134, %v5134
    %v5263 = vpack.c.b16 %v5135, %v5135
    %v5264 = vpack.c.b16 %v5136, %v5136
    %v5265 = vpack.c.b16 %v5137, %v5137
    %v5266 = vpack.c.b16 %v5138, %v5138
    %5395 = vst [vmem:[#allocation2] sm:$0xf] %v5139
    %5396 = vst [vmem:[#allocation2 + $0x4] sm:$0xf] %v5140
    %5397 = vst [vmem:[#allocation2 + $0x8] sm:$0xf] %v5141
    %5398 = vst [vmem:[#allocation2 + $0xc] sm:$0xf] %v5142
    %5399 = vst [vmem:[#allocation2 + $0x10] sm:$0xf] %v5143
    %5400 = vst [vmem:[#allocation2 + $0x14] sm:$0xf] %v5144
    %5401 = vst [vmem:[#allocation2 + $0x18] sm:$0xf] %v5145
    %5402 = vst [vmem:[#allocation2 + $0x1c] sm:$0xf] %v5146
    %5403 = vst [vmem:[#allocation2 + $0x20] sm:$0xf] %v5147
    %5404 = vst [vmem:[#allocation2 + $0x24] sm:$0xf] %v5148
    %5405 = vst [vmem:[#allocation2 + $0x28] sm:$0xf] %v5149
    %5406 = vst [vmem:[#allocation2 + $0x2c] sm:$0xf] %v5150
    %5407 = vst [vmem:[#allocation2 + $0x30] sm:$0xf] %v5151
    %5408 = vst [vmem:[#allocation2 + $0x34] sm:$0xf] %v5152
    %5409 = vst [vmem:[#allocation2 + $0x38] sm:$0xf] %v5153
    %5410 = vst [vmem:[#allocation2 + $0x3c] sm:$0xf] %v5154
    %5411 = vst [vmem:[#allocation2 + $0x40] sm:$0xf] %v5155
    %5412 = vst [vmem:[#allocation2 + $0x44] sm:$0xf] %v5156
    %5413 = vst [vmem:[#allocation2 + $0x48] sm:$0xf] %v5157
    %5414 = vst [vmem:[#allocation2 + $0x4c] sm:$0xf] %v5158
    %5415 = vst [vmem:[#allocation2 + $0x50] sm:$0xf] %v5159
    %5416 = vst [vmem:[#allocation2 + $0x54] sm:$0xf] %v5160
    %5417 = vst [vmem:[#allocation2 + $0x58] sm:$0xf] %v5161
    %5418 = vst [vmem:[#allocation2 + $0x5c] sm:$0xf] %v5162
    %5419 = vst [vmem:[#allocation2 + $0x60] sm:$0xf] %v5163
    %5420 = vst [vmem:[#allocation2 + $0x64] sm:$0xf] %v5164
    %5421 = vst [vmem:[#allocation2 + $0x68] sm:$0xf] %v5165
    %5422 = vst [vmem:[#allocation2 + $0x6c] sm:$0xf] %v5166
    %5423 = vst [vmem:[#allocation2 + $0x70] sm:$0xf] %v5167
    %5424 = vst [vmem:[#allocation2 + $0x74] sm:$0xf] %v5168
    %5425 = vst [vmem:[#allocation2 + $0x78] sm:$0xf] %v5169
    %5426 = vst [vmem:[#allocation2 + $0x7c] sm:$0xf] %v5170
    %5427 = vst [vmem:[#allocation2 + $0x80] sm:$0xf] %v5171
    %5428 = vst [vmem:[#allocation2 + $0x84] sm:$0xf] %v5172
    %5429 = vst [vmem:[#allocation2 + $0x88] sm:$0xf] %v5173
    %5430 = vst [vmem:[#allocation2 + $0x8c] sm:$0xf] %v5174
    %5431 = vst [vmem:[#allocation2 + $0x90] sm:$0xf] %v5175
    %5432 = vst [vmem:[#allocation2 + $0x94] sm:$0xf] %v5176
    %5433 = vst [vmem:[#allocation2 + $0x98] sm:$0xf] %v5177
    %5434 = vst [vmem:[#allocation2 + $0x9c] sm:$0xf] %v5178
    %5435 = vst [vmem:[#allocation2 + $0xa0] sm:$0xf] %v5179
    %5436 = vst [vmem:[#allocation2 + $0xa4] sm:$0xf] %v5180
    %5437 = vst [vmem:[#allocation2 + $0xa8] sm:$0xf] %v5181
    %5438 = vst [vmem:[#allocation2 + $0xac] sm:$0xf] %v5182
    %5439 = vst [vmem:[#allocation2 + $0xb0] sm:$0xf] %v5183
    %5440 = vst [vmem:[#allocation2 + $0xb4] sm:$0xf] %v5184
    %5441 = vst [vmem:[#allocation2 + $0xb8] sm:$0xf] %v5185
    %5442 = vst [vmem:[#allocation2 + $0xbc] sm:$0xf] %v5186
    %5443 = vst [vmem:[#allocation2 + $0xc0] sm:$0xf] %v5187
    %5444 = vst [vmem:[#allocation2 + $0xc4] sm:$0xf] %v5188
    %5445 = vst [vmem:[#allocation2 + $0xc8] sm:$0xf] %v5189
    %5446 = vst [vmem:[#allocation2 + $0xcc] sm:$0xf] %v5190
    %5447 = vst [vmem:[#allocation2 + $0xd0] sm:$0xf] %v5191
    %5448 = vst [vmem:[#allocation2 + $0xd4] sm:$0xf] %v5192
    %5449 = vst [vmem:[#allocation2 + $0xd8] sm:$0xf] %v5193
    %5450 = vst [vmem:[#allocation2 + $0xdc] sm:$0xf] %v5194
    %5451 = vst [vmem:[#allocation2 + $0xe0] sm:$0xf] %v5195
    %5452 = vst [vmem:[#allocation2 + $0xe4] sm:$0xf] %v5196
    %5453 = vst [vmem:[#allocation2 + $0xe8] sm:$0xf] %v5197
    %5454 = vst [vmem:[#allocation2 + $0xec] sm:$0xf] %v5198
    %5455 = vst [vmem:[#allocation2 + $0xf0] sm:$0xf] %v5199
    %5456 = vst [vmem:[#allocation2 + $0xf4] sm:$0xf] %v5200
    %5457 = vst [vmem:[#allocation2 + $0xf8] sm:$0xf] %v5201
    %5458 = vst [vmem:[#allocation2 + $0xfc] sm:$0xf] %v5202
    %5459 = vst [vmem:[#allocation2 + $0x100] sm:$0xf] %v5203
    %5460 = vst [vmem:[#allocation2 + $0x104] sm:$0xf] %v5204
    %5461 = vst [vmem:[#allocation2 + $0x108] sm:$0xf] %v5205
    %5462 = vst [vmem:[#allocation2 + $0x10c] sm:$0xf] %v5206
    %5463 = vst [vmem:[#allocation2 + $0x110] sm:$0xf] %v5207
    %5464 = vst [vmem:[#allocation2 + $0x114] sm:$0xf] %v5208
    %5465 = vst [vmem:[#allocation2 + $0x118] sm:$0xf] %v5209
    %5466 = vst [vmem:[#allocation2 + $0x11c] sm:$0xf] %v5210
    %5467 = vst [vmem:[#allocation2 + $0x120] sm:$0xf] %v5211
    %5468 = vst [vmem:[#allocation2 + $0x124] sm:$0xf] %v5212
    %5469 = vst [vmem:[#allocation2 + $0x128] sm:$0xf] %v5213
    %5470 = vst [vmem:[#allocation2 + $0x12c] sm:$0xf] %v5214
    %5471 = vst [vmem:[#allocation2 + $0x130] sm:$0xf] %v5215
    %5472 = vst [vmem:[#allocation2 + $0x134] sm:$0xf] %v5216
    %5473 = vst [vmem:[#allocation2 + $0x138] sm:$0xf] %v5217
    %5474 = vst [vmem:[#allocation2 + $0x13c] sm:$0xf] %v5218
    %5475 = vst [vmem:[#allocation2 + $0x140] sm:$0xf] %v5219
    %5476 = vst [vmem:[#allocation2 + $0x144] sm:$0xf] %v5220
    %5477 = vst [vmem:[#allocation2 + $0x148] sm:$0xf] %v5221
    %5478 = vst [vmem:[#allocation2 + $0x14c] sm:$0xf] %v5222
    %5479 = vst [vmem:[#allocation2 + $0x150] sm:$0xf] %v5223
    %5480 = vst [vmem:[#allocation2 + $0x154] sm:$0xf] %v5224
    %5481 = vst [vmem:[#allocation2 + $0x158] sm:$0xf] %v5225
    %5482 = vst [vmem:[#allocation2 + $0x15c] sm:$0xf] %v5226
    %5483 = vst [vmem:[#allocation2 + $0x160] sm:$0xf] %v5227
    %5484 = vst [vmem:[#allocation2 + $0x164] sm:$0xf] %v5228
    %5485 = vst [vmem:[#allocation2 + $0x168] sm:$0xf] %v5229
    %5486 = vst [vmem:[#allocation2 + $0x16c] sm:$0xf] %v5230
    %5487 = vst [vmem:[#allocation2 + $0x170] sm:$0xf] %v5231
    %5488 = vst [vmem:[#allocation2 + $0x174] sm:$0xf] %v5232
    %5489 = vst [vmem:[#allocation2 + $0x178] sm:$0xf] %v5233
    %5490 = vst [vmem:[#allocation2 + $0x17c] sm:$0xf] %v5234
    %5491 = vst [vmem:[#allocation2 + $0x180] sm:$0xf] %v5235
    %5492 = vst [vmem:[#allocation2 + $0x184] sm:$0xf] %v5236
    %5493 = vst [vmem:[#allocation2 + $0x188] sm:$0xf] %v5237
    %5494 = vst [vmem:[#allocation2 + $0x18c] sm:$0xf] %v5238
    %5495 = vst [vmem:[#allocation2 + $0x190] sm:$0xf] %v5239
    %5496 = vst [vmem:[#allocation2 + $0x194] sm:$0xf] %v5240
    %5497 = vst [vmem:[#allocation2 + $0x198] sm:$0xf] %v5241
    %5498 = vst [vmem:[#allocation2 + $0x19c] sm:$0xf] %v5242
    %5499 = vst [vmem:[#allocation2 + $0x1a0] sm:$0xf] %v5243
    %5500 = vst [vmem:[#allocation2 + $0x1a4] sm:$0xf] %v5244
    %5501 = vst [vmem:[#allocation2 + $0x1a8] sm:$0xf] %v5245
    %5502 = vst [vmem:[#allocation2 + $0x1ac] sm:$0xf] %v5246
    %5503 = vst [vmem:[#allocation2 + $0x1b0] sm:$0xf] %v5247
    %5504 = vst [vmem:[#allocation2 + $0x1b4] sm:$0xf] %v5248
    %5505 = vst [vmem:[#allocation2 + $0x1b8] sm:$0xf] %v5249
    %5506 = vst [vmem:[#allocation2 + $0x1bc] sm:$0xf] %v5250
    %5507 = vst [vmem:[#allocation2 + $0x1c0] sm:$0xf] %v5251
    %5508 = vst [vmem:[#allocation2 + $0x1c4] sm:$0xf] %v5252
    %5509 = vst [vmem:[#allocation2 + $0x1c8] sm:$0xf] %v5253
    %5510 = vst [vmem:[#allocation2 + $0x1cc] sm:$0xf] %v5254
    %5511 = vst [vmem:[#allocation2 + $0x1d0] sm:$0xf] %v5255
    %5512 = vst [vmem:[#allocation2 + $0x1d4] sm:$0xf] %v5256
    %5513 = vst [vmem:[#allocation2 + $0x1d8] sm:$0xf] %v5257
    %5514 = vst [vmem:[#allocation2 + $0x1dc] sm:$0xf] %v5258
    %5515 = vst [vmem:[#allocation2 + $0x1e0] sm:$0xf] %v5259
    %5516 = vst [vmem:[#allocation2 + $0x1e4] sm:$0xf] %v5260
    %5517 = vst [vmem:[#allocation2 + $0x1e8] sm:$0xf] %v5261
    %5518 = vst [vmem:[#allocation2 + $0x1ec] sm:$0xf] %v5262
    %5519 = vst [vmem:[#allocation2 + $0x1f0] sm:$0xf] %v5263
    %5520 = vst [vmem:[#allocation2 + $0x1f4] sm:$0xf] %v5264
    %5521 = vst [vmem:[#allocation2 + $0x1f8] sm:$0xf] %v5265
    %5522 = vst [vmem:[#allocation2 + $0x1fc] sm:$0xf] %v5266
    // Predicated region
    $region38: #{tpu_custom_call.1} parent=1 // pred_check
      _
    $region39: #{tpu_custom_call.1} parent=1 // pred_check_branch
      %5524 = sbr.rel (0) target = $region41
    $region40: #{tpu_custom_call.1} parent=1 // pred_region
      %s5526 = ssub.s32 8192, 8192
      %5527 = vsyncadd [#allocation3], %s5526
      %s5528 = sshll.u32 [#allocation2], 4
      %s5529 = int_to_ptr.vmem [resolvable:$true] %s5528
      %5534 = dma.vmem_to_hbm [thread:$0]  %s5529, 8192, %s9, [#allocation3], 64, 64, 4
    $region41: #{tpu_custom_call.1} parent=1 // pred_fallthru
      _
    // Predicated region
    $region42: #{tpu_custom_call.1} parent=1 // pred_check
      _
    $region43: #{tpu_custom_call.1} parent=1 // pred_check_branch
      %5536 = sbr.rel (0) target = $region45
    $region44: #{tpu_custom_call.1} parent=1 // pred_region
      %5537 = dma.done [#allocation3], 8192
    $region45: #{tpu_custom_call.1} parent=1 // pred_fallthru
      _
    %5538 = vsyncpa [#allocation3], 1

</llo_original>
